<compile_context>
chip_gen: v6e
topology: v6e:2x2x1
jax: 0.10.0
libtpu: 0.0.40
codegen_flags: <defaults>
</compile_context>

<pallas_src>
import functools
import math

import jax
import jax.numpy as jnp
from jax.experimental import pallas as pl
from jax.experimental.pallas import tpu as pltpu

_SQRT_HALF = 0.7071067811865476
_LANE = 128

# ----------------------------- in-kernel helpers ----------------------------


def _erf_poly(x):
    # Abramowitz & Stegun 7.1.26, max abs err ~1.5e-7 -> effectively-exact GELU,
    # using only mul/add/where/exp (guaranteed Mosaic lowering).
    p = 0.3275911
    a1, a2, a3, a4, a5 = (0.254829592, -0.284496736, 1.421413741,
                          -1.453152027, 1.061405429)
    sgn = jnp.where(x >= 0.0, 1.0, -1.0)
    ax = x * sgn
    t = 1.0 / (1.0 + p * ax)
    poly = ((((a5 * t + a4) * t + a3) * t + a2) * t + a1) * t
    return sgn * (1.0 - poly * jnp.exp(-ax * ax))


def _gelu_exact(x):
    return 0.5 * x * (1.0 + _erf_poly(x * _SQRT_HALF))


def _ln(x, g, b, eps=1e-12):
    mu = jnp.mean(x, axis=-1, keepdims=True)
    xc = x - mu
    var = jnp.mean(xc * xc, axis=-1, keepdims=True)
    return xc * jax.lax.rsqrt(var + eps) * g + b


def _bf16_dot(a, w_ref, bias):
    # bf16 MXU operands, f32 accumulation; bias is an f32 (1, N) row.
    return jnp.dot(a.astype(jnp.bfloat16), w_ref[...],
                   preferred_element_type=jnp.float32) + bias


# ----------------------------- fused layer kernel ---------------------------


def _encoder_layer_kernel(*refs, nh, dh, fuse_emb_ln, fuse_head):
    """One full BERT encoder layer for one batch element (all heads batched).

    Optionally fuses the embedding LayerNorm (first layer) and the pooler +
    classifier head on the [CLS] row (last layer) into the same launch.
    """
    it = iter(refs)
    x_ref = next(it)
    m_ref = next(it)
    if fuse_emb_ln:
        embg_ref = next(it)
        embb_ref = next(it)
    wqkv_ref = next(it); bqkv_ref = next(it)
    wo_ref = next(it);   bo_ref = next(it)
    ln1g_ref = next(it); ln1b_ref = next(it)
    w1_ref = next(it);   b1_ref = next(it)
    w2_ref = next(it);   b2_ref = next(it)
    ln2g_ref = next(it); ln2b_ref = next(it)
    if fuse_head:
        wp_ref = next(it); bp_ref = next(it)
        wc_ref = next(it); bc_ref = next(it)
    o_ref = next(it)
    logits_ref = next(it) if fuse_head else None

    H = nh * dh
    x = x_ref[0].astype(jnp.float32)                 # (S, H) f32 math in-kernel
    if fuse_emb_ln:
        x = _ln(x, embg_ref[...], embb_ref[...])
    m = m_ref[0]                                     # (1, S) additive key mask (one broadcast)

    # Fused QKV projection: one (S, H) @ (H, 3H) bf16 matmul, f32 accumulate.
    # The 1/sqrt(dh) attention scale is pre-folded into the Q weights/bias host-side.
    qkv = _bf16_dot(x, wqkv_ref, bqkv_ref[...])      # (S, 3H) f32

    # Head split: stack dh-wide lane slices along a new leading head axis so the
    # score / context matmuls run as single batched bf16 MXU contractions
    # (no per-head matmul loop, no explicit K transpose).
    def to_heads(mat):                               # (S, H) -> (nh, S, dh) bf16
        return jnp.stack([mat[:, h * dh:(h + 1) * dh] for h in range(nh)],
                         axis=0).astype(jnp.bfloat16)

    q = to_heads(qkv[:, :H])
    k = to_heads(qkv[:, H:2 * H])
    v = to_heads(qkv[:, 2 * H:])

    s = jnp.einsum('hqd,hkd->hqk', q, k,
                   preferred_element_type=jnp.float32) + m          # (nh, S, S)
    s = s - jnp.max(s, axis=-1, keepdims=True)
    p = jnp.exp(s)
    p = p * pl.reciprocal(jnp.sum(p, axis=-1, keepdims=True), approx=True)

    ctx3 = jnp.einsum('hqk,hkd->hqd', p.astype(jnp.bfloat16), v,
                      preferred_element_type=jnp.float32)           # (nh, S, dh)
    ctx = jnp.concatenate([ctx3[h] for h in range(nh)], axis=-1)    # (S, H)

    # Output projection + residual LayerNorm.
    attn = _bf16_dot(ctx, wo_ref, bo_ref[...])
    x1 = _ln(attn + x, ln1g_ref[...], ln1b_ref[...])

    # Feed-forward (exact-erf GELU) + residual LayerNorm.
    ff = _gelu_exact(_bf16_dot(x1, w1_ref, b1_ref[...]))
    y = _bf16_dot(ff, w2_ref, b2_ref[...])
    out = _ln(y + x1, ln2g_ref[...], ln2b_ref[...])
    o_ref[0] = out.astype(o_ref.dtype)

    if fuse_head:
        # Pooler tanh on [CLS] + dropout(p=0.1, inference identity) + classifier,
        # fused into the last layer's epilogue (classifier padded to 128 lanes).
        cls = out[0:1, :]                                           # (1, H)
        pooled = jnp.tanh(_bf16_dot(cls, wp_ref, bp_ref[...]))
        logits_ref[0] = _bf16_dot(pooled, wc_ref, bc_ref[...]).astype(logits_ref.dtype)


def _layer_vmem_limit_bytes(S, H, I, nh):
    """Coarse scoped-VMEM budget: double-buffered blocks + in-kernel temporaries."""
    act = S * H * 4
    weights = (3 * H * H + H * H + 2 * H * I) * 2              # bf16 matmul weights
    small = (3 * H + 8 * H + I) * 4                             # biases + LN params (f32)
    inter = (S * 3 * H + 2 * nh * S * S + 2 * S * I + 4 * S * H) * 4
    est = 2 * (2 * act + weights + small) + inter
    # Floor keeps toy shapes safely above every chip's default scoped limit behavior;
    # cap stays within v7x's 64 MiB physical VMEM.
    return int(min(max(est, 32 * 1024 * 1024), 64 * 1024 * 1024))


def encoder_layer(x_bsh, ext_mask, p, *, nh, dh, emb_ln=None, head=None):
    """One fused encoder-layer launch.

    x_bsh:    (B, S, H) activations (f32 raw embeddings into layer 0, bf16 between layers).
    ext_mask: (B, 1, S) f32 additive key mask.
    emb_ln:   optional (gamma, beta) -> fuse the embedding LayerNorm (first layer).
    head:     optional (wp, bp, wc_pad, bc_pad) -> fuse pooler+classifier (last layer);
              returns (hidden_bf16, padded_logits) in that case.
    """
    B, S, H = x_bsh.shape
    I = p["w1"].shape[1]
    full = lambda b: (0, 0)

    inputs = [x_bsh, ext_mask]
    in_specs = [
        pl.BlockSpec((1, S, H), lambda b: (b, 0, 0)),        # activations
        pl.BlockSpec((1, 1, S), lambda b: (b, 0, 0)),        # additive key mask
    ]
    if emb_ln is not None:
        inputs += [emb_ln[0], emb_ln[1]]
        in_specs += [pl.BlockSpec((1, H), full), pl.BlockSpec((1, H), full)]
    inputs += [p["wqkv"], p["bqkv"], p["wo"], p["bo"], p["ln1_g"], p["ln1_b"],
               p["w1"], p["b1"], p["w2"], p["b2"], p["ln2_g"], p["ln2_b"]]
    # TODO(synk): single-buffer these constant-index weight blocks (pl.Buffered(1) /
    # DMA-once into scratch) for BERT-base shapes; default double-buffering is kept here
    # to minimize lowering risk at the toy config where the footprint is tiny.
    in_specs += [
        pl.BlockSpec((H, 3 * H), full), pl.BlockSpec((1, 3 * H), full),   # wqkv / bqkv
        pl.BlockSpec((H, H), full),     pl.BlockSpec((1, H), full),       # wo / bo
        pl.BlockSpec((1, H), full),     pl.BlockSpec((1, H), full),       # ln1 g/b
        pl.BlockSpec((H, I), full),     pl.BlockSpec((1, I), full),       # w1 / b1
        pl.BlockSpec((I, H), full),     pl.BlockSpec((1, H), full),       # w2 / b2
        pl.BlockSpec((1, H), full),     pl.BlockSpec((1, H), full),       # ln2 g/b
    ]
    if head is not None:
        wp, bp, wc_pad, bc_pad = head
        Cp = wc_pad.shape[1]
        inputs += [wp, bp, wc_pad, bc_pad]
        in_specs += [pl.BlockSpec((H, H), full),  pl.BlockSpec((1, H), full),
                     pl.BlockSpec((H, Cp), full), pl.BlockSpec((1, Cp), full)]

    kernel = functools.partial(_encoder_layer_kernel, nh=nh, dh=dh,
                               fuse_emb_ln=emb_ln is not None,
                               fuse_head=head is not None)
    # TODO(synk): grid=(B,) alone leaves one v7x TensorCore idle when B == 1; the
    # production seq-tiled version should make the sequence axis the "parallel" one.
    cp = pltpu.CompilerParams(
        dimension_semantics=("parallel",),
        vmem_limit_bytes=_layer_vmem_limit_bytes(S, H, I, nh))

    hidden_shape = jax.ShapeDtypeStruct((B, S, H), jnp.bfloat16)   # bf16 inter-layer acts
    hidden_spec = pl.BlockSpec((1, S, H), lambda b: (b, 0, 0))

    if head is None:
        return pl.pallas_call(
            kernel, out_shape=hidden_shape, grid=(B,),
            in_specs=in_specs, out_specs=hidden_spec,
            compiler_params=cp,
        )(*inputs)

    Cp = head[2].shape[1]
    hidden, logits = pl.pallas_call(
        kernel,
        out_shape=(hidden_shape, jax.ShapeDtypeStruct((B, 1, Cp), jnp.float32)),
        grid=(B,),
        in_specs=in_specs,
        out_specs=(hidden_spec, pl.BlockSpec((1, 1, Cp), lambda b: (b, 0, 0))),
        compiler_params=cp,
    )(*inputs)
    return hidden, logits[:, 0, :]


# ------------------------------- model glue --------------------------------

CFG = dict(
    vocab=100,
    max_pos=32,
    type_vocab=2,
    hidden=32,
    heads=4,
    layers=2,
    intermediate=64,
    num_classes=2,
)


def init_params(key, cfg):
    H, I, C = cfg["hidden"], cfg["intermediate"], cfg["num_classes"]
    nh = cfg["heads"]
    dh = H // nh
    scale = 1.0 / math.sqrt(dh)
    ks = iter(jax.random.split(key, 5 + 6 * cfg["layers"]))

    def nrm(shape):
        return 0.02 * jax.random.normal(next(ks), shape, dtype=jnp.float32)

    # Classifier padded to a full 128-lane block (unmasked final store); the real logits
    # are the first C columns and get sliced outside the kernel.
    Cp = max(_LANE, C)
    fc_w = jnp.zeros((H, Cp), jnp.float32).at[:, :C].set(nrm((H, C)))

    params = dict(
        word_emb=nrm((cfg["vocab"], H)),
        pos_emb=nrm((cfg["max_pos"], H)),
        type_emb=nrm((cfg["type_vocab"], H)),
        emb_ln_g=jnp.ones((1, H), jnp.float32),
        emb_ln_b=jnp.zeros((1, H), jnp.float32),
        pooler_w=nrm((H, H)).astype(jnp.bfloat16),
        pooler_b=jnp.zeros((1, H), jnp.float32),
        fc_w=fc_w.astype(jnp.bfloat16),
        fc_b=jnp.zeros((1, Cp), jnp.float32),
        layers=[],
    )
    for _ in range(cfg["layers"]):
        wq, wk, wv = nrm((H, H)), nrm((H, H)), nrm((H, H))
        params["layers"].append(dict(
            # fused [Wq*scale | Wk | Wv]: the 1/sqrt(dh) attention scale is folded
            # into the Q projection host-side (zero in-kernel cost).
            wqkv=jnp.concatenate([wq * scale, wk, wv], axis=1).astype(jnp.bfloat16),
            bqkv=jnp.zeros((1, 3 * H), jnp.float32),
            wo=nrm((H, H)).astype(jnp.bfloat16),
            bo=jnp.zeros((1, H), jnp.float32),
            ln1_g=jnp.ones((1, H), jnp.float32),
            ln1_b=jnp.zeros((1, H), jnp.float32),
            w1=nrm((H, I)).astype(jnp.bfloat16),
            b1=jnp.zeros((1, I), jnp.float32),
            w2=nrm((I, H)).astype(jnp.bfloat16),
            b2=jnp.zeros((1, H), jnp.float32),
            ln2_g=jnp.ones((1, H), jnp.float32),
            ln2_b=jnp.zeros((1, H), jnp.float32),
        ))
    return params


def bert_classifier_forward(params, input_ids, attention_mask, cfg=CFG):
    B, S = input_ids.shape
    H, nh = cfg["hidden"], cfg["heads"]
    dh = H // nh
    C = cfg["num_classes"]

    # Embedding gathers are plain-JAX glue; token_type_ids default to all-zeros
    # (matches HF BertModel when the argument is omitted, as in the reference forward()).
    emb = (params["word_emb"][input_ids]
           + params["pos_emb"][:S][None, :, :]
           + params["type_emb"][0][None, None, :]).astype(jnp.float32)

    # HF-style additive key mask, kept tiny: (B, 1, S) instead of (B*nh, S, S).
    ext = ((1.0 - attention_mask.astype(jnp.float32)) * -1e9).reshape(B, 1, S)

    x = emb
    n_layers = len(params["layers"])
    logits = None
    for li, layer in enumerate(params["layers"]):
        emb_ln = (params["emb_ln_g"], params["emb_ln_b"]) if li == 0 else None
        head = None
        if li == n_layers - 1:
            head = (params["pooler_w"], params["pooler_b"],
                    params["fc_w"], params["fc_b"])
        if head is None:
            x = encoder_layer(x, ext, layer, nh=nh, dh=dh, emb_ln=emb_ln)
        else:
            x, logits_pad = encoder_layer(x, ext, layer, nh=nh, dh=dh,
                                          emb_ln=emb_ln, head=head)
            logits = logits_pad[:, :C]
    return logits


if __name__ == "__main__":
    key = jax.random.PRNGKey(0)
    kp, ki = jax.random.split(key)

    B, S = 2, 8
    params = init_params(kp, CFG)
    input_ids = jax.random.randint(ki, (B, S), 0, CFG["vocab"], dtype=jnp.int32)
    attention_mask = jnp.ones((B, S), dtype=jnp.int32)

    logits = jax.jit(bert_classifier_forward)(params, input_ids, attention_mask)
    jax.block_until_ready(logits)
    assert logits.shape == (B, CFG["num_classes"])
    print("KERNEL_OK")
</pallas_src>

<mosaic_0001>
module attributes {stable_mosaic.version = 11 : i64} {
  func.func @_encoder_layer_kernel(%arg0: i32, %arg1: memref<1x8x32xf32, #tpu.memory_space<vmem>>, %arg2: memref<1x1x8xf32, #tpu.memory_space<vmem>>, %arg3: memref<1x32xf32, #tpu.memory_space<vmem>>, %arg4: memref<1x32xf32, #tpu.memory_space<vmem>>, %arg5: memref<32x96xbf16, #tpu.memory_space<vmem>>, %arg6: memref<1x96xf32, #tpu.memory_space<vmem>>, %arg7: memref<32x32xbf16, #tpu.memory_space<vmem>>, %arg8: memref<1x32xf32, #tpu.memory_space<vmem>>, %arg9: memref<1x32xf32, #tpu.memory_space<vmem>>, %arg10: memref<1x32xf32, #tpu.memory_space<vmem>>, %arg11: memref<32x64xbf16, #tpu.memory_space<vmem>>, %arg12: memref<1x64xf32, #tpu.memory_space<vmem>>, %arg13: memref<64x32xbf16, #tpu.memory_space<vmem>>, %arg14: memref<1x32xf32, #tpu.memory_space<vmem>>, %arg15: memref<1x32xf32, #tpu.memory_space<vmem>>, %arg16: memref<1x32xf32, #tpu.memory_space<vmem>>, %arg17: memref<1x8x32xbf16, #tpu.memory_space<vmem>>) attributes {dimension_semantics = [#tpu.dimension_semantics<parallel>], iteration_bounds = array<i64: 2>, scalar_prefetch = 0 : i64, scratch_operands = 0 : i64, tpu.core_type = #tpu.core_type<tc>, window_params = [{transform_indices = @transform_0, window_bounds = array<i64: 1, 8, 32>}, {transform_indices = @transform_1, window_bounds = array<i64: 1, 1, 8>}, {pipeline_mode = #tpu.pipeline_mode<synchronous>, transform_indices = @transform_2, window_bounds = array<i64: 1, 32>}, {pipeline_mode = #tpu.pipeline_mode<synchronous>, transform_indices = @transform_3, window_bounds = array<i64: 1, 32>}, {pipeline_mode = #tpu.pipeline_mode<synchronous>, transform_indices = @transform_4, window_bounds = array<i64: 32, 96>}, {pipeline_mode = #tpu.pipeline_mode<synchronous>, transform_indices = @transform_5, window_bounds = array<i64: 1, 96>}, {pipeline_mode = #tpu.pipeline_mode<synchronous>, transform_indices = @transform_6, window_bounds = array<i64: 32, 32>}, {pipeline_mode = #tpu.pipeline_mode<synchronous>, transform_indices = @transform_7, window_bounds = array<i64: 1, 32>}, {pipeline_mode = #tpu.pipeline_mode<synchronous>, transform_indices = @transform_8, window_bounds = array<i64: 1, 32>}, {pipeline_mode = #tpu.pipeline_mode<synchronous>, transform_indices = @transform_9, window_bounds = array<i64: 1, 32>}, {pipeline_mode = #tpu.pipeline_mode<synchronous>, transform_indices = @transform_10, window_bounds = array<i64: 32, 64>}, {pipeline_mode = #tpu.pipeline_mode<synchronous>, transform_indices = @transform_11, window_bounds = array<i64: 1, 64>}, {pipeline_mode = #tpu.pipeline_mode<synchronous>, transform_indices = @transform_12, window_bounds = array<i64: 64, 32>}, {pipeline_mode = #tpu.pipeline_mode<synchronous>, transform_indices = @transform_13, window_bounds = array<i64: 1, 32>}, {pipeline_mode = #tpu.pipeline_mode<synchronous>, transform_indices = @transform_14, window_bounds = array<i64: 1, 32>}, {pipeline_mode = #tpu.pipeline_mode<synchronous>, transform_indices = @transform_15, window_bounds = array<i64: 1, 32>}, {transform_indices = @transform_16, window_bounds = array<i64: 1, 8, 32>}]} {
    %c0 = arith.constant 0 : index
    %c0_0 = arith.constant 0 : index
    %c0_1 = arith.constant 0 : index
    %0 = vector.load %arg1[%c0, %c0_0, %c0_1] : memref<1x8x32xf32, #tpu.memory_space<vmem>>, vector<1x8x32xf32>
    %1 = vector.shape_cast %0 : vector<1x8x32xf32> to vector<8x32xf32>
    %c0_2 = arith.constant 0 : index
    %c0_3 = arith.constant 0 : index
    %2 = vector.load %arg3[%c0_2, %c0_3] : memref<1x32xf32, #tpu.memory_space<vmem>>, vector<1x32xf32>
    %c0_4 = arith.constant 0 : index
    %c0_5 = arith.constant 0 : index
    %3 = vector.load %arg4[%c0_4, %c0_5] : memref<1x32xf32, #tpu.memory_space<vmem>>, vector<1x32xf32>
    %cst = arith.constant dense<0.000000e+00> : vector<8xf32>
    %4 = vector.multi_reduction <add>, %1, %cst [1] : vector<8x32xf32> to vector<8xf32>
    %5 = vector.shape_cast %4 : vector<8xf32> to vector<8x1xf32>
    %cst_6 = arith.constant 3.200000e+01 : f32
    %6 = vector.broadcast %cst_6 : f32 to vector<8x1xf32>
    %7 = arith.divf %5, %6 : vector<8x1xf32>
    %8 = vector.broadcast %7 : vector<8x1xf32> to vector<8x32xf32>
    %9 = arith.subf %1, %8 : vector<8x32xf32>
    %10 = arith.mulf %9, %9 : vector<8x32xf32>
    %cst_7 = arith.constant dense<0.000000e+00> : vector<8xf32>
    %11 = vector.multi_reduction <add>, %10, %cst_7 [1] : vector<8x32xf32> to vector<8xf32>
    %12 = vector.shape_cast %11 : vector<8xf32> to vector<8x1xf32>
    %cst_8 = arith.constant 3.200000e+01 : f32
    %13 = vector.broadcast %cst_8 : f32 to vector<8x1xf32>
    %14 = arith.divf %12, %13 : vector<8x1xf32>
    %cst_9 = arith.constant 9.99999996E-13 : f32
    %15 = vector.broadcast %cst_9 : f32 to vector<8x1xf32>
    %16 = arith.addf %14, %15 : vector<8x1xf32>
    %17 = math.rsqrt %16 : vector<8x1xf32>
    %18 = vector.broadcast %17 : vector<8x1xf32> to vector<8x32xf32>
    %19 = arith.mulf %9, %18 : vector<8x32xf32>
    %20 = vector.broadcast %2 : vector<1x32xf32> to vector<8x32xf32>
    %21 = arith.mulf %19, %20 : vector<8x32xf32>
    %22 = vector.broadcast %3 : vector<1x32xf32> to vector<8x32xf32>
    %23 = arith.addf %21, %22 : vector<8x32xf32>
    %c0_10 = arith.constant 0 : index
    %c0_11 = arith.constant 0 : index
    %c0_12 = arith.constant 0 : index
    %24 = vector.load %arg2[%c0_10, %c0_11, %c0_12] : memref<1x1x8xf32, #tpu.memory_space<vmem>>, vector<1x1x8xf32>
    %25 = vector.shape_cast %24 : vector<1x1x8xf32> to vector<1x8xf32>
    %c0_13 = arith.constant 0 : index
    %c0_14 = arith.constant 0 : index
    %26 = vector.load %arg6[%c0_13, %c0_14] : memref<1x96xf32, #tpu.memory_space<vmem>>, vector<1x96xf32>
    %27 = arith.truncf %23 : vector<8x32xf32> to vector<8x32xbf16>
    %c0_15 = arith.constant 0 : index
    %c0_16 = arith.constant 0 : index
    %28 = vector.load %arg5[%c0_15, %c0_16] : memref<32x96xbf16, #tpu.memory_space<vmem>>, vector<32x96xbf16>
    %cst_17 = arith.constant dense<0.000000e+00> : vector<8x96xf32>
    %29 = tpu.matmul %27, %28, %cst_17 {dimension_numbers = #tpu.dot_dimension_numbers<[1], [0], [0], [1], [0, 0, 1, 1], [], []>} : vector<8x32xbf16>, vector<32x96xbf16>, vector<8x96xf32> -> vector<8x96xf32>
    %30 = vector.broadcast %26 : vector<1x96xf32> to vector<8x96xf32>
    %31 = arith.addf %29, %30 : vector<8x96xf32>
    %32 = vector.extract_strided_slice %31 {offsets = [0, 0], sizes = [8, 32], strides = [1, 1]} : vector<8x96xf32> to vector<8x32xf32>
    %33 = vector.extract_strided_slice %32 {offsets = [0, 0], sizes = [8, 8], strides = [1, 1]} : vector<8x32xf32> to vector<8x8xf32>
    %34 = vector.extract_strided_slice %32 {offsets = [0, 8], sizes = [8, 8], strides = [1, 1]} : vector<8x32xf32> to vector<8x8xf32>
    %35 = vector.extract_strided_slice %32 {offsets = [0, 16], sizes = [8, 8], strides = [1, 1]} : vector<8x32xf32> to vector<8x8xf32>
    %36 = vector.extract_strided_slice %32 {offsets = [0, 24], sizes = [8, 8], strides = [1, 1]} : vector<8x32xf32> to vector<8x8xf32>
    %37 = vector.shape_cast %33 : vector<8x8xf32> to vector<1x8x8xf32>
    %38 = vector.shape_cast %34 : vector<8x8xf32> to vector<1x8x8xf32>
    %39 = vector.shape_cast %35 : vector<8x8xf32> to vector<1x8x8xf32>
    %40 = vector.shape_cast %36 : vector<8x8xf32> to vector<1x8x8xf32>
    %41 = tpu.concatenate %37, %38, %39, %40 in 0 : vector<1x8x8xf32>, vector<1x8x8xf32>, vector<1x8x8xf32>, vector<1x8x8xf32> -> vector<4x8x8xf32>
    %42 = arith.truncf %41 : vector<4x8x8xf32> to vector<4x8x8xbf16>
    %43 = vector.extract_strided_slice %31 {offsets = [0, 32], sizes = [8, 32], strides = [1, 1]} : vector<8x96xf32> to vector<8x32xf32>
    %44 = vector.extract_strided_slice %43 {offsets = [0, 0], sizes = [8, 8], strides = [1, 1]} : vector<8x32xf32> to vector<8x8xf32>
    %45 = vector.extract_strided_slice %43 {offsets = [0, 8], sizes = [8, 8], strides = [1, 1]} : vector<8x32xf32> to vector<8x8xf32>
    %46 = vector.extract_strided_slice %43 {offsets = [0, 16], sizes = [8, 8], strides = [1, 1]} : vector<8x32xf32> to vector<8x8xf32>
    %47 = vector.extract_strided_slice %43 {offsets = [0, 24], sizes = [8, 8], strides = [1, 1]} : vector<8x32xf32> to vector<8x8xf32>
    %48 = vector.shape_cast %44 : vector<8x8xf32> to vector<1x8x8xf32>
    %49 = vector.shape_cast %45 : vector<8x8xf32> to vector<1x8x8xf32>
    %50 = vector.shape_cast %46 : vector<8x8xf32> to vector<1x8x8xf32>
    %51 = vector.shape_cast %47 : vector<8x8xf32> to vector<1x8x8xf32>
    %52 = tpu.concatenate %48, %49, %50, %51 in 0 : vector<1x8x8xf32>, vector<1x8x8xf32>, vector<1x8x8xf32>, vector<1x8x8xf32> -> vector<4x8x8xf32>
    %53 = arith.truncf %52 : vector<4x8x8xf32> to vector<4x8x8xbf16>
    %54 = vector.extract_strided_slice %31 {offsets = [0, 64], sizes = [8, 32], strides = [1, 1]} : vector<8x96xf32> to vector<8x32xf32>
    %55 = vector.extract_strided_slice %54 {offsets = [0, 0], sizes = [8, 8], strides = [1, 1]} : vector<8x32xf32> to vector<8x8xf32>
    %56 = vector.extract_strided_slice %54 {offsets = [0, 8], sizes = [8, 8], strides = [1, 1]} : vector<8x32xf32> to vector<8x8xf32>
    %57 = vector.extract_strided_slice %54 {offsets = [0, 16], sizes = [8, 8], strides = [1, 1]} : vector<8x32xf32> to vector<8x8xf32>
    %58 = vector.extract_strided_slice %54 {offsets = [0, 24], sizes = [8, 8], strides = [1, 1]} : vector<8x32xf32> to vector<8x8xf32>
    %59 = vector.shape_cast %55 : vector<8x8xf32> to vector<1x8x8xf32>
    %60 = vector.shape_cast %56 : vector<8x8xf32> to vector<1x8x8xf32>
    %61 = vector.shape_cast %57 : vector<8x8xf32> to vector<1x8x8xf32>
    %62 = vector.shape_cast %58 : vector<8x8xf32> to vector<1x8x8xf32>
    %63 = tpu.concatenate %59, %60, %61, %62 in 0 : vector<1x8x8xf32>, vector<1x8x8xf32>, vector<1x8x8xf32>, vector<1x8x8xf32> -> vector<4x8x8xf32>
    %64 = arith.truncf %63 : vector<4x8x8xf32> to vector<4x8x8xbf16>
    "tpu.trace_start"() <{level = 10 : i32, message = "hqd,hkd->hqk"}> : () -> ()
    %cst_18 = arith.constant dense<0.000000e+00> : vector<4x8x8xf32>
    %65 = tpu.matmul %42, %53, %cst_18 {dimension_numbers = #tpu.dot_dimension_numbers<[2], [2], [1], [1], [0, 0, 0, 1, 1, 1], [0], [0]>} : vector<4x8x8xbf16>, vector<4x8x8xbf16>, vector<4x8x8xf32> -> vector<4x8x8xf32>
    "tpu.trace_stop"() : () -> ()
    %66 = vector.shape_cast %25 : vector<1x8xf32> to vector<1x1x8xf32>
    %67 = vector.broadcast %66 : vector<1x1x8xf32> to vector<4x8x8xf32>
    %68 = arith.addf %65, %67 : vector<4x8x8xf32>
    %cst_19 = arith.constant dense<0xFF800000> : vector<4x8xf32>
    %69 = vector.multi_reduction <maximumf>, %68, %cst_19 [2] : vector<4x8x8xf32> to vector<4x8xf32>
    %70 = vector.shape_cast %69 : vector<4x8xf32> to vector<4x8x1xf32>
    %71 = vector.broadcast %70 : vector<4x8x1xf32> to vector<4x8x8xf32>
    %72 = arith.subf %68, %71 : vector<4x8x8xf32>
    %73 = math.exp %72 : vector<4x8x8xf32>
    %cst_20 = arith.constant dense<0.000000e+00> : vector<4x8xf32>
    %74 = vector.multi_reduction <add>, %73, %cst_20 [2] : vector<4x8x8xf32> to vector<4x8xf32>
    %75 = vector.shape_cast %74 : vector<4x8xf32> to vector<4x8x1xf32>
    %76 = tpu.reciprocal %75 {approx = true} : vector<4x8x1xf32> -> vector<4x8x1xf32>
    %77 = vector.broadcast %76 : vector<4x8x1xf32> to vector<4x8x8xf32>
    %78 = arith.mulf %73, %77 : vector<4x8x8xf32>
    %79 = arith.truncf %78 : vector<4x8x8xf32> to vector<4x8x8xbf16>
    "tpu.trace_start"() <{level = 10 : i32, message = "hqk,hkd->hqd"}> : () -> ()
    %cst_21 = arith.constant dense<0.000000e+00> : vector<4x8x8xf32>
    %80 = tpu.matmul %79, %64, %cst_21 {dimension_numbers = #tpu.dot_dimension_numbers<[2], [1], [1], [2], [0, 0, 0, 1, 1, 2], [0], [0]>} : vector<4x8x8xbf16>, vector<4x8x8xbf16>, vector<4x8x8xf32> -> vector<4x8x8xf32>
    "tpu.trace_stop"() : () -> ()
    %81 = vector.extract_strided_slice %80 {offsets = [0, 0, 0], sizes = [1, 8, 8], strides = [1, 1, 1]} : vector<4x8x8xf32> to vector<1x8x8xf32>
    %82 = vector.shape_cast %81 : vector<1x8x8xf32> to vector<8x8xf32>
    %83 = vector.extract_strided_slice %80 {offsets = [1, 0, 0], sizes = [1, 8, 8], strides = [1, 1, 1]} : vector<4x8x8xf32> to vector<1x8x8xf32>
    %84 = vector.shape_cast %83 : vector<1x8x8xf32> to vector<8x8xf32>
    %85 = vector.extract_strided_slice %80 {offsets = [2, 0, 0], sizes = [1, 8, 8], strides = [1, 1, 1]} : vector<4x8x8xf32> to vector<1x8x8xf32>
    %86 = vector.shape_cast %85 : vector<1x8x8xf32> to vector<8x8xf32>
    %87 = vector.extract_strided_slice %80 {offsets = [3, 0, 0], sizes = [1, 8, 8], strides = [1, 1, 1]} : vector<4x8x8xf32> to vector<1x8x8xf32>
    %88 = vector.shape_cast %87 : vector<1x8x8xf32> to vector<8x8xf32>
    %89 = tpu.concatenate %82, %84, %86, %88 in 1 : vector<8x8xf32>, vector<8x8xf32>, vector<8x8xf32>, vector<8x8xf32> -> vector<8x32xf32>
    %c0_22 = arith.constant 0 : index
    %c0_23 = arith.constant 0 : index
    %90 = vector.load %arg8[%c0_22, %c0_23] : memref<1x32xf32, #tpu.memory_space<vmem>>, vector<1x32xf32>
    %91 = arith.truncf %89 : vector<8x32xf32> to vector<8x32xbf16>
    %c0_24 = arith.constant 0 : index
    %c0_25 = arith.constant 0 : index
    %92 = vector.load %arg7[%c0_24, %c0_25] : memref<32x32xbf16, #tpu.memory_space<vmem>>, vector<32x32xbf16>
    %cst_26 = arith.constant dense<0.000000e+00> : vector<8x32xf32>
    %93 = tpu.matmul %91, %92, %cst_26 {dimension_numbers = #tpu.dot_dimension_numbers<[1], [0], [0], [1], [0, 0, 1, 1], [], []>} : vector<8x32xbf16>, vector<32x32xbf16>, vector<8x32xf32> -> vector<8x32xf32>
    %94 = vector.broadcast %90 : vector<1x32xf32> to vector<8x32xf32>
    %95 = arith.addf %93, %94 : vector<8x32xf32>
    %96 = arith.addf %95, %23 : vector<8x32xf32>
    %c0_27 = arith.constant 0 : index
    %c0_28 = arith.constant 0 : index
    %97 = vector.load %arg9[%c0_27, %c0_28] : memref<1x32xf32, #tpu.memory_space<vmem>>, vector<1x32xf32>
    %c0_29 = arith.constant 0 : index
    %c0_30 = arith.constant 0 : index
    %98 = vector.load %arg10[%c0_29, %c0_30] : memref<1x32xf32, #tpu.memory_space<vmem>>, vector<1x32xf32>
    %cst_31 = arith.constant dense<0.000000e+00> : vector<8xf32>
    %99 = vector.multi_reduction <add>, %96, %cst_31 [1] : vector<8x32xf32> to vector<8xf32>
    %100 = vector.shape_cast %99 : vector<8xf32> to vector<8x1xf32>
    %cst_32 = arith.constant 3.200000e+01 : f32
    %101 = vector.broadcast %cst_32 : f32 to vector<8x1xf32>
    %102 = arith.divf %100, %101 : vector<8x1xf32>
    %103 = vector.broadcast %102 : vector<8x1xf32> to vector<8x32xf32>
    %104 = arith.subf %96, %103 : vector<8x32xf32>
    %105 = arith.mulf %104, %104 : vector<8x32xf32>
    %cst_33 = arith.constant dense<0.000000e+00> : vector<8xf32>
    %106 = vector.multi_reduction <add>, %105, %cst_33 [1] : vector<8x32xf32> to vector<8xf32>
    %107 = vector.shape_cast %106 : vector<8xf32> to vector<8x1xf32>
    %cst_34 = arith.constant 3.200000e+01 : f32
    %108 = vector.broadcast %cst_34 : f32 to vector<8x1xf32>
    %109 = arith.divf %107, %108 : vector<8x1xf32>
    %cst_35 = arith.constant 9.99999996E-13 : f32
    %110 = vector.broadcast %cst_35 : f32 to vector<8x1xf32>
    %111 = arith.addf %109, %110 : vector<8x1xf32>
    %112 = math.rsqrt %111 : vector<8x1xf32>
    %113 = vector.broadcast %112 : vector<8x1xf32> to vector<8x32xf32>
    %114 = arith.mulf %104, %113 : vector<8x32xf32>
    %115 = vector.broadcast %97 : vector<1x32xf32> to vector<8x32xf32>
    %116 = arith.mulf %114, %115 : vector<8x32xf32>
    %117 = vector.broadcast %98 : vector<1x32xf32> to vector<8x32xf32>
    %118 = arith.addf %116, %117 : vector<8x32xf32>
    %c0_36 = arith.constant 0 : index
    %c0_37 = arith.constant 0 : index
    %119 = vector.load %arg12[%c0_36, %c0_37] : memref<1x64xf32, #tpu.memory_space<vmem>>, vector<1x64xf32>
    %120 = arith.truncf %118 : vector<8x32xf32> to vector<8x32xbf16>
    %c0_38 = arith.constant 0 : index
    %c0_39 = arith.constant 0 : index
    %121 = vector.load %arg11[%c0_38, %c0_39] : memref<32x64xbf16, #tpu.memory_space<vmem>>, vector<32x64xbf16>
    %cst_40 = arith.constant dense<0.000000e+00> : vector<8x64xf32>
    %122 = tpu.matmul %120, %121, %cst_40 {dimension_numbers = #tpu.dot_dimension_numbers<[1], [0], [0], [1], [0, 0, 1, 1], [], []>} : vector<8x32xbf16>, vector<32x64xbf16>, vector<8x64xf32> -> vector<8x64xf32>
    %123 = vector.broadcast %119 : vector<1x64xf32> to vector<8x64xf32>
    %124 = arith.addf %122, %123 : vector<8x64xf32>
    %cst_41 = arith.constant 5.000000e-01 : f32
    %125 = vector.broadcast %cst_41 : f32 to vector<8x64xf32>
    %126 = arith.mulf %125, %124 : vector<8x64xf32>
    %cst_42 = arith.constant 0.707106769 : f32
    %127 = vector.broadcast %cst_42 : f32 to vector<8x64xf32>
    %128 = arith.mulf %124, %127 : vector<8x64xf32>
    %cst_43 = arith.constant 0.000000e+00 : f32
    %129 = vector.broadcast %cst_43 : f32 to vector<8x64xf32>
    %130 = arith.cmpf oge, %128, %129 : vector<8x64xf32>
    %cst_44 = arith.constant 1.000000e+00 : f32
    %cst_45 = arith.constant -1.000000e+00 : f32
    %131 = vector.broadcast %cst_44 : f32 to vector<8x64xf32>
    %132 = vector.broadcast %cst_45 : f32 to vector<8x64xf32>
    %133 = arith.select %130, %131, %132 : vector<8x64xi1>, vector<8x64xf32>
    %134 = arith.mulf %128, %133 : vector<8x64xf32>
    %cst_46 = arith.constant 0.327591091 : f32
    %135 = vector.broadcast %cst_46 : f32 to vector<8x64xf32>
    %136 = arith.mulf %135, %134 : vector<8x64xf32>
    %cst_47 = arith.constant 1.000000e+00 : f32
    %137 = vector.broadcast %cst_47 : f32 to vector<8x64xf32>
    %138 = arith.addf %137, %136 : vector<8x64xf32>
    %cst_48 = arith.constant 1.000000e+00 : f32
    %139 = vector.broadcast %cst_48 : f32 to vector<8x64xf32>
    %140 = arith.divf %139, %138 : vector<8x64xf32>
    %cst_49 = arith.constant 1.06140542 : f32
    %141 = vector.broadcast %cst_49 : f32 to vector<8x64xf32>
    %142 = arith.mulf %141, %140 : vector<8x64xf32>
    %cst_50 = arith.constant -1.45315206 : f32
    %143 = vector.broadcast %cst_50 : f32 to vector<8x64xf32>
    %144 = arith.addf %142, %143 : vector<8x64xf32>
    %145 = arith.mulf %144, %140 : vector<8x64xf32>
    %cst_51 = arith.constant 1.42141378 : f32
    %146 = vector.broadcast %cst_51 : f32 to vector<8x64xf32>
    %147 = arith.addf %145, %146 : vector<8x64xf32>
    %148 = arith.mulf %147, %140 : vector<8x64xf32>
    %cst_52 = arith.constant -0.284496725 : f32
    %149 = vector.broadcast %cst_52 : f32 to vector<8x64xf32>
    %150 = arith.addf %148, %149 : vector<8x64xf32>
    %151 = arith.mulf %150, %140 : vector<8x64xf32>
    %cst_53 = arith.constant 0.254829586 : f32
    %152 = vector.broadcast %cst_53 : f32 to vector<8x64xf32>
    %153 = arith.addf %151, %152 : vector<8x64xf32>
    %154 = arith.mulf %153, %140 : vector<8x64xf32>
    %cst_54 = arith.constant 0.000000e+00 : f32
    %155 = vector.broadcast %cst_54 : f32 to vector<8x64xf32>
    %156 = arith.subf %155, %134 : vector<8x64xf32>
    %157 = arith.mulf %156, %134 : vector<8x64xf32>
    %158 = math.exp %157 : vector<8x64xf32>
    %159 = arith.mulf %154, %158 : vector<8x64xf32>
    %cst_55 = arith.constant 1.000000e+00 : f32
    %160 = vector.broadcast %cst_55 : f32 to vector<8x64xf32>
    %161 = arith.subf %160, %159 : vector<8x64xf32>
    %162 = arith.mulf %133, %161 : vector<8x64xf32>
    %cst_56 = arith.constant 1.000000e+00 : f32
    %163 = vector.broadcast %cst_56 : f32 to vector<8x64xf32>
    %164 = arith.addf %163, %162 : vector<8x64xf32>
    %165 = arith.mulf %126, %164 : vector<8x64xf32>
    %c0_57 = arith.constant 0 : index
    %c0_58 = arith.constant 0 : index
    %166 = vector.load %arg14[%c0_57, %c0_58] : memref<1x32xf32, #tpu.memory_space<vmem>>, vector<1x32xf32>
    %167 = arith.truncf %165 : vector<8x64xf32> to vector<8x64xbf16>
    %c0_59 = arith.constant 0 : index
    %c0_60 = arith.constant 0 : index
    %168 = vector.load %arg13[%c0_59, %c0_60] : memref<64x32xbf16, #tpu.memory_space<vmem>>, vector<64x32xbf16>
    %cst_61 = arith.constant dense<0.000000e+00> : vector<8x32xf32>
    %169 = tpu.matmul %167, %168, %cst_61 {dimension_numbers = #tpu.dot_dimension_numbers<[1], [0], [0], [1], [0, 0, 1, 1], [], []>} : vector<8x64xbf16>, vector<64x32xbf16>, vector<8x32xf32> -> vector<8x32xf32>
    %170 = vector.broadcast %166 : vector<1x32xf32> to vector<8x32xf32>
    %171 = arith.addf %169, %170 : vector<8x32xf32>
    %172 = arith.addf %171, %118 : vector<8x32xf32>
    %c0_62 = arith.constant 0 : index
    %c0_63 = arith.constant 0 : index
    %173 = vector.load %arg15[%c0_62, %c0_63] : memref<1x32xf32, #tpu.memory_space<vmem>>, vector<1x32xf32>
    %c0_64 = arith.constant 0 : index
    %c0_65 = arith.constant 0 : index
    %174 = vector.load %arg16[%c0_64, %c0_65] : memref<1x32xf32, #tpu.memory_space<vmem>>, vector<1x32xf32>
    %cst_66 = arith.constant dense<0.000000e+00> : vector<8xf32>
    %175 = vector.multi_reduction <add>, %172, %cst_66 [1] : vector<8x32xf32> to vector<8xf32>
    %176 = vector.shape_cast %175 : vector<8xf32> to vector<8x1xf32>
    %cst_67 = arith.constant 3.200000e+01 : f32
    %177 = vector.broadcast %cst_67 : f32 to vector<8x1xf32>
    %178 = arith.divf %176, %177 : vector<8x1xf32>
    %179 = vector.broadcast %178 : vector<8x1xf32> to vector<8x32xf32>
    %180 = arith.subf %172, %179 : vector<8x32xf32>
    %181 = arith.mulf %180, %180 : vector<8x32xf32>
    %cst_68 = arith.constant dense<0.000000e+00> : vector<8xf32>
    %182 = vector.multi_reduction <add>, %181, %cst_68 [1] : vector<8x32xf32> to vector<8xf32>
    %183 = vector.shape_cast %182 : vector<8xf32> to vector<8x1xf32>
    %cst_69 = arith.constant 3.200000e+01 : f32
    %184 = vector.broadcast %cst_69 : f32 to vector<8x1xf32>
    %185 = arith.divf %183, %184 : vector<8x1xf32>
    %cst_70 = arith.constant 9.99999996E-13 : f32
    %186 = vector.broadcast %cst_70 : f32 to vector<8x1xf32>
    %187 = arith.addf %185, %186 : vector<8x1xf32>
    %188 = math.rsqrt %187 : vector<8x1xf32>
    %189 = vector.broadcast %188 : vector<8x1xf32> to vector<8x32xf32>
    %190 = arith.mulf %180, %189 : vector<8x32xf32>
    %191 = vector.broadcast %173 : vector<1x32xf32> to vector<8x32xf32>
    %192 = arith.mulf %190, %191 : vector<8x32xf32>
    %193 = vector.broadcast %174 : vector<1x32xf32> to vector<8x32xf32>
    %194 = arith.addf %192, %193 : vector<8x32xf32>
    %195 = arith.truncf %194 : vector<8x32xf32> to vector<8x32xbf16>
    %c0_71 = arith.constant 0 : index
    %c0_72 = arith.constant 0 : index
    %c0_73 = arith.constant 0 : index
    %196 = vector.load %arg17[%c0_71, %c0_72, %c0_73] : memref<1x8x32xbf16, #tpu.memory_space<vmem>>, vector<1x8x32xbf16>
    %197 = vector.shape_cast %196 : vector<1x8x32xbf16> to vector<8x32xbf16>
    %198 = vector.shape_cast %195 : vector<8x32xbf16> to vector<1x8x32xbf16>
    tpu.vector_store %arg17[%c0_71, %c0_72, %c0_73], %198 {strides = array<i32>} : memref<1x8x32xbf16, #tpu.memory_space<vmem>>, vector<1x8x32xbf16>,
    return
  }
  func.func @transform_0(%arg0: i32) -> (i32, i32, i32) {
    %c0_i32 = arith.constant 0 : i32
    %c0_i32_0 = arith.constant 0 : i32
    %c0_i32_1 = arith.constant 0 : i32
    return %arg0, %c0_i32, %c0_i32_0 : i32, i32, i32
  }
  func.func @transform_1(%arg0: i32) -> (i32, i32, i32) {
    %c0_i32 = arith.constant 0 : i32
    %c0_i32_0 = arith.constant 0 : i32
    %c0_i32_1 = arith.constant 0 : i32
    return %arg0, %c0_i32, %c0_i32_0 : i32, i32, i32
  }
  func.func @transform_2(%arg0: i32) -> (i32, i32) {
    %c0_i32 = arith.constant 0 : i32
    %c0_i32_0 = arith.constant 0 : i32
    %c0_i32_1 = arith.constant 0 : i32
    return %c0_i32, %c0_i32_0 : i32, i32
  }
  func.func @transform_3(%arg0: i32) -> (i32, i32) {
    %c0_i32 = arith.constant 0 : i32
    %c0_i32_0 = arith.constant 0 : i32
    %c0_i32_1 = arith.constant 0 : i32
    return %c0_i32, %c0_i32_0 : i32, i32
  }
  func.func @transform_4(%arg0: i32) -> (i32, i32) {
    %c0_i32 = arith.constant 0 : i32
    %c0_i32_0 = arith.constant 0 : i32
    %c0_i32_1 = arith.constant 0 : i32
    return %c0_i32, %c0_i32_0 : i32, i32
  }
  func.func @transform_5(%arg0: i32) -> (i32, i32) {
    %c0_i32 = arith.constant 0 : i32
    %c0_i32_0 = arith.constant 0 : i32
    %c0_i32_1 = arith.constant 0 : i32
    return %c0_i32, %c0_i32_0 : i32, i32
  }
  func.func @transform_6(%arg0: i32) -> (i32, i32) {
    %c0_i32 = arith.constant 0 : i32
    %c0_i32_0 = arith.constant 0 : i32
    %c0_i32_1 = arith.constant 0 : i32
    return %c0_i32, %c0_i32_0 : i32, i32
  }
  func.func @transform_7(%arg0: i32) -> (i32, i32) {
    %c0_i32 = arith.constant 0 : i32
    %c0_i32_0 = arith.constant 0 : i32
    %c0_i32_1 = arith.constant 0 : i32
    return %c0_i32, %c0_i32_0 : i32, i32
  }
  func.func @transform_8(%arg0: i32) -> (i32, i32) {
    %c0_i32 = arith.constant 0 : i32
    %c0_i32_0 = arith.constant 0 : i32
    %c0_i32_1 = arith.constant 0 : i32
    return %c0_i32, %c0_i32_0 : i32, i32
  }
  func.func @transform_9(%arg0: i32) -> (i32, i32) {
    %c0_i32 = arith.constant 0 : i32
    %c0_i32_0 = arith.constant 0 : i32
    %c0_i32_1 = arith.constant 0 : i32
    return %c0_i32, %c0_i32_0 : i32, i32
  }
  func.func @transform_10(%arg0: i32) -> (i32, i32) {
    %c0_i32 = arith.constant 0 : i32
    %c0_i32_0 = arith.constant 0 : i32
    %c0_i32_1 = arith.constant 0 : i32
    return %c0_i32, %c0_i32_0 : i32, i32
  }
  func.func @transform_11(%arg0: i32) -> (i32, i32) {
    %c0_i32 = arith.constant 0 : i32
    %c0_i32_0 = arith.constant 0 : i32
    %c0_i32_1 = arith.constant 0 : i32
    return %c0_i32, %c0_i32_0 : i32, i32
  }
  func.func @transform_12(%arg0: i32) -> (i32, i32) {
    %c0_i32 = arith.constant 0 : i32
    %c0_i32_0 = arith.constant 0 : i32
    %c0_i32_1 = arith.constant 0 : i32
    return %c0_i32, %c0_i32_0 : i32, i32
  }
  func.func @transform_13(%arg0: i32) -> (i32, i32) {
    %c0_i32 = arith.constant 0 : i32
    %c0_i32_0 = arith.constant 0 : i32
    %c0_i32_1 = arith.constant 0 : i32
    return %c0_i32, %c0_i32_0 : i32, i32
  }
  func.func @transform_14(%arg0: i32) -> (i32, i32) {
    %c0_i32 = arith.constant 0 : i32
    %c0_i32_0 = arith.constant 0 : i32
    %c0_i32_1 = arith.constant 0 : i32
    return %c0_i32, %c0_i32_0 : i32, i32
  }
  func.func @transform_15(%arg0: i32) -> (i32, i32) {
    %c0_i32 = arith.constant 0 : i32
    %c0_i32_0 = arith.constant 0 : i32
    %c0_i32_1 = arith.constant 0 : i32
    return %c0_i32, %c0_i32_0 : i32, i32
  }
  func.func @transform_16(%arg0: i32) -> (i32, i32, i32) {
    %c0_i32 = arith.constant 0 : i32
    %c0_i32_0 = arith.constant 0 : i32
    %c0_i32_1 = arith.constant 0 : i32
    return %arg0, %c0_i32, %c0_i32_0 : i32, i32, i32
  }
}

module attributes {stable_mosaic.version = 11 : i64} {
  func.func @_encoder_layer_kernel(%arg0: i32, %arg1: memref<1x8x32xbf16, #tpu.memory_space<vmem>>, %arg2: memref<1x1x8xf32, #tpu.memory_space<vmem>>, %arg3: memref<32x96xbf16, #tpu.memory_space<vmem>>, %arg4: memref<1x96xf32, #tpu.memory_space<vmem>>, %arg5: memref<32x32xbf16, #tpu.memory_space<vmem>>, %arg6: memref<1x32xf32, #tpu.memory_space<vmem>>, %arg7: memref<1x32xf32, #tpu.memory_space<vmem>>, %arg8: memref<1x32xf32, #tpu.memory_space<vmem>>, %arg9: memref<32x64xbf16, #tpu.memory_space<vmem>>, %arg10: memref<1x64xf32, #tpu.memory_space<vmem>>, %arg11: memref<64x32xbf16, #tpu.memory_space<vmem>>, %arg12: memref<1x32xf32, #tpu.memory_space<vmem>>, %arg13: memref<1x32xf32, #tpu.memory_space<vmem>>, %arg14: memref<1x32xf32, #tpu.memory_space<vmem>>, %arg15: memref<32x32xbf16, #tpu.memory_space<vmem>>, %arg16: memref<1x32xf32, #tpu.memory_space<vmem>>, %arg17: memref<32x128xbf16, #tpu.memory_space<vmem>>, %arg18: memref<1x128xf32, #tpu.memory_space<vmem>>, %arg19: memref<1x8x32xbf16, #tpu.memory_space<vmem>>, %arg20: memref<1x1x128xf32, #tpu.memory_space<vmem>>) attributes {dimension_semantics = [#tpu.dimension_semantics<parallel>], iteration_bounds = array<i64: 2>, scalar_prefetch = 0 : i64, scratch_operands = 0 : i64, tpu.core_type = #tpu.core_type<tc>, window_params = [{transform_indices = @transform_0, window_bounds = array<i64: 1, 8, 32>}, {transform_indices = @transform_1, window_bounds = array<i64: 1, 1, 8>}, {pipeline_mode = #tpu.pipeline_mode<synchronous>, transform_indices = @transform_2, window_bounds = array<i64: 32, 96>}, {pipeline_mode = #tpu.pipeline_mode<synchronous>, transform_indices = @transform_3, window_bounds = array<i64: 1, 96>}, {pipeline_mode = #tpu.pipeline_mode<synchronous>, transform_indices = @transform_4, window_bounds = array<i64: 32, 32>}, {pipeline_mode = #tpu.pipeline_mode<synchronous>, transform_indices = @transform_5, window_bounds = array<i64: 1, 32>}, {pipeline_mode = #tpu.pipeline_mode<synchronous>, transform_indices = @transform_6, window_bounds = array<i64: 1, 32>}, {pipeline_mode = #tpu.pipeline_mode<synchronous>, transform_indices = @transform_7, window_bounds = array<i64: 1, 32>}, {pipeline_mode = #tpu.pipeline_mode<synchronous>, transform_indices = @transform_8, window_bounds = array<i64: 32, 64>}, {pipeline_mode = #tpu.pipeline_mode<synchronous>, transform_indices = @transform_9, window_bounds = array<i64: 1, 64>}, {pipeline_mode = #tpu.pipeline_mode<synchronous>, transform_indices = @transform_10, window_bounds = array<i64: 64, 32>}, {pipeline_mode = #tpu.pipeline_mode<synchronous>, transform_indices = @transform_11, window_bounds = array<i64: 1, 32>}, {pipeline_mode = #tpu.pipeline_mode<synchronous>, transform_indices = @transform_12, window_bounds = array<i64: 1, 32>}, {pipeline_mode = #tpu.pipeline_mode<synchronous>, transform_indices = @transform_13, window_bounds = array<i64: 1, 32>}, {pipeline_mode = #tpu.pipeline_mode<synchronous>, transform_indices = @transform_14, window_bounds = array<i64: 32, 32>}, {pipeline_mode = #tpu.pipeline_mode<synchronous>, transform_indices = @transform_15, window_bounds = array<i64: 1, 32>}, {pipeline_mode = #tpu.pipeline_mode<synchronous>, transform_indices = @transform_16, window_bounds = array<i64: 32, 128>}, {pipeline_mode = #tpu.pipeline_mode<synchronous>, transform_indices = @transform_17, window_bounds = array<i64: 1, 128>}, {transform_indices = @transform_18, window_bounds = array<i64: 1, 8, 32>}, {transform_indices = @transform_19, window_bounds = array<i64: 1, 1, 128>}]} {
    %c0 = arith.constant 0 : index
    %c0_0 = arith.constant 0 : index
    %c0_1 = arith.constant 0 : index
    %0 = vector.load %arg1[%c0, %c0_0, %c0_1] : memref<1x8x32xbf16, #tpu.memory_space<vmem>>, vector<1x8x32xbf16>
    %1 = vector.shape_cast %0 : vector<1x8x32xbf16> to vector<8x32xbf16>
    %2 = arith.extf %1 : vector<8x32xbf16> to vector<8x32xf32>
    %c0_2 = arith.constant 0 : index
    %c0_3 = arith.constant 0 : index
    %c0_4 = arith.constant 0 : index
    %3 = vector.load %arg2[%c0_2, %c0_3, %c0_4] : memref<1x1x8xf32, #tpu.memory_space<vmem>>, vector<1x1x8xf32>
    %4 = vector.shape_cast %3 : vector<1x1x8xf32> to vector<1x8xf32>
    %c0_5 = arith.constant 0 : index
    %c0_6 = arith.constant 0 : index
    %5 = vector.load %arg4[%c0_5, %c0_6] : memref<1x96xf32, #tpu.memory_space<vmem>>, vector<1x96xf32>
    %6 = arith.truncf %2 : vector<8x32xf32> to vector<8x32xbf16>
    %c0_7 = arith.constant 0 : index
    %c0_8 = arith.constant 0 : index
    %7 = vector.load %arg3[%c0_7, %c0_8] : memref<32x96xbf16, #tpu.memory_space<vmem>>, vector<32x96xbf16>
    %cst = arith.constant dense<0.000000e+00> : vector<8x96xf32>
    %8 = tpu.matmul %6, %7, %cst {dimension_numbers = #tpu.dot_dimension_numbers<[1], [0], [0], [1], [0, 0, 1, 1], [], []>} : vector<8x32xbf16>, vector<32x96xbf16>, vector<8x96xf32> -> vector<8x96xf32>
    %9 = vector.broadcast %5 : vector<1x96xf32> to vector<8x96xf32>
    %10 = arith.addf %8, %9 : vector<8x96xf32>
    %11 = vector.extract_strided_slice %10 {offsets = [0, 0], sizes = [8, 32], strides = [1, 1]} : vector<8x96xf32> to vector<8x32xf32>
    %12 = vector.extract_strided_slice %11 {offsets = [0, 0], sizes = [8, 8], strides = [1, 1]} : vector<8x32xf32> to vector<8x8xf32>
    %13 = vector.extract_strided_slice %11 {offsets = [0, 8], sizes = [8, 8], strides = [1, 1]} : vector<8x32xf32> to vector<8x8xf32>
    %14 = vector.extract_strided_slice %11 {offsets = [0, 16], sizes = [8, 8], strides = [1, 1]} : vector<8x32xf32> to vector<8x8xf32>
    %15 = vector.extract_strided_slice %11 {offsets = [0, 24], sizes = [8, 8], strides = [1, 1]} : vector<8x32xf32> to vector<8x8xf32>
    %16 = vector.shape_cast %12 : vector<8x8xf32> to vector<1x8x8xf32>
    %17 = vector.shape_cast %13 : vector<8x8xf32> to vector<1x8x8xf32>
    %18 = vector.shape_cast %14 : vector<8x8xf32> to vector<1x8x8xf32>
    %19 = vector.shape_cast %15 : vector<8x8xf32> to vector<1x8x8xf32>
    %20 = tpu.concatenate %16, %17, %18, %19 in 0 : vector<1x8x8xf32>, vector<1x8x8xf32>, vector<1x8x8xf32>, vector<1x8x8xf32> -> vector<4x8x8xf32>
    %21 = arith.truncf %20 : vector<4x8x8xf32> to vector<4x8x8xbf16>
    %22 = vector.extract_strided_slice %10 {offsets = [0, 32], sizes = [8, 32], strides = [1, 1]} : vector<8x96xf32> to vector<8x32xf32>
    %23 = vector.extract_strided_slice %22 {offsets = [0, 0], sizes = [8, 8], strides = [1, 1]} : vector<8x32xf32> to vector<8x8xf32>
    %24 = vector.extract_strided_slice %22 {offsets = [0, 8], sizes = [8, 8], strides = [1, 1]} : vector<8x32xf32> to vector<8x8xf32>
    %25 = vector.extract_strided_slice %22 {offsets = [0, 16], sizes = [8, 8], strides = [1, 1]} : vector<8x32xf32> to vector<8x8xf32>
    %26 = vector.extract_strided_slice %22 {offsets = [0, 24], sizes = [8, 8], strides = [1, 1]} : vector<8x32xf32> to vector<8x8xf32>
    %27 = vector.shape_cast %23 : vector<8x8xf32> to vector<1x8x8xf32>
    %28 = vector.shape_cast %24 : vector<8x8xf32> to vector<1x8x8xf32>
    %29 = vector.shape_cast %25 : vector<8x8xf32> to vector<1x8x8xf32>
    %30 = vector.shape_cast %26 : vector<8x8xf32> to vector<1x8x8xf32>
    %31 = tpu.concatenate %27, %28, %29, %30 in 0 : vector<1x8x8xf32>, vector<1x8x8xf32>, vector<1x8x8xf32>, vector<1x8x8xf32> -> vector<4x8x8xf32>
    %32 = arith.truncf %31 : vector<4x8x8xf32> to vector<4x8x8xbf16>
    %33 = vector.extract_strided_slice %10 {offsets = [0, 64], sizes = [8, 32], strides = [1, 1]} : vector<8x96xf32> to vector<8x32xf32>
    %34 = vector.extract_strided_slice %33 {offsets = [0, 0], sizes = [8, 8], strides = [1, 1]} : vector<8x32xf32> to vector<8x8xf32>
    %35 = vector.extract_strided_slice %33 {offsets = [0, 8], sizes = [8, 8], strides = [1, 1]} : vector<8x32xf32> to vector<8x8xf32>
    %36 = vector.extract_strided_slice %33 {offsets = [0, 16], sizes = [8, 8], strides = [1, 1]} : vector<8x32xf32> to vector<8x8xf32>
    %37 = vector.extract_strided_slice %33 {offsets = [0, 24], sizes = [8, 8], strides = [1, 1]} : vector<8x32xf32> to vector<8x8xf32>
    %38 = vector.shape_cast %34 : vector<8x8xf32> to vector<1x8x8xf32>
    %39 = vector.shape_cast %35 : vector<8x8xf32> to vector<1x8x8xf32>
    %40 = vector.shape_cast %36 : vector<8x8xf32> to vector<1x8x8xf32>
    %41 = vector.shape_cast %37 : vector<8x8xf32> to vector<1x8x8xf32>
    %42 = tpu.concatenate %38, %39, %40, %41 in 0 : vector<1x8x8xf32>, vector<1x8x8xf32>, vector<1x8x8xf32>, vector<1x8x8xf32> -> vector<4x8x8xf32>
    %43 = arith.truncf %42 : vector<4x8x8xf32> to vector<4x8x8xbf16>
    "tpu.trace_start"() <{level = 10 : i32, message = "hqd,hkd->hqk"}> : () -> ()
    %cst_9 = arith.constant dense<0.000000e+00> : vector<4x8x8xf32>
    %44 = tpu.matmul %21, %32, %cst_9 {dimension_numbers = #tpu.dot_dimension_numbers<[2], [2], [1], [1], [0, 0, 0, 1, 1, 1], [0], [0]>} : vector<4x8x8xbf16>, vector<4x8x8xbf16>, vector<4x8x8xf32> -> vector<4x8x8xf32>
    "tpu.trace_stop"() : () -> ()
    %45 = vector.shape_cast %4 : vector<1x8xf32> to vector<1x1x8xf32>
    %46 = vector.broadcast %45 : vector<1x1x8xf32> to vector<4x8x8xf32>
    %47 = arith.addf %44, %46 : vector<4x8x8xf32>
    %cst_10 = arith.constant dense<0xFF800000> : vector<4x8xf32>
    %48 = vector.multi_reduction <maximumf>, %47, %cst_10 [2] : vector<4x8x8xf32> to vector<4x8xf32>
    %49 = vector.shape_cast %48 : vector<4x8xf32> to vector<4x8x1xf32>
    %50 = vector.broadcast %49 : vector<4x8x1xf32> to vector<4x8x8xf32>
    %51 = arith.subf %47, %50 : vector<4x8x8xf32>
    %52 = math.exp %51 : vector<4x8x8xf32>
    %cst_11 = arith.constant dense<0.000000e+00> : vector<4x8xf32>
    %53 = vector.multi_reduction <add>, %52, %cst_11 [2] : vector<4x8x8xf32> to vector<4x8xf32>
    %54 = vector.shape_cast %53 : vector<4x8xf32> to vector<4x8x1xf32>
    %55 = tpu.reciprocal %54 {approx = true} : vector<4x8x1xf32> -> vector<4x8x1xf32>
    %56 = vector.broadcast %55 : vector<4x8x1xf32> to vector<4x8x8xf32>
    %57 = arith.mulf %52, %56 : vector<4x8x8xf32>
    %58 = arith.truncf %57 : vector<4x8x8xf32> to vector<4x8x8xbf16>
    "tpu.trace_start"() <{level = 10 : i32, message = "hqk,hkd->hqd"}> : () -> ()
    %cst_12 = arith.constant dense<0.000000e+00> : vector<4x8x8xf32>
    %59 = tpu.matmul %58, %43, %cst_12 {dimension_numbers = #tpu.dot_dimension_numbers<[2], [1], [1], [2], [0, 0, 0, 1, 1, 2], [0], [0]>} : vector<4x8x8xbf16>, vector<4x8x8xbf16>, vector<4x8x8xf32> -> vector<4x8x8xf32>
    "tpu.trace_stop"() : () -> ()
    %60 = vector.extract_strided_slice %59 {offsets = [0, 0, 0], sizes = [1, 8, 8], strides = [1, 1, 1]} : vector<4x8x8xf32> to vector<1x8x8xf32>
    %61 = vector.shape_cast %60 : vector<1x8x8xf32> to vector<8x8xf32>
    %62 = vector.extract_strided_slice %59 {offsets = [1, 0, 0], sizes = [1, 8, 8], strides = [1, 1, 1]} : vector<4x8x8xf32> to vector<1x8x8xf32>
    %63 = vector.shape_cast %62 : vector<1x8x8xf32> to vector<8x8xf32>
    %64 = vector.extract_strided_slice %59 {offsets = [2, 0, 0], sizes = [1, 8, 8], strides = [1, 1, 1]} : vector<4x8x8xf32> to vector<1x8x8xf32>
    %65 = vector.shape_cast %64 : vector<1x8x8xf32> to vector<8x8xf32>
    %66 = vector.extract_strided_slice %59 {offsets = [3, 0, 0], sizes = [1, 8, 8], strides = [1, 1, 1]} : vector<4x8x8xf32> to vector<1x8x8xf32>
    %67 = vector.shape_cast %66 : vector<1x8x8xf32> to vector<8x8xf32>
    %68 = tpu.concatenate %61, %63, %65, %67 in 1 : vector<8x8xf32>, vector<8x8xf32>, vector<8x8xf32>, vector<8x8xf32> -> vector<8x32xf32>
    %c0_13 = arith.constant 0 : index
    %c0_14 = arith.constant 0 : index
    %69 = vector.load %arg6[%c0_13, %c0_14] : memref<1x32xf32, #tpu.memory_space<vmem>>, vector<1x32xf32>
    %70 = arith.truncf %68 : vector<8x32xf32> to vector<8x32xbf16>
    %c0_15 = arith.constant 0 : index
    %c0_16 = arith.constant 0 : index
    %71 = vector.load %arg5[%c0_15, %c0_16] : memref<32x32xbf16, #tpu.memory_space<vmem>>, vector<32x32xbf16>
    %cst_17 = arith.constant dense<0.000000e+00> : vector<8x32xf32>
    %72 = tpu.matmul %70, %71, %cst_17 {dimension_numbers = #tpu.dot_dimension_numbers<[1], [0], [0], [1], [0, 0, 1, 1], [], []>} : vector<8x32xbf16>, vector<32x32xbf16>, vector<8x32xf32> -> vector<8x32xf32>
    %73 = vector.broadcast %69 : vector<1x32xf32> to vector<8x32xf32>
    %74 = arith.addf %72, %73 : vector<8x32xf32>
    %75 = arith.addf %74, %2 : vector<8x32xf32>
    %c0_18 = arith.constant 0 : index
    %c0_19 = arith.constant 0 : index
    %76 = vector.load %arg7[%c0_18, %c0_19] : memref<1x32xf32, #tpu.memory_space<vmem>>, vector<1x32xf32>
    %c0_20 = arith.constant 0 : index
    %c0_21 = arith.constant 0 : index
    %77 = vector.load %arg8[%c0_20, %c0_21] : memref<1x32xf32, #tpu.memory_space<vmem>>, vector<1x32xf32>
    %cst_22 = arith.constant dense<0.000000e+00> : vector<8xf32>
    %78 = vector.multi_reduction <add>, %75, %cst_22 [1] : vector<8x32xf32> to vector<8xf32>
    %79 = vector.shape_cast %78 : vector<8xf32> to vector<8x1xf32>
    %cst_23 = arith.constant 3.200000e+01 : f32
    %80 = vector.broadcast %cst_23 : f32 to vector<8x1xf32>
    %81 = arith.divf %79, %80 : vector<8x1xf32>
    %82 = vector.broadcast %81 : vector<8x1xf32> to vector<8x32xf32>
    %83 = arith.subf %75, %82 : vector<8x32xf32>
    %84 = arith.mulf %83, %83 : vector<8x32xf32>
    %cst_24 = arith.constant dense<0.000000e+00> : vector<8xf32>
    %85 = vector.multi_reduction <add>, %84, %cst_24 [1] : vector<8x32xf32> to vector<8xf32>
    %86 = vector.shape_cast %85 : vector<8xf32> to vector<8x1xf32>
    %cst_25 = arith.constant 3.200000e+01 : f32
    %87 = vector.broadcast %cst_25 : f32 to vector<8x1xf32>
    %88 = arith.divf %86, %87 : vector<8x1xf32>
    %cst_26 = arith.constant 9.99999996E-13 : f32
    %89 = vector.broadcast %cst_26 : f32 to vector<8x1xf32>
    %90 = arith.addf %88, %89 : vector<8x1xf32>
    %91 = math.rsqrt %90 : vector<8x1xf32>
    %92 = vector.broadcast %91 : vector<8x1xf32> to vector<8x32xf32>
    %93 = arith.mulf %83, %92 : vector<8x32xf32>
    %94 = vector.broadcast %76 : vector<1x32xf32> to vector<8x32xf32>
    %95 = arith.mulf %93, %94 : vector<8x32xf32>
    %96 = vector.broadcast %77 : vector<1x32xf32> to vector<8x32xf32>
    %97 = arith.addf %95, %96 : vector<8x32xf32>
    %c0_27 = arith.constant 0 : index
    %c0_28 = arith.constant 0 : index
    %98 = vector.load %arg10[%c0_27, %c0_28] : memref<1x64xf32, #tpu.memory_space<vmem>>, vector<1x64xf32>
    %99 = arith.truncf %97 : vector<8x32xf32> to vector<8x32xbf16>
    %c0_29 = arith.constant 0 : index
    %c0_30 = arith.constant 0 : index
    %100 = vector.load %arg9[%c0_29, %c0_30] : memref<32x64xbf16, #tpu.memory_space<vmem>>, vector<32x64xbf16>
    %cst_31 = arith.constant dense<0.000000e+00> : vector<8x64xf32>
    %101 = tpu.matmul %99, %100, %cst_31 {dimension_numbers = #tpu.dot_dimension_numbers<[1], [0], [0], [1], [0, 0, 1, 1], [], []>} : vector<8x32xbf16>, vector<32x64xbf16>, vector<8x64xf32> -> vector<8x64xf32>
    %102 = vector.broadcast %98 : vector<1x64xf32> to vector<8x64xf32>
    %103 = arith.addf %101, %102 : vector<8x64xf32>
    %cst_32 = arith.constant 5.000000e-01 : f32
    %104 = vector.broadcast %cst_32 : f32 to vector<8x64xf32>
    %105 = arith.mulf %104, %103 : vector<8x64xf32>
    %cst_33 = arith.constant 0.707106769 : f32
    %106 = vector.broadcast %cst_33 : f32 to vector<8x64xf32>
    %107 = arith.mulf %103, %106 : vector<8x64xf32>
    %cst_34 = arith.constant 0.000000e+00 : f32
    %108 = vector.broadcast %cst_34 : f32 to vector<8x64xf32>
    %109 = arith.cmpf oge, %107, %108 : vector<8x64xf32>
    %cst_35 = arith.constant 1.000000e+00 : f32
    %cst_36 = arith.constant -1.000000e+00 : f32
    %110 = vector.broadcast %cst_35 : f32 to vector<8x64xf32>
    %111 = vector.broadcast %cst_36 : f32 to vector<8x64xf32>
    %112 = arith.select %109, %110, %111 : vector<8x64xi1>, vector<8x64xf32>
    %113 = arith.mulf %107, %112 : vector<8x64xf32>
    %cst_37 = arith.constant 0.327591091 : f32
    %114 = vector.broadcast %cst_37 : f32 to vector<8x64xf32>
    %115 = arith.mulf %114, %113 : vector<8x64xf32>
    %cst_38 = arith.constant 1.000000e+00 : f32
    %116 = vector.broadcast %cst_38 : f32 to vector<8x64xf32>
    %117 = arith.addf %116, %115 : vector<8x64xf32>
    %cst_39 = arith.constant 1.000000e+00 : f32
    %118 = vector.broadcast %cst_39 : f32 to vector<8x64xf32>
    %119 = arith.divf %118, %117 : vector<8x64xf32>
    %cst_40 = arith.constant 1.06140542 : f32
    %120 = vector.broadcast %cst_40 : f32 to vector<8x64xf32>
    %121 = arith.mulf %120, %119 : vector<8x64xf32>
    %cst_41 = arith.constant -1.45315206 : f32
    %122 = vector.broadcast %cst_41 : f32 to vector<8x64xf32>
    %123 = arith.addf %121, %122 : vector<8x64xf32>
    %124 = arith.mulf %123, %119 : vector<8x64xf32>
    %cst_42 = arith.constant 1.42141378 : f32
    %125 = vector.broadcast %cst_42 : f32 to vector<8x64xf32>
    %126 = arith.addf %124, %125 : vector<8x64xf32>
    %127 = arith.mulf %126, %119 : vector<8x64xf32>
    %cst_43 = arith.constant -0.284496725 : f32
    %128 = vector.broadcast %cst_43 : f32 to vector<8x64xf32>
    %129 = arith.addf %127, %128 : vector<8x64xf32>
    %130 = arith.mulf %129, %119 : vector<8x64xf32>
    %cst_44 = arith.constant 0.254829586 : f32
    %131 = vector.broadcast %cst_44 : f32 to vector<8x64xf32>
    %132 = arith.addf %130, %131 : vector<8x64xf32>
    %133 = arith.mulf %132, %119 : vector<8x64xf32>
    %cst_45 = arith.constant 0.000000e+00 : f32
    %134 = vector.broadcast %cst_45 : f32 to vector<8x64xf32>
    %135 = arith.subf %134, %113 : vector<8x64xf32>
    %136 = arith.mulf %135, %113 : vector<8x64xf32>
    %137 = math.exp %136 : vector<8x64xf32>
    %138 = arith.mulf %133, %137 : vector<8x64xf32>
    %cst_46 = arith.constant 1.000000e+00 : f32
    %139 = vector.broadcast %cst_46 : f32 to vector<8x64xf32>
    %140 = arith.subf %139, %138 : vector<8x64xf32>
    %141 = arith.mulf %112, %140 : vector<8x64xf32>
    %cst_47 = arith.constant 1.000000e+00 : f32
    %142 = vector.broadcast %cst_47 : f32 to vector<8x64xf32>
    %143 = arith.addf %142, %141 : vector<8x64xf32>
    %144 = arith.mulf %105, %143 : vector<8x64xf32>
    %c0_48 = arith.constant 0 : index
    %c0_49 = arith.constant 0 : index
    %145 = vector.load %arg12[%c0_48, %c0_49] : memref<1x32xf32, #tpu.memory_space<vmem>>, vector<1x32xf32>
    %146 = arith.truncf %144 : vector<8x64xf32> to vector<8x64xbf16>
    %c0_50 = arith.constant 0 : index
    %c0_51 = arith.constant 0 : index
    %147 = vector.load %arg11[%c0_50, %c0_51] : memref<64x32xbf16, #tpu.memory_space<vmem>>, vector<64x32xbf16>
    %cst_52 = arith.constant dense<0.000000e+00> : vector<8x32xf32>
    %148 = tpu.matmul %146, %147, %cst_52 {dimension_numbers = #tpu.dot_dimension_numbers<[1], [0], [0], [1], [0, 0, 1, 1], [], []>} : vector<8x64xbf16>, vector<64x32xbf16>, vector<8x32xf32> -> vector<8x32xf32>
    %149 = vector.broadcast %145 : vector<1x32xf32> to vector<8x32xf32>
    %150 = arith.addf %148, %149 : vector<8x32xf32>
    %151 = arith.addf %150, %97 : vector<8x32xf32>
    %c0_53 = arith.constant 0 : index
    %c0_54 = arith.constant 0 : index
    %152 = vector.load %arg13[%c0_53, %c0_54] : memref<1x32xf32, #tpu.memory_space<vmem>>, vector<1x32xf32>
    %c0_55 = arith.constant 0 : index
    %c0_56 = arith.constant 0 : index
    %153 = vector.load %arg14[%c0_55, %c0_56] : memref<1x32xf32, #tpu.memory_space<vmem>>, vector<1x32xf32>
    %cst_57 = arith.constant dense<0.000000e+00> : vector<8xf32>
    %154 = vector.multi_reduction <add>, %151, %cst_57 [1] : vector<8x32xf32> to vector<8xf32>
    %155 = vector.shape_cast %154 : vector<8xf32> to vector<8x1xf32>
    %cst_58 = arith.constant 3.200000e+01 : f32
    %156 = vector.broadcast %cst_58 : f32 to vector<8x1xf32>
    %157 = arith.divf %155, %156 : vector<8x1xf32>
    %158 = vector.broadcast %157 : vector<8x1xf32> to vector<8x32xf32>
    %159 = arith.subf %151, %158 : vector<8x32xf32>
    %160 = arith.mulf %159, %159 : vector<8x32xf32>
    %cst_59 = arith.constant dense<0.000000e+00> : vector<8xf32>
    %161 = vector.multi_reduction <add>, %160, %cst_59 [1] : vector<8x32xf32> to vector<8xf32>
    %162 = vector.shape_cast %161 : vector<8xf32> to vector<8x1xf32>
    %cst_60 = arith.constant 3.200000e+01 : f32
    %163 = vector.broadcast %cst_60 : f32 to vector<8x1xf32>
    %164 = arith.divf %162, %163 : vector<8x1xf32>
    %cst_61 = arith.constant 9.99999996E-13 : f32
    %165 = vector.broadcast %cst_61 : f32 to vector<8x1xf32>
    %166 = arith.addf %164, %165 : vector<8x1xf32>
    %167 = math.rsqrt %166 : vector<8x1xf32>
    %168 = vector.broadcast %167 : vector<8x1xf32> to vector<8x32xf32>
    %169 = arith.mulf %159, %168 : vector<8x32xf32>
    %170 = vector.broadcast %152 : vector<1x32xf32> to vector<8x32xf32>
    %171 = arith.mulf %169, %170 : vector<8x32xf32>
    %172 = vector.broadcast %153 : vector<1x32xf32> to vector<8x32xf32>
    %173 = arith.addf %171, %172 : vector<8x32xf32>
    %174 = arith.truncf %173 : vector<8x32xf32> to vector<8x32xbf16>
    %c0_62 = arith.constant 0 : index
    %c0_63 = arith.constant 0 : index
    %c0_64 = arith.constant 0 : index
    %175 = vector.load %arg19[%c0_62, %c0_63, %c0_64] : memref<1x8x32xbf16, #tpu.memory_space<vmem>>, vector<1x8x32xbf16>
    %176 = vector.shape_cast %175 : vector<1x8x32xbf16> to vector<8x32xbf16>
    %177 = vector.shape_cast %174 : vector<8x32xbf16> to vector<1x8x32xbf16>
    tpu.vector_store %arg19[%c0_62, %c0_63, %c0_64], %177 {strides = array<i32>} : memref<1x8x32xbf16, #tpu.memory_space<vmem>>, vector<1x8x32xbf16>,
    %178 = vector.extract_strided_slice %173 {offsets = [0, 0], sizes = [1, 32], strides = [1, 1]} : vector<8x32xf32> to vector<1x32xf32>
    %c0_65 = arith.constant 0 : index
    %c0_66 = arith.constant 0 : index
    %179 = vector.load %arg16[%c0_65, %c0_66] : memref<1x32xf32, #tpu.memory_space<vmem>>, vector<1x32xf32>
    %180 = arith.truncf %178 : vector<1x32xf32> to vector<1x32xbf16>
    %c0_67 = arith.constant 0 : index
    %c0_68 = arith.constant 0 : index
    %181 = vector.load %arg15[%c0_67, %c0_68] : memref<32x32xbf16, #tpu.memory_space<vmem>>, vector<32x32xbf16>
    %cst_69 = arith.constant dense<0.000000e+00> : vector<1x32xf32>
    %182 = tpu.matmul %180, %181, %cst_69 {dimension_numbers = #tpu.dot_dimension_numbers<[1], [0], [0], [1], [0, 0, 1, 1], [], []>} : vector<1x32xbf16>, vector<32x32xbf16>, vector<1x32xf32> -> vector<1x32xf32>
    %183 = arith.addf %182, %179 : vector<1x32xf32>
    %184 = math.tanh %183 : vector<1x32xf32>
    %c0_70 = arith.constant 0 : index
    %c0_71 = arith.constant 0 : index
    %185 = vector.load %arg18[%c0_70, %c0_71] : memref<1x128xf32, #tpu.memory_space<vmem>>, vector<1x128xf32>
    %186 = arith.truncf %184 : vector<1x32xf32> to vector<1x32xbf16>
    %c0_72 = arith.constant 0 : index
    %c0_73 = arith.constant 0 : index
    %187 = vector.load %arg17[%c0_72, %c0_73] : memref<32x128xbf16, #tpu.memory_space<vmem>>, vector<32x128xbf16>
    %cst_74 = arith.constant dense<0.000000e+00> : vector<1x128xf32>
    %188 = tpu.matmul %186, %187, %cst_74 {dimension_numbers = #tpu.dot_dimension_numbers<[1], [0], [0], [1], [0, 0, 1, 1], [], []>} : vector<1x32xbf16>, vector<32x128xbf16>, vector<1x128xf32> -> vector<1x128xf32>
    %189 = arith.addf %188, %185 : vector<1x128xf32>
    %c0_75 = arith.constant 0 : index
    %c0_76 = arith.constant 0 : index
    %c0_77 = arith.constant 0 : index
    %190 = vector.load %arg20[%c0_75, %c0_76, %c0_77] : memref<1x1x128xf32, #tpu.memory_space<vmem>>, vector<1x1x128xf32>
    %191 = vector.shape_cast %190 : vector<1x1x128xf32> to vector<1x128xf32>
    %192 = vector.shape_cast %189 : vector<1x128xf32> to vector<1x1x128xf32>
    tpu.vector_store %arg20[%c0_75, %c0_76, %c0_77], %192 {strides = array<i32>} : memref<1x1x128xf32, #tpu.memory_space<vmem>>, vector<1x1x128xf32>,
    return
  }
  func.func @transform_0(%arg0: i32) -> (i32, i32, i32) {
    %c0_i32 = arith.constant 0 : i32
    %c0_i32_0 = arith.constant 0 : i32
    %c0_i32_1 = arith.constant 0 : i32
    return %arg0, %c0_i32, %c0_i32_0 : i32, i32, i32
  }
  func.func @transform_1(%arg0: i32) -> (i32, i32, i32) {
    %c0_i32 = arith.constant 0 : i32
    %c0_i32_0 = arith.constant 0 : i32
    %c0_i32_1 = arith.constant 0 : i32
    return %arg0, %c0_i32, %c0_i32_0 : i32, i32, i32
  }
  func.func @transform_2(%arg0: i32) -> (i32, i32) {
    %c0_i32 = arith.constant 0 : i32
    %c0_i32_0 = arith.constant 0 : i32
    %c0_i32_1 = arith.constant 0 : i32
    return %c0_i32, %c0_i32_0 : i32, i32
  }
  func.func @transform_3(%arg0: i32) -> (i32, i32) {
    %c0_i32 = arith.constant 0 : i32
    %c0_i32_0 = arith.constant 0 : i32
    %c0_i32_1 = arith.constant 0 : i32
    return %c0_i32, %c0_i32_0 : i32, i32
  }
  func.func @transform_4(%arg0: i32) -> (i32, i32) {
    %c0_i32 = arith.constant 0 : i32
    %c0_i32_0 = arith.constant 0 : i32
    %c0_i32_1 = arith.constant 0 : i32
    return %c0_i32, %c0_i32_0 : i32, i32
  }
  func.func @transform_5(%arg0: i32) -> (i32, i32) {
    %c0_i32 = arith.constant 0 : i32
    %c0_i32_0 = arith.constant 0 : i32
    %c0_i32_1 = arith.constant 0 : i32
    return %c0_i32, %c0_i32_0 : i32, i32
  }
  func.func @transform_6(%arg0: i32) -> (i32, i32) {
    %c0_i32 = arith.constant 0 : i32
    %c0_i32_0 = arith.constant 0 : i32
    %c0_i32_1 = arith.constant 0 : i32
    return %c0_i32, %c0_i32_0 : i32, i32
  }
  func.func @transform_7(%arg0: i32) -> (i32, i32) {
    %c0_i32 = arith.constant 0 : i32
    %c0_i32_0 = arith.constant 0 : i32
    %c0_i32_1 = arith.constant 0 : i32
    return %c0_i32, %c0_i32_0 : i32, i32
  }
  func.func @transform_8(%arg0: i32) -> (i32, i32) {
    %c0_i32 = arith.constant 0 : i32
    %c0_i32_0 = arith.constant 0 : i32
    %c0_i32_1 = arith.constant 0 : i32
    return %c0_i32, %c0_i32_0 : i32, i32
  }
  func.func @transform_9(%arg0: i32) -> (i32, i32) {
    %c0_i32 = arith.constant 0 : i32
    %c0_i32_0 = arith.constant 0 : i32
    %c0_i32_1 = arith.constant 0 : i32
    return %c0_i32, %c0_i32_0 : i32, i32
  }
  func.func @transform_10(%arg0: i32) -> (i32, i32) {
    %c0_i32 = arith.constant 0 : i32
    %c0_i32_0 = arith.constant 0 : i32
    %c0_i32_1 = arith.constant 0 : i32
    return %c0_i32, %c0_i32_0 : i32, i32
  }
  func.func @transform_11(%arg0: i32) -> (i32, i32) {
    %c0_i32 = arith.constant 0 : i32
    %c0_i32_0 = arith.constant 0 : i32
    %c0_i32_1 = arith.constant 0 : i32
    return %c0_i32, %c0_i32_0 : i32, i32
  }
  func.func @transform_12(%arg0: i32) -> (i32, i32) {
    %c0_i32 = arith.constant 0 : i32
    %c0_i32_0 = arith.constant 0 : i32
    %c0_i32_1 = arith.constant 0 : i32
    return %c0_i32, %c0_i32_0 : i32, i32
  }
  func.func @transform_13(%arg0: i32) -> (i32, i32) {
    %c0_i32 = arith.constant 0 : i32
    %c0_i32_0 = arith.constant 0 : i32
    %c0_i32_1 = arith.constant 0 : i32
    return %c0_i32, %c0_i32_0 : i32, i32
  }
  func.func @transform_14(%arg0: i32) -> (i32, i32) {
    %c0_i32 = arith.constant 0 : i32
    %c0_i32_0 = arith.constant 0 : i32
    %c0_i32_1 = arith.constant 0 : i32
    return %c0_i32, %c0_i32_0 : i32, i32
  }
  func.func @transform_15(%arg0: i32) -> (i32, i32) {
    %c0_i32 = arith.constant 0 : i32
    %c0_i32_0 = arith.constant 0 : i32
    %c0_i32_1 = arith.constant 0 : i32
    return %c0_i32, %c0_i32_0 : i32, i32
  }
  func.func @transform_16(%arg0: i32) -> (i32, i32) {
    %c0_i32 = arith.constant 0 : i32
    %c0_i32_0 = arith.constant 0 : i32
    %c0_i32_1 = arith.constant 0 : i32
    return %c0_i32, %c0_i32_0 : i32, i32
  }
  func.func @transform_17(%arg0: i32) -> (i32, i32) {
    %c0_i32 = arith.constant 0 : i32
    %c0_i32_0 = arith.constant 0 : i32
    %c0_i32_1 = arith.constant 0 : i32
    return %c0_i32, %c0_i32_0 : i32, i32
  }
  func.func @transform_18(%arg0: i32) -> (i32, i32, i32) {
    %c0_i32 = arith.constant 0 : i32
    %c0_i32_0 = arith.constant 0 : i32
    %c0_i32_1 = arith.constant 0 : i32
    return %arg0, %c0_i32, %c0_i32_0 : i32, i32, i32
  }
  func.func @transform_19(%arg0: i32) -> (i32, i32, i32) {
    %c0_i32 = arith.constant 0 : i32
    %c0_i32_0 = arith.constant 0 : i32
    %c0_i32_1 = arith.constant 0 : i32
    return %arg0, %c0_i32, %c0_i32_0 : i32, i32, i32
  }
}

</mosaic_0001>

<llo_original>
// kernel: bert_classifier_forward.3
$region0: #{bert_classifier_forward.3}
  #allocation0 [shape = 'u32[]', space=smem, size = 0x4, offset = 0x4, fixed_abs, tag = 'smem constant byte address 0x4 - core index']
  #allocation1 [shape = 'u32[144,128]{1,0:T(1,128)}', space=vmem, size = 0x12000, scoped, tag = 'internal scratch']
  %s0 = inlined_call_operand.vmem [shape: bf16[2,8,32], index: 0, kind: input, shape index: {}]
  %s1 = inlined_call_operand.vmem [shape: f32[2,1,8], index: 1, kind: input, shape index: {}]
  %s2 = inlined_call_operand.vmem [shape: bf16[32,96], index: 2, kind: input, shape index: {}]
  %s3 = inlined_call_operand.vmem [shape: f32[1,96], index: 3, kind: input, shape index: {}]
  %s4 = inlined_call_operand.vmem [shape: bf16[32,32], index: 4, kind: input, shape index: {}]
  %s5 = inlined_call_operand.vmem [shape: f32[1,32], index: 5, kind: input, shape index: {}]
  %s6 = inlined_call_operand.vmem [shape: f32[1,32], index: 6, kind: input, shape index: {}]
  %s7 = inlined_call_operand.vmem [shape: f32[1,32], index: 7, kind: input, shape index: {}]
  %s8 = inlined_call_operand.vmem [shape: bf16[32,64], index: 8, kind: input, shape index: {}]
  %s9 = inlined_call_operand.vmem [shape: f32[1,64], index: 9, kind: input, shape index: {}]
  %s10 = inlined_call_operand.vmem [shape: bf16[64,32], index: 10, kind: input, shape index: {}]
  %s11 = inlined_call_operand.vmem [shape: f32[1,32], index: 11, kind: input, shape index: {}]
  %s12 = inlined_call_operand.vmem [shape: f32[1,32], index: 12, kind: input, shape index: {}]
  %s13 = inlined_call_operand.vmem [shape: f32[1,32], index: 13, kind: input, shape index: {}]
  %s14 = inlined_call_operand.vmem [shape: bf16[32,32], index: 14, kind: input, shape index: {}]
  %s15 = inlined_call_operand.vmem [shape: f32[1,32], index: 15, kind: input, shape index: {}]
  %s16 = inlined_call_operand.vmem [shape: bf16[32,128], index: 16, kind: input, shape index: {}]
  %s17 = inlined_call_operand.vmem [shape: f32[1,128], index: 17, kind: input, shape index: {}]
  %s18 = inlined_call_operand.hbm [shape: bf16[2,8,32], index: 18, kind: output, shape index: {0}]
  %s19 = inlined_call_operand.hbm [shape: f32[2,1,128], index: 19, kind: output, shape index: {1}]
  %20 = xla_tuple %s18, %s19
  %s21 = sld [smem:[#allocation0]]
  $region113: #{bert_classifier_forward.3} parent=0
    _
  %s23 = ssub.s32 1, %s21
  %s24 = scalar_select 0, %s23, %s21
  $region1: #{bert_classifier_forward.3} parent=0
    #allocation2 [shape = 'u8[4096]{0}', space=vmem, size = 0x1000, scoped, tag = 'output window, operand 0']
    #allocation3 [shape = 's32[2]{0}', space=sflag, size = 0x8, scoped, tag = 'scoped memory for bert_classifier_forward.3']
    #allocation4 [shape = 'u8[1024]{0}', space=vmem, size = 0x400, scoped, tag = 'output window, operand 1']
    #allocation5 [shape = 's32[2]{0}', space=sflag, size = 0x8, scoped, tag = 'scoped memory for bert_classifier_forward.3']
    %25 = vsyncpa [#allocation3], 0
    %s26 = scalar_lea.sflag [#allocation3], 1
    %27 = vsyncpa %s26, 0
    %28 = vsyncpa [#allocation5], 0
    %s29 = scalar_lea.sflag [#allocation5], 1
    %30 = vsyncpa %s29, 0
    loop: start=0, step=1, limit=4
    $region2: #{bert_classifier_forward.3} parent=1 // loop_pre_header
      _
    $region3: #{bert_classifier_forward.3} parent=1 // loop_header
      %s32 = sphi 0, %s36
      %p33 = scmp.ge.s32.totalorder %s32, 4
      %s42 = sphi 0, %s44
      %s45 = sphi 0, %s42
      %s46 = sphi 0, %s45
      %s62 = sphi 0, %s46
      %s68 = sphi 0, %s70
      %s71 = sphi 0, %s68
      %s72 = sphi 0, %s71
      %s88 = sphi 0, %s72
      %s92 = sphi 0, %s92
      %s94 = sphi 0, %s92
      %s95 = sphi 0, %s94
      %s109 = sphi 0, %s95
      %s113 = sphi 0, %s113
      %s115 = sphi 0, %s113
      %s116 = sphi 0, %s115
      %s130 = sphi 0, %s116
      %s134 = sphi 0, %s134
      %s136 = sphi 0, %s134
      %s137 = sphi 0, %s136
      %s151 = sphi 0, %s137
      %s155 = sphi 0, %s155
      %s157 = sphi 0, %s155
      %s158 = sphi 0, %s157
      %s172 = sphi 0, %s158
      %s176 = sphi 0, %s176
      %s178 = sphi 0, %s176
      %s179 = sphi 0, %s178
      %s193 = sphi 0, %s179
      %s197 = sphi 0, %s197
      %s199 = sphi 0, %s197
      %s200 = sphi 0, %s199
      %s214 = sphi 0, %s200
      %s218 = sphi 0, %s218
      %s220 = sphi 0, %s218
      %s221 = sphi 0, %s220
      %s235 = sphi 0, %s221
      %s239 = sphi 0, %s239
      %s241 = sphi 0, %s239
      %s242 = sphi 0, %s241
      %s256 = sphi 0, %s242
      %s260 = sphi 0, %s260
      %s262 = sphi 0, %s260
      %s263 = sphi 0, %s262
      %s277 = sphi 0, %s263
      %s281 = sphi 0, %s281
      %s283 = sphi 0, %s281
      %s284 = sphi 0, %s283
      %s298 = sphi 0, %s284
      %s302 = sphi 0, %s302
      %s304 = sphi 0, %s302
      %s305 = sphi 0, %s304
      %s319 = sphi 0, %s305
      %s323 = sphi 0, %s323
      %s325 = sphi 0, %s323
      %s326 = sphi 0, %s325
      %s340 = sphi 0, %s326
      %s344 = sphi 0, %s344
      %s346 = sphi 0, %s344
      %s347 = sphi 0, %s346
      %s361 = sphi 0, %s347
      %s365 = sphi 0, %s365
      %s367 = sphi 0, %s365
      %s368 = sphi 0, %s367
      %s382 = sphi 0, %s368
      %s386 = sphi 0, %s386
      %s388 = sphi 0, %s386
      %s389 = sphi 0, %s388
      %s403 = sphi 0, %s389
      %s407 = sphi 0, %s407
      %s409 = sphi 0, %s407
      %s410 = sphi 0, %s409
      %s424 = sphi 0, %s410
      %s430 = sphi 0, %s432
      %s433 = sphi 0, %s430
      %s434 = sphi 0, %s433
      %s450 = sphi 0, %s434
      %s456 = sphi 0, %s458
      %s459 = sphi 0, %s456
      %s460 = sphi 0, %s459
      %s476 = sphi 0, %s460
    $region4: #{bert_classifier_forward.3} parent=1 // loop_header_branch
      %35 = sbr.rel (%p33) target = $region8
    $region5: #{bert_classifier_forward.3} parent=1 // loop_body
      %s37 = ssub.s32 %s32, 1
      %s38 = ssub.s32 %s32, 2
      %s39 = sadd.s32 %s32, 1
      %s40 = ssub.s32 %s32, %s39
      %p41 = scmp.eq.s32.totalorder %s40, 0
      %s43 = sadd.s32 %s42, 1
      %s44 = scalar_select %p41, %s42, %s43
      %p47 = pneg %p41
      %p48 = scmp.eq.s32.totalorder %s32, 1
      %p49 = por %p47, %p48
      %p50 = scmp.ne.s32.totalorder %s42, %s45
      %p51 = scmp.eq.s32.totalorder %s32, 0
      %p52 = por %p50, %p51
      %p53 = scmp.ne.s32.totalorder %s42, %s45
      %p54 = scmp.eq.s32.totalorder %s37, 1
      %p55 = por %p53, %p54
      %p56 = scmp.ne.s32.totalorder %s45, %s46
      %p57 = scmp.eq.s32.totalorder %s37, 0
      %p58 = por %p56, %p57
      %p59 = scmp.ne.s32.totalorder %s45, %s46
      %p60 = scmp.eq.s32.totalorder %s38, 1
      %p61 = por %p59, %p60
      %p63 = scmp.ne.s32.totalorder %s46, %s62
      %p64 = scmp.eq.s32.totalorder %s38, 0
      %p65 = por %p63, %p64
      %s66 = ssub.s32 %s32, %s39
      %p67 = scmp.eq.s32.totalorder %s66, 0
      %s69 = sadd.s32 %s68, 1
      %s70 = scalar_select %p67, %s68, %s69
      %p73 = pneg %p67
      %p74 = scmp.eq.s32.totalorder %s32, 1
      %p75 = por %p73, %p74
      %p76 = scmp.ne.s32.totalorder %s68, %s71
      %p77 = scmp.eq.s32.totalorder %s32, 0
      %p78 = por %p76, %p77
      %p79 = scmp.ne.s32.totalorder %s68, %s71
      %p80 = scmp.eq.s32.totalorder %s37, 1
      %p81 = por %p79, %p80
      %p82 = scmp.ne.s32.totalorder %s71, %s72
      %p83 = scmp.eq.s32.totalorder %s37, 0
      %p84 = por %p82, %p83
      %p85 = scmp.ne.s32.totalorder %s71, %s72
      %p86 = scmp.eq.s32.totalorder %s38, 1
      %p87 = por %p85, %p86
      %p89 = scmp.ne.s32.totalorder %s72, %s88
      %p90 = scmp.eq.s32.totalorder %s38, 0
      %p91 = por %p89, %p90
      %s93 = sadd.s32 %s92, 1
      %p96 = scmp.eq.s32.totalorder %s32, 1
      %p97 = scmp.ne.s32.totalorder %s92, %s94
      %p98 = scmp.eq.s32.totalorder %s32, 0
      %p99 = por %p97, %p98
      %p100 = scmp.ne.s32.totalorder %s92, %s94
      %p101 = scmp.eq.s32.totalorder %s37, 1
      %p102 = por %p100, %p101
      %p103 = scmp.ne.s32.totalorder %s94, %s95
      %p104 = scmp.eq.s32.totalorder %s37, 0
      %p105 = por %p103, %p104
      %p106 = scmp.ne.s32.totalorder %s94, %s95
      %p107 = scmp.eq.s32.totalorder %s38, 1
      %p108 = por %p106, %p107
      %p110 = scmp.ne.s32.totalorder %s95, %s109
      %p111 = scmp.eq.s32.totalorder %s38, 0
      %p112 = por %p110, %p111
      %s114 = sadd.s32 %s113, 1
      %p117 = scmp.eq.s32.totalorder %s32, 1
      %p118 = scmp.ne.s32.totalorder %s113, %s115
      %p119 = scmp.eq.s32.totalorder %s32, 0
      %p120 = por %p118, %p119
      %p121 = scmp.ne.s32.totalorder %s113, %s115
      %p122 = scmp.eq.s32.totalorder %s37, 1
      %p123 = por %p121, %p122
      %p124 = scmp.ne.s32.totalorder %s115, %s116
      %p125 = scmp.eq.s32.totalorder %s37, 0
      %p126 = por %p124, %p125
      %p127 = scmp.ne.s32.totalorder %s115, %s116
      %p128 = scmp.eq.s32.totalorder %s38, 1
      %p129 = por %p127, %p128
      %p131 = scmp.ne.s32.totalorder %s116, %s130
      %p132 = scmp.eq.s32.totalorder %s38, 0
      %p133 = por %p131, %p132
      %s135 = sadd.s32 %s134, 1
      %p138 = scmp.eq.s32.totalorder %s32, 1
      %p139 = scmp.ne.s32.totalorder %s134, %s136
      %p140 = scmp.eq.s32.totalorder %s32, 0
      %p141 = por %p139, %p140
      %p142 = scmp.ne.s32.totalorder %s134, %s136
      %p143 = scmp.eq.s32.totalorder %s37, 1
      %p144 = por %p142, %p143
      %p145 = scmp.ne.s32.totalorder %s136, %s137
      %p146 = scmp.eq.s32.totalorder %s37, 0
      %p147 = por %p145, %p146
      %p148 = scmp.ne.s32.totalorder %s136, %s137
      %p149 = scmp.eq.s32.totalorder %s38, 1
      %p150 = por %p148, %p149
      %p152 = scmp.ne.s32.totalorder %s137, %s151
      %p153 = scmp.eq.s32.totalorder %s38, 0
      %p154 = por %p152, %p153
      %s156 = sadd.s32 %s155, 1
      %p159 = scmp.eq.s32.totalorder %s32, 1
      %p160 = scmp.ne.s32.totalorder %s155, %s157
      %p161 = scmp.eq.s32.totalorder %s32, 0
      %p162 = por %p160, %p161
      %p163 = scmp.ne.s32.totalorder %s155, %s157
      %p164 = scmp.eq.s32.totalorder %s37, 1
      %p165 = por %p163, %p164
      %p166 = scmp.ne.s32.totalorder %s157, %s158
      %p167 = scmp.eq.s32.totalorder %s37, 0
      %p168 = por %p166, %p167
      %p169 = scmp.ne.s32.totalorder %s157, %s158
      %p170 = scmp.eq.s32.totalorder %s38, 1
      %p171 = por %p169, %p170
      %p173 = scmp.ne.s32.totalorder %s158, %s172
      %p174 = scmp.eq.s32.totalorder %s38, 0
      %p175 = por %p173, %p174
      %s177 = sadd.s32 %s176, 1
      %p180 = scmp.eq.s32.totalorder %s32, 1
      %p181 = scmp.ne.s32.totalorder %s176, %s178
      %p182 = scmp.eq.s32.totalorder %s32, 0
      %p183 = por %p181, %p182
      %p184 = scmp.ne.s32.totalorder %s176, %s178
      %p185 = scmp.eq.s32.totalorder %s37, 1
      %p186 = por %p184, %p185
      %p187 = scmp.ne.s32.totalorder %s178, %s179
      %p188 = scmp.eq.s32.totalorder %s37, 0
      %p189 = por %p187, %p188
      %p190 = scmp.ne.s32.totalorder %s178, %s179
      %p191 = scmp.eq.s32.totalorder %s38, 1
      %p192 = por %p190, %p191
      %p194 = scmp.ne.s32.totalorder %s179, %s193
      %p195 = scmp.eq.s32.totalorder %s38, 0
      %p196 = por %p194, %p195
      %s198 = sadd.s32 %s197, 1
      %p201 = scmp.eq.s32.totalorder %s32, 1
      %p202 = scmp.ne.s32.totalorder %s197, %s199
      %p203 = scmp.eq.s32.totalorder %s32, 0
      %p204 = por %p202, %p203
      %p205 = scmp.ne.s32.totalorder %s197, %s199
      %p206 = scmp.eq.s32.totalorder %s37, 1
      %p207 = por %p205, %p206
      %p208 = scmp.ne.s32.totalorder %s199, %s200
      %p209 = scmp.eq.s32.totalorder %s37, 0
      %p210 = por %p208, %p209
      %p211 = scmp.ne.s32.totalorder %s199, %s200
      %p212 = scmp.eq.s32.totalorder %s38, 1
      %p213 = por %p211, %p212
      %p215 = scmp.ne.s32.totalorder %s200, %s214
      %p216 = scmp.eq.s32.totalorder %s38, 0
      %p217 = por %p215, %p216
      %s219 = sadd.s32 %s218, 1
      %p222 = scmp.eq.s32.totalorder %s32, 1
      %p223 = scmp.ne.s32.totalorder %s218, %s220
      %p224 = scmp.eq.s32.totalorder %s32, 0
      %p225 = por %p223, %p224
      %p226 = scmp.ne.s32.totalorder %s218, %s220
      %p227 = scmp.eq.s32.totalorder %s37, 1
      %p228 = por %p226, %p227
      %p229 = scmp.ne.s32.totalorder %s220, %s221
      %p230 = scmp.eq.s32.totalorder %s37, 0
      %p231 = por %p229, %p230
      %p232 = scmp.ne.s32.totalorder %s220, %s221
      %p233 = scmp.eq.s32.totalorder %s38, 1
      %p234 = por %p232, %p233
      %p236 = scmp.ne.s32.totalorder %s221, %s235
      %p237 = scmp.eq.s32.totalorder %s38, 0
      %p238 = por %p236, %p237
      %s240 = sadd.s32 %s239, 1
      %p243 = scmp.eq.s32.totalorder %s32, 1
      %p244 = scmp.ne.s32.totalorder %s239, %s241
      %p245 = scmp.eq.s32.totalorder %s32, 0
      %p246 = por %p244, %p245
      %p247 = scmp.ne.s32.totalorder %s239, %s241
      %p248 = scmp.eq.s32.totalorder %s37, 1
      %p249 = por %p247, %p248
      %p250 = scmp.ne.s32.totalorder %s241, %s242
      %p251 = scmp.eq.s32.totalorder %s37, 0
      %p252 = por %p250, %p251
      %p253 = scmp.ne.s32.totalorder %s241, %s242
      %p254 = scmp.eq.s32.totalorder %s38, 1
      %p255 = por %p253, %p254
      %p257 = scmp.ne.s32.totalorder %s242, %s256
      %p258 = scmp.eq.s32.totalorder %s38, 0
      %p259 = por %p257, %p258
      %s261 = sadd.s32 %s260, 1
      %p264 = scmp.eq.s32.totalorder %s32, 1
      %p265 = scmp.ne.s32.totalorder %s260, %s262
      %p266 = scmp.eq.s32.totalorder %s32, 0
      %p267 = por %p265, %p266
      %p268 = scmp.ne.s32.totalorder %s260, %s262
      %p269 = scmp.eq.s32.totalorder %s37, 1
      %p270 = por %p268, %p269
      %p271 = scmp.ne.s32.totalorder %s262, %s263
      %p272 = scmp.eq.s32.totalorder %s37, 0
      %p273 = por %p271, %p272
      %p274 = scmp.ne.s32.totalorder %s262, %s263
      %p275 = scmp.eq.s32.totalorder %s38, 1
      %p276 = por %p274, %p275
      %p278 = scmp.ne.s32.totalorder %s263, %s277
      %p279 = scmp.eq.s32.totalorder %s38, 0
      %p280 = por %p278, %p279
      %s282 = sadd.s32 %s281, 1
      %p285 = scmp.eq.s32.totalorder %s32, 1
      %p286 = scmp.ne.s32.totalorder %s281, %s283
      %p287 = scmp.eq.s32.totalorder %s32, 0
      %p288 = por %p286, %p287
      %p289 = scmp.ne.s32.totalorder %s281, %s283
      %p290 = scmp.eq.s32.totalorder %s37, 1
      %p291 = por %p289, %p290
      %p292 = scmp.ne.s32.totalorder %s283, %s284
      %p293 = scmp.eq.s32.totalorder %s37, 0
      %p294 = por %p292, %p293
      %p295 = scmp.ne.s32.totalorder %s283, %s284
      %p296 = scmp.eq.s32.totalorder %s38, 1
      %p297 = por %p295, %p296
      %p299 = scmp.ne.s32.totalorder %s284, %s298
      %p300 = scmp.eq.s32.totalorder %s38, 0
      %p301 = por %p299, %p300
      %s303 = sadd.s32 %s302, 1
      %p306 = scmp.eq.s32.totalorder %s32, 1
      %p307 = scmp.ne.s32.totalorder %s302, %s304
      %p308 = scmp.eq.s32.totalorder %s32, 0
      %p309 = por %p307, %p308
      %p310 = scmp.ne.s32.totalorder %s302, %s304
      %p311 = scmp.eq.s32.totalorder %s37, 1
      %p312 = por %p310, %p311
      %p313 = scmp.ne.s32.totalorder %s304, %s305
      %p314 = scmp.eq.s32.totalorder %s37, 0
      %p315 = por %p313, %p314
      %p316 = scmp.ne.s32.totalorder %s304, %s305
      %p317 = scmp.eq.s32.totalorder %s38, 1
      %p318 = por %p316, %p317
      %p320 = scmp.ne.s32.totalorder %s305, %s319
      %p321 = scmp.eq.s32.totalorder %s38, 0
      %p322 = por %p320, %p321
      %s324 = sadd.s32 %s323, 1
      %p327 = scmp.eq.s32.totalorder %s32, 1
      %p328 = scmp.ne.s32.totalorder %s323, %s325
      %p329 = scmp.eq.s32.totalorder %s32, 0
      %p330 = por %p328, %p329
      %p331 = scmp.ne.s32.totalorder %s323, %s325
      %p332 = scmp.eq.s32.totalorder %s37, 1
      %p333 = por %p331, %p332
      %p334 = scmp.ne.s32.totalorder %s325, %s326
      %p335 = scmp.eq.s32.totalorder %s37, 0
      %p336 = por %p334, %p335
      %p337 = scmp.ne.s32.totalorder %s325, %s326
      %p338 = scmp.eq.s32.totalorder %s38, 1
      %p339 = por %p337, %p338
      %p341 = scmp.ne.s32.totalorder %s326, %s340
      %p342 = scmp.eq.s32.totalorder %s38, 0
      %p343 = por %p341, %p342
      %s345 = sadd.s32 %s344, 1
      %p348 = scmp.eq.s32.totalorder %s32, 1
      %p349 = scmp.ne.s32.totalorder %s344, %s346
      %p350 = scmp.eq.s32.totalorder %s32, 0
      %p351 = por %p349, %p350
      %p352 = scmp.ne.s32.totalorder %s344, %s346
      %p353 = scmp.eq.s32.totalorder %s37, 1
      %p354 = por %p352, %p353
      %p355 = scmp.ne.s32.totalorder %s346, %s347
      %p356 = scmp.eq.s32.totalorder %s37, 0
      %p357 = por %p355, %p356
      %p358 = scmp.ne.s32.totalorder %s346, %s347
      %p359 = scmp.eq.s32.totalorder %s38, 1
      %p360 = por %p358, %p359
      %p362 = scmp.ne.s32.totalorder %s347, %s361
      %p363 = scmp.eq.s32.totalorder %s38, 0
      %p364 = por %p362, %p363
      %s366 = sadd.s32 %s365, 1
      %p369 = scmp.eq.s32.totalorder %s32, 1
      %p370 = scmp.ne.s32.totalorder %s365, %s367
      %p371 = scmp.eq.s32.totalorder %s32, 0
      %p372 = por %p370, %p371
      %p373 = scmp.ne.s32.totalorder %s365, %s367
      %p374 = scmp.eq.s32.totalorder %s37, 1
      %p375 = por %p373, %p374
      %p376 = scmp.ne.s32.totalorder %s367, %s368
      %p377 = scmp.eq.s32.totalorder %s37, 0
      %p378 = por %p376, %p377
      %p379 = scmp.ne.s32.totalorder %s367, %s368
      %p380 = scmp.eq.s32.totalorder %s38, 1
      %p381 = por %p379, %p380
      %p383 = scmp.ne.s32.totalorder %s368, %s382
      %p384 = scmp.eq.s32.totalorder %s38, 0
      %p385 = por %p383, %p384
      %s387 = sadd.s32 %s386, 1
      %p390 = scmp.eq.s32.totalorder %s32, 1
      %p391 = scmp.ne.s32.totalorder %s386, %s388
      %p392 = scmp.eq.s32.totalorder %s32, 0
      %p393 = por %p391, %p392
      %p394 = scmp.ne.s32.totalorder %s386, %s388
      %p395 = scmp.eq.s32.totalorder %s37, 1
      %p396 = por %p394, %p395
      %p397 = scmp.ne.s32.totalorder %s388, %s389
      %p398 = scmp.eq.s32.totalorder %s37, 0
      %p399 = por %p397, %p398
      %p400 = scmp.ne.s32.totalorder %s388, %s389
      %p401 = scmp.eq.s32.totalorder %s38, 1
      %p402 = por %p400, %p401
      %p404 = scmp.ne.s32.totalorder %s389, %s403
      %p405 = scmp.eq.s32.totalorder %s38, 0
      %p406 = por %p404, %p405
      %s408 = sadd.s32 %s407, 1
      %p411 = scmp.eq.s32.totalorder %s32, 1
      %p412 = scmp.ne.s32.totalorder %s407, %s409
      %p413 = scmp.eq.s32.totalorder %s32, 0
      %p414 = por %p412, %p413
      %p415 = scmp.ne.s32.totalorder %s407, %s409
      %p416 = scmp.eq.s32.totalorder %s37, 1
      %p417 = por %p415, %p416
      %p418 = scmp.ne.s32.totalorder %s409, %s410
      %p419 = scmp.eq.s32.totalorder %s37, 0
      %p420 = por %p418, %p419
      %p421 = scmp.ne.s32.totalorder %s409, %s410
      %p422 = scmp.eq.s32.totalorder %s38, 1
      %p423 = por %p421, %p422
      %p425 = scmp.ne.s32.totalorder %s410, %s424
      %p426 = scmp.eq.s32.totalorder %s38, 0
      %p427 = por %p425, %p426
      %s428 = ssub.s32 %s32, %s39
      %p429 = scmp.eq.s32.totalorder %s428, 0
      %s431 = sadd.s32 %s430, 1
      %s432 = scalar_select %p429, %s430, %s431
      %p435 = pneg %p429
      %p436 = scmp.eq.s32.totalorder %s32, 1
      %p437 = por %p435, %p436
      %p438 = scmp.ne.s32.totalorder %s430, %s433
      %p439 = scmp.eq.s32.totalorder %s32, 0
      %p440 = por %p438, %p439
      %p441 = scmp.ne.s32.totalorder %s430, %s433
      %p442 = scmp.eq.s32.totalorder %s37, 1
      %p443 = por %p441, %p442
      %p444 = scmp.ne.s32.totalorder %s433, %s434
      %p445 = scmp.eq.s32.totalorder %s37, 0
      %p446 = por %p444, %p445
      %p447 = scmp.ne.s32.totalorder %s433, %s434
      %p448 = scmp.eq.s32.totalorder %s38, 1
      %p449 = por %p447, %p448
      %p451 = scmp.ne.s32.totalorder %s434, %s450
      %p452 = scmp.eq.s32.totalorder %s38, 0
      %p453 = por %p451, %p452
      %s454 = ssub.s32 %s32, %s39
      %p455 = scmp.eq.s32.totalorder %s454, 0
      %s457 = sadd.s32 %s456, 1
      %s458 = scalar_select %p455, %s456, %s457
      %p461 = pneg %p455
      %p462 = scmp.eq.s32.totalorder %s32, 1
      %p463 = por %p461, %p462
      %p464 = scmp.ne.s32.totalorder %s456, %s459
      %p465 = scmp.eq.s32.totalorder %s32, 0
      %p466 = por %p464, %p465
      %p467 = scmp.ne.s32.totalorder %s456, %s459
      %p468 = scmp.eq.s32.totalorder %s37, 1
      %p469 = por %p467, %p468
      %p470 = scmp.ne.s32.totalorder %s459, %s460
      %p471 = scmp.eq.s32.totalorder %s37, 0
      %p472 = por %p470, %p471
      %p473 = scmp.ne.s32.totalorder %s459, %s460
      %p474 = scmp.eq.s32.totalorder %s38, 1
      %p475 = por %p473, %p474
      %p477 = scmp.ne.s32.totalorder %s460, %s476
      %p478 = scmp.eq.s32.totalorder %s38, 0
      %p479 = por %p477, %p478
      %p480 = scmp.le.s32.totalorder 1, %s32
      %p481 = scmp.lt.s32.totalorder %s32, 3
      %p482 = pnand %p480, %p481
      %p483 = pneg %p482
      // Predicated region
      $region9: #{bert_classifier_forward.3} parent=5 // pred_check
        _
      $region10: #{bert_classifier_forward.3} parent=5 // pred_check_branch
        %485 = sbr.rel (%p482) target = $region12
      $region11: #{bert_classifier_forward.3} parent=5 // pred_region
        %s486 = ssub.s32 %s32, 1
        // Predicated region
        $region13: #{bert_classifier_forward.3} parent=11 // pred_check
          %p487 = pneg %p105
        $region14: #{bert_classifier_forward.3} parent=11 // pred_check_branch
          %489 = sbr.rel (%p487) target = $region16
        $region15: #{bert_classifier_forward.3} parent=11 // pred_region
          _
        $region16: #{bert_classifier_forward.3} parent=11 // pred_fallthru
          _
        // Predicated region
        $region17: #{bert_classifier_forward.3} parent=11 // pred_check
          %p490 = pneg %p126
        $region18: #{bert_classifier_forward.3} parent=11 // pred_check_branch
          %492 = sbr.rel (%p490) target = $region20
        $region19: #{bert_classifier_forward.3} parent=11 // pred_region
          _
        $region20: #{bert_classifier_forward.3} parent=11 // pred_fallthru
          _
        // Predicated region
        $region21: #{bert_classifier_forward.3} parent=11 // pred_check
          %p493 = pneg %p147
        $region22: #{bert_classifier_forward.3} parent=11 // pred_check_branch
          %495 = sbr.rel (%p493) target = $region24
        $region23: #{bert_classifier_forward.3} parent=11 // pred_region
          _
        $region24: #{bert_classifier_forward.3} parent=11 // pred_fallthru
          _
        // Predicated region
        $region25: #{bert_classifier_forward.3} parent=11 // pred_check
          %p496 = pneg %p168
        $region26: #{bert_classifier_forward.3} parent=11 // pred_check_branch
          %498 = sbr.rel (%p496) target = $region28
        $region27: #{bert_classifier_forward.3} parent=11 // pred_region
          _
        $region28: #{bert_classifier_forward.3} parent=11 // pred_fallthru
          _
        // Predicated region
        $region29: #{bert_classifier_forward.3} parent=11 // pred_check
          %p499 = pneg %p189
        $region30: #{bert_classifier_forward.3} parent=11 // pred_check_branch
          %501 = sbr.rel (%p499) target = $region32
        $region31: #{bert_classifier_forward.3} parent=11 // pred_region
          _
        $region32: #{bert_classifier_forward.3} parent=11 // pred_fallthru
          _
        // Predicated region
        $region33: #{bert_classifier_forward.3} parent=11 // pred_check
          %p502 = pneg %p210
        $region34: #{bert_classifier_forward.3} parent=11 // pred_check_branch
          %504 = sbr.rel (%p502) target = $region36
        $region35: #{bert_classifier_forward.3} parent=11 // pred_region
          _
        $region36: #{bert_classifier_forward.3} parent=11 // pred_fallthru
          _
        // Predicated region
        $region37: #{bert_classifier_forward.3} parent=11 // pred_check
          %p505 = pneg %p231
        $region38: #{bert_classifier_forward.3} parent=11 // pred_check_branch
          %507 = sbr.rel (%p505) target = $region40
        $region39: #{bert_classifier_forward.3} parent=11 // pred_region
          _
        $region40: #{bert_classifier_forward.3} parent=11 // pred_fallthru
          _
        // Predicated region
        $region41: #{bert_classifier_forward.3} parent=11 // pred_check
          %p508 = pneg %p252
        $region42: #{bert_classifier_forward.3} parent=11 // pred_check_branch
          %510 = sbr.rel (%p508) target = $region44
        $region43: #{bert_classifier_forward.3} parent=11 // pred_region
          _
        $region44: #{bert_classifier_forward.3} parent=11 // pred_fallthru
          _
        // Predicated region
        $region45: #{bert_classifier_forward.3} parent=11 // pred_check
          %p511 = pneg %p273
        $region46: #{bert_classifier_forward.3} parent=11 // pred_check_branch
          %513 = sbr.rel (%p511) target = $region48
        $region47: #{bert_classifier_forward.3} parent=11 // pred_region
          _
        $region48: #{bert_classifier_forward.3} parent=11 // pred_fallthru
          _
        // Predicated region
        $region49: #{bert_classifier_forward.3} parent=11 // pred_check
          %p514 = pneg %p294
        $region50: #{bert_classifier_forward.3} parent=11 // pred_check_branch
          %516 = sbr.rel (%p514) target = $region52
        $region51: #{bert_classifier_forward.3} parent=11 // pred_region
          _
        $region52: #{bert_classifier_forward.3} parent=11 // pred_fallthru
          _
        // Predicated region
        $region53: #{bert_classifier_forward.3} parent=11 // pred_check
          %p517 = pneg %p315
        $region54: #{bert_classifier_forward.3} parent=11 // pred_check_branch
          %519 = sbr.rel (%p517) target = $region56
        $region55: #{bert_classifier_forward.3} parent=11 // pred_region
          _
        $region56: #{bert_classifier_forward.3} parent=11 // pred_fallthru
          _
        // Predicated region
        $region57: #{bert_classifier_forward.3} parent=11 // pred_check
          %p520 = pneg %p336
        $region58: #{bert_classifier_forward.3} parent=11 // pred_check_branch
          %522 = sbr.rel (%p520) target = $region60
        $region59: #{bert_classifier_forward.3} parent=11 // pred_region
          _
        $region60: #{bert_classifier_forward.3} parent=11 // pred_fallthru
          _
        // Predicated region
        $region61: #{bert_classifier_forward.3} parent=11 // pred_check
          %p523 = pneg %p357
        $region62: #{bert_classifier_forward.3} parent=11 // pred_check_branch
          %525 = sbr.rel (%p523) target = $region64
        $region63: #{bert_classifier_forward.3} parent=11 // pred_region
          _
        $region64: #{bert_classifier_forward.3} parent=11 // pred_fallthru
          _
        // Predicated region
        $region65: #{bert_classifier_forward.3} parent=11 // pred_check
          %p526 = pneg %p378
        $region66: #{bert_classifier_forward.3} parent=11 // pred_check_branch
          %528 = sbr.rel (%p526) target = $region68
        $region67: #{bert_classifier_forward.3} parent=11 // pred_region
          _
        $region68: #{bert_classifier_forward.3} parent=11 // pred_fallthru
          _
        // Predicated region
        $region69: #{bert_classifier_forward.3} parent=11 // pred_check
          %p529 = pneg %p399
        $region70: #{bert_classifier_forward.3} parent=11 // pred_check_branch
          %531 = sbr.rel (%p529) target = $region72
        $region71: #{bert_classifier_forward.3} parent=11 // pred_region
          _
        $region72: #{bert_classifier_forward.3} parent=11 // pred_fallthru
          _
        // Predicated region
        $region73: #{bert_classifier_forward.3} parent=11 // pred_check
          %p532 = pneg %p420
        $region74: #{bert_classifier_forward.3} parent=11 // pred_check_branch
          %534 = sbr.rel (%p532) target = $region76
        $region75: #{bert_classifier_forward.3} parent=11 // pred_region
          _
        $region76: #{bert_classifier_forward.3} parent=11 // pred_fallthru
          _
      $region12: #{bert_classifier_forward.3} parent=5 // pred_fallthru
        _
      %p535 = scmp.lt.s32.totalorder %s32, 2
      // Predicated region
      $region77: #{bert_classifier_forward.3} parent=5 // pred_check
        %p536 = pneg %p535
      $region78: #{bert_classifier_forward.3} parent=5 // pred_check_branch
        %538 = sbr.rel (%p536) target = $region80
      $region79: #{bert_classifier_forward.3} parent=5 // pred_region
        // Predicated region
        $region81: #{bert_classifier_forward.3} parent=79 // pred_check
          %p539 = pneg %p52
        $region82: #{bert_classifier_forward.3} parent=79 // pred_check_branch
          %541 = sbr.rel (%p539) target = $region84
        $region83: #{bert_classifier_forward.3} parent=79 // pred_region
          %p542 = scmp.lt.s32.totalorder %s32, 1
          %s543 = scalar_select %p542, %s32, 1
          %s544 = smul.addr %s543, 4
          %s545 = scalar_lea.vmem %s0, %s544
        $region84: #{bert_classifier_forward.3} parent=79 // pred_fallthru
          _
        // Predicated region
        $region85: #{bert_classifier_forward.3} parent=79 // pred_check
          %p546 = pneg %p78
        $region86: #{bert_classifier_forward.3} parent=79 // pred_check_branch
          %548 = sbr.rel (%p546) target = $region88
        $region87: #{bert_classifier_forward.3} parent=79 // pred_region
          %p549 = scmp.lt.s32.totalorder %s32, 1
          %s550 = scalar_select %p549, %s32, 1
          %s551 = scalar_lea.vmem %s1, %s550
        $region88: #{bert_classifier_forward.3} parent=79 // pred_fallthru
          _
      $region80: #{bert_classifier_forward.3} parent=5 // pred_fallthru
        _
      %p552 = scmp.le.s32.totalorder 1, %s32
      %p553 = scmp.lt.s32.totalorder %s32, 3
      %p554 = pnand %p552, %p553
      %p555 = pneg %p554
      // Predicated region
      $region89: #{bert_classifier_forward.3} parent=5 // pred_check
        _
      $region90: #{bert_classifier_forward.3} parent=5 // pred_check_branch
        %557 = sbr.rel (%p554) target = $region92
      $region91: #{bert_classifier_forward.3} parent=5 // pred_region
        %s558 = ssub.s32 %s32, 1
        %p559 = scmp.lt.s32.totalorder %s37, 1
        %s560 = scalar_select %p559, %s37, 1
        %s561 = smul.addr %s560, 4
        %s562 = scalar_lea.vmem %s0, %s561
        %p563 = pneg %p58
        %p564 = pneg %p55
        %p565 = scmp.lt.s32.totalorder %s37, 1
        %s566 = scalar_select %p565, %s37, 1
        %s567 = scalar_lea.vmem %s1, %s566
        %p568 = pneg %p84
        %p569 = pneg %p81
        %p570 = pneg %p105
        %p571 = pneg %p102
        %p572 = pneg %p126
        %p573 = pneg %p123
        %p574 = pneg %p147
        %p575 = pneg %p144
        %p576 = pneg %p168
        %p577 = pneg %p165
        %p578 = pneg %p189
        %p579 = pneg %p186
        %p580 = pneg %p210
        %p581 = pneg %p207
        %p582 = pneg %p231
        %p583 = pneg %p228
        %p584 = pneg %p252
        %p585 = pneg %p249
        %p586 = pneg %p273
        %p587 = pneg %p270
        %p588 = pneg %p294
        %p589 = pneg %p291
        %p590 = pneg %p315
        %p591 = pneg %p312
        %p592 = pneg %p336
        %p593 = pneg %p333
        %p594 = pneg %p357
        %p595 = pneg %p354
        %p596 = pneg %p378
        %p597 = pneg %p375
        %p598 = pneg %p399
        %p599 = pneg %p396
        %p600 = pneg %p420
        %p601 = pneg %p417
        %p602 = pneg %p446
        %p603 = pneg %p443
        %s604 = sand.u32 %s433, 1
        %s605 = scalar_lea.sflag [#allocation3], %s604
        %s606 = sand.u32 %s433, 1
        %s607 = smul.addr %s606, 4
        %s608 = scalar_lea.vmem [#allocation2], %s607
        %p609 = pneg %p472
        %p610 = pneg %p469
        %s611 = sand.u32 %s459, 1
        %s612 = scalar_lea.sflag [#allocation5], %s611
        %s613 = sand.u32 %s459, 1
        %s614 = scalar_lea.vmem [#allocation4], %s613
        %p615 = scmp.lt.s32.totalorder %s37, 1
        %s616 = scalar_select %p615, %s37, 1
        %s617 = smul.addr %s616, 4
        %s618 = scalar_lea.vmem %s0, %s617
        %p619 = scmp.lt.s32.totalorder %s37, 1
        %s620 = scalar_select %p619, %s37, 1
        %s621 = scalar_lea.vmem %s1, %s620
        %v623 = vld [vmem:[%s618] sm:$0xf]
        %v624 = vunpack.c.l.bf16 %v623
        %v625 = vld [vmem:[%s621] sm:$0x1]
        %v626 = vld [vmem:[%s3] sm:$0x1]
        %v627 = vld [vmem:[%s2] sm:$0xf]
        %v628 = vld [vmem:[%s2 + $0x4] sm:$0xf]
        %v629 = vld [vmem:[%s2 + $0x8] sm:$0xf]
        %v630 = vld [vmem:[%s2 + $0xc] sm:$0xf]
        %v632 = vlaneseq
        %v633 = vshrl.u32 %v632, 7
        %v634 = vsub.s32 0, %v633
        %v635 = vrot.slane %v626, %v634
        %v641 = vunpack.c.l.b16 %v627
        %v642 = vunpack.c.l.b16 %v628
        %v643 = vunpack.c.l.b16 %v629
        %v644 = vunpack.c.l.b16 %v630
        %v645 = vpack.c.b16 %v642, %v641
        %v646 = vpack.c.b16 %v644, %v643
        %vm649 = vcmask 261120
        %v651 = vsel %vm649, %v623, 0
        %653 = vmatprep.subr.bf16.mxu0 0
        %654 = vmatpush1.bf16.msra.mxu0 0
        %655 = vmatprep.subr.bf16.mxu0 0
        %656 = vmatpush1.bf16.msra.mxu0 0
        %657 = vmatprep.subr.bf16.mxu0 0
        %658 = vmatpush1.bf16.msra.mxu0 0
        %659 = vmatprep.subr.bf16.mxu0 0
        %660 = vmatpush1.bf16.msra.mxu0 0
        %661 = vmatprep.subr.bf16.mxu0 0
        %662 = vmatpush1.bf16.msra.mxu0 0
        %663 = vmatprep.subr.bf16.mxu0 0
        %664 = vmatpush1.bf16.msra.mxu0 0
        %665 = vmatprep.subr.bf16.mxu0 0
        %666 = vmatpush1.bf16.msra.mxu0 %v646
        %667 = vmatprep.subr.bf16.mxu0 0
        %668 = vmatpush1.bf16.msra.mxu0 %v645
        %669 = vmatprep.subr.bf16.mxu0 0
        %670 = vmatpush2.bf16.msra.mxu0 0
        %671 = vmatprep.subr.bf16.mxu0 0
        %672 = vmatpush2.bf16.msra.mxu0 0
        %673 = vmatprep.subr.bf16.mxu0 0
        %674 = vmatpush2.bf16.msra.mxu0 0
        %675 = vmatprep.subr.bf16.mxu0 0
        %676 = vmatpush2.bf16.msra.mxu0 0
        %677 = vmatprep.subr.bf16.mxu0 0
        %678 = vmatpush2.bf16.msra.mxu0 0
        %679 = vmatprep.subr.bf16.mxu0 0
        %680 = vmatpush2.bf16.msra.mxu0 0
        %681 = vmatprep.subr.bf16.mxu0 0
        %682 = vmatpush2.bf16.msra.mxu0 0
        %683 = vmatprep.subr.bf16.mxu0 0
        %684 = vmatpush2.bf16.msra.mxu0 0
        %685 = vmatprep.mubr.bf16.mxu0 0
        %686 = vmatmul.mubr.bf16.gmra.mxu0 %v651
        %v687 = vpop.f32.mrf.mxu0
        %v688 = vadd.f32 %v635, %v687
        %v689 = vpop.f32.mrf.mxu0
        %v690 = vpop.f32.mrf.mxu0
        %v691 = vpop.f32.mrf.mxu0
        %692 = vdwg.mxu0
        %694 = vrot.lane.b32.xlu0 %v688, 120
        %v695 = vpop.permute.xlu0 %694
        %697 = vrot.lane.b32.xlu0 %v688, 112
        %v698 = vpop.permute.xlu0 %697
        %700 = vrot.lane.b32.xlu0 %v688, 104
        %v701 = vpop.permute.xlu0 %700
        %v703 = vpack.c.bf16 %v688, %v688
        %v704 = vpack.c.bf16 %v695, %v695
        %v705 = vpack.c.bf16 %v698, %v698
        %v706 = vpack.c.bf16 %v701, %v701
        %v708 = vlaneseq
        %v709 = vshrl.u32 %v708, 7
        %v710 = vsub.s32 0, %v709
        %v711 = vrot.slane %v625, %v710
        %714 = vrot.lane.b32.xlu0 %v703, 96
        %v715 = vpop.permute.xlu0 %714
        %vm716 = vcmask 64512
        %v718 = vsel %vm716, %v703, 0
        %v721 = vsel %vm716, %v715, 0
        %723 = vmatprep.subr.bf16.mxu0 0
        %724 = vmatpush1.bf16.xpose.msra.mxu0 0
        %725 = vmatprep.subr.bf16.mxu0 0
        %726 = vmatpush1.bf16.xpose.msra.mxu0 0
        %727 = vmatprep.subr.bf16.mxu0 0
        %728 = vmatpush1.bf16.xpose.msra.mxu0 0
        %729 = vmatprep.subr.bf16.mxu0 0
        %730 = vmatpush1.bf16.xpose.msra.mxu0 0
        %731 = vmatprep.subr.bf16.mxu0 0
        %732 = vmatpush1.bf16.xpose.msra.mxu0 0
        %733 = vmatprep.subr.bf16.mxu0 0
        %734 = vmatpush1.bf16.xpose.msra.mxu0 0
        %735 = vmatprep.subr.bf16.mxu0 0
        %736 = vmatpush1.bf16.xpose.msra.mxu0 0
        %737 = vmatprep.subr.bf16.mxu0 0
        %738 = vmatpush1.bf16.xpose.msra.mxu0 %v721
        %739 = vmatprep.subr.bf16.mxu0 0
        %740 = vmatpush2.bf16.xpose.msra.mxu0 0
        %741 = vmatprep.subr.bf16.mxu0 0
        %742 = vmatpush2.bf16.xpose.msra.mxu0 0
        %743 = vmatprep.subr.bf16.mxu0 0
        %744 = vmatpush2.bf16.xpose.msra.mxu0 0
        %745 = vmatprep.subr.bf16.mxu0 0
        %746 = vmatpush2.bf16.xpose.msra.mxu0 0
        %747 = vmatprep.subr.bf16.mxu0 0
        %748 = vmatpush2.bf16.xpose.msra.mxu0 0
        %749 = vmatprep.subr.bf16.mxu0 0
        %750 = vmatpush2.bf16.xpose.msra.mxu0 0
        %751 = vmatprep.subr.bf16.mxu0 0
        %752 = vmatpush2.bf16.xpose.msra.mxu0 0
        %753 = vmatprep.subr.bf16.mxu0 0
        %754 = vmatpush2.bf16.xpose.msra.mxu0 0
        %755 = vmatprep.mubr.bf16.mxu0 0
        %756 = vmatmul.mubr.bf16.gmra.mxu0 %v718
        %v757 = vpop.f32.mrf.mxu0
        %v758 = vadd.f32 %v711, %v757
        %v759 = vpop.f32.mrf.mxu0
        %v760 = vpop.f32.mrf.mxu0
        %v761 = vpop.f32.mrf.mxu0
        %762 = vdwg.mxu0
        %764 = vrot.lane.b32.xlu0 %v704, 96
        %v765 = vpop.permute.xlu0 %764
        %v767 = vsel %vm716, %v704, 0
        %v770 = vsel %vm716, %v765, 0
        %772 = vmatprep.subr.bf16.mxu0 0
        %773 = vmatpush1.bf16.xpose.msra.mxu0 0
        %774 = vmatprep.subr.bf16.mxu0 0
        %775 = vmatpush1.bf16.xpose.msra.mxu0 0
        %776 = vmatprep.subr.bf16.mxu0 0
        %777 = vmatpush1.bf16.xpose.msra.mxu0 0
        %778 = vmatprep.subr.bf16.mxu0 0
        %779 = vmatpush1.bf16.xpose.msra.mxu0 0
        %780 = vmatprep.subr.bf16.mxu0 0
        %781 = vmatpush1.bf16.xpose.msra.mxu0 0
        %782 = vmatprep.subr.bf16.mxu0 0
        %783 = vmatpush1.bf16.xpose.msra.mxu0 0
        %784 = vmatprep.subr.bf16.mxu0 0
        %785 = vmatpush1.bf16.xpose.msra.mxu0 0
        %786 = vmatprep.subr.bf16.mxu0 0
        %787 = vmatpush1.bf16.xpose.msra.mxu0 %v770
        %788 = vmatprep.subr.bf16.mxu0 0
        %789 = vmatpush2.bf16.xpose.msra.mxu0 0
        %790 = vmatprep.subr.bf16.mxu0 0
        %791 = vmatpush2.bf16.xpose.msra.mxu0 0
        %792 = vmatprep.subr.bf16.mxu0 0
        %793 = vmatpush2.bf16.xpose.msra.mxu0 0
        %794 = vmatprep.subr.bf16.mxu0 0
        %795 = vmatpush2.bf16.xpose.msra.mxu0 0
        %796 = vmatprep.subr.bf16.mxu0 0
        %797 = vmatpush2.bf16.xpose.msra.mxu0 0
        %798 = vmatprep.subr.bf16.mxu0 0
        %799 = vmatpush2.bf16.xpose.msra.mxu0 0
        %800 = vmatprep.subr.bf16.mxu0 0
        %801 = vmatpush2.bf16.xpose.msra.mxu0 0
        %802 = vmatprep.subr.bf16.mxu0 0
        %803 = vmatpush2.bf16.xpose.msra.mxu0 0
        %804 = vmatprep.mubr.bf16.mxu0 0
        %805 = vmatmul.mubr.bf16.gmra.mxu0 %v767
        %v806 = vpop.f32.mrf.mxu0
        %v807 = vadd.f32 %v711, %v806
        %v808 = vpop.f32.mrf.mxu0
        %v809 = vpop.f32.mrf.mxu0
        %v810 = vpop.f32.mrf.mxu0
        %811 = vdwg.mxu0
        %813 = vrot.lane.b32.xlu0 %v705, 96
        %v814 = vpop.permute.xlu0 %813
        %v816 = vsel %vm716, %v705, 0
        %v819 = vsel %vm716, %v814, 0
        %821 = vmatprep.subr.bf16.mxu0 0
        %822 = vmatpush1.bf16.xpose.msra.mxu0 0
        %823 = vmatprep.subr.bf16.mxu0 0
        %824 = vmatpush1.bf16.xpose.msra.mxu0 0
        %825 = vmatprep.subr.bf16.mxu0 0
        %826 = vmatpush1.bf16.xpose.msra.mxu0 0
        %827 = vmatprep.subr.bf16.mxu0 0
        %828 = vmatpush1.bf16.xpose.msra.mxu0 0
        %829 = vmatprep.subr.bf16.mxu0 0
        %830 = vmatpush1.bf16.xpose.msra.mxu0 0
        %831 = vmatprep.subr.bf16.mxu0 0
        %832 = vmatpush1.bf16.xpose.msra.mxu0 0
        %833 = vmatprep.subr.bf16.mxu0 0
        %834 = vmatpush1.bf16.xpose.msra.mxu0 0
        %835 = vmatprep.subr.bf16.mxu0 0
        %836 = vmatpush1.bf16.xpose.msra.mxu0 %v819
        %837 = vmatprep.subr.bf16.mxu0 0
        %838 = vmatpush2.bf16.xpose.msra.mxu0 0
        %839 = vmatprep.subr.bf16.mxu0 0
        %840 = vmatpush2.bf16.xpose.msra.mxu0 0
        %841 = vmatprep.subr.bf16.mxu0 0
        %842 = vmatpush2.bf16.xpose.msra.mxu0 0
        %843 = vmatprep.subr.bf16.mxu0 0
        %844 = vmatpush2.bf16.xpose.msra.mxu0 0
        %845 = vmatprep.subr.bf16.mxu0 0
        %846 = vmatpush2.bf16.xpose.msra.mxu0 0
        %847 = vmatprep.subr.bf16.mxu0 0
        %848 = vmatpush2.bf16.xpose.msra.mxu0 0
        %849 = vmatprep.subr.bf16.mxu0 0
        %850 = vmatpush2.bf16.xpose.msra.mxu0 0
        %851 = vmatprep.subr.bf16.mxu0 0
        %852 = vmatpush2.bf16.xpose.msra.mxu0 0
        %853 = vmatprep.mubr.bf16.mxu0 0
        %854 = vmatmul.mubr.bf16.gmra.mxu0 %v816
        %v855 = vpop.f32.mrf.mxu0
        %v856 = vadd.f32 %v711, %v855
        %v857 = vpop.f32.mrf.mxu0
        %v858 = vpop.f32.mrf.mxu0
        %v859 = vpop.f32.mrf.mxu0
        %860 = vdwg.mxu0
        %862 = vrot.lane.b32.xlu0 %v706, 96
        %v863 = vpop.permute.xlu0 %862
        %v865 = vsel %vm716, %v706, 0
        %v868 = vsel %vm716, %v863, 0
        %870 = vmatprep.subr.bf16.mxu0 0
        %871 = vmatpush1.bf16.xpose.msra.mxu0 0
        %872 = vmatprep.subr.bf16.mxu0 0
        %873 = vmatpush1.bf16.xpose.msra.mxu0 0
        %874 = vmatprep.subr.bf16.mxu0 0
        %875 = vmatpush1.bf16.xpose.msra.mxu0 0
        %876 = vmatprep.subr.bf16.mxu0 0
        %877 = vmatpush1.bf16.xpose.msra.mxu0 0
        %878 = vmatprep.subr.bf16.mxu0 0
        %879 = vmatpush1.bf16.xpose.msra.mxu0 0
        %880 = vmatprep.subr.bf16.mxu0 0
        %881 = vmatpush1.bf16.xpose.msra.mxu0 0
        %882 = vmatprep.subr.bf16.mxu0 0
        %883 = vmatpush1.bf16.xpose.msra.mxu0 0
        %884 = vmatprep.subr.bf16.mxu0 0
        %885 = vmatpush1.bf16.xpose.msra.mxu0 %v868
        %886 = vmatprep.subr.bf16.mxu0 0
        %887 = vmatpush2.bf16.xpose.msra.mxu0 0
        %888 = vmatprep.subr.bf16.mxu0 0
        %889 = vmatpush2.bf16.xpose.msra.mxu0 0
        %890 = vmatprep.subr.bf16.mxu0 0
        %891 = vmatpush2.bf16.xpose.msra.mxu0 0
        %892 = vmatprep.subr.bf16.mxu0 0
        %893 = vmatpush2.bf16.xpose.msra.mxu0 0
        %894 = vmatprep.subr.bf16.mxu0 0
        %895 = vmatpush2.bf16.xpose.msra.mxu0 0
        %896 = vmatprep.subr.bf16.mxu0 0
        %897 = vmatpush2.bf16.xpose.msra.mxu0 0
        %898 = vmatprep.subr.bf16.mxu0 0
        %899 = vmatpush2.bf16.xpose.msra.mxu0 0
        %900 = vmatprep.subr.bf16.mxu0 0
        %901 = vmatpush2.bf16.xpose.msra.mxu0 0
        %902 = vmatprep.mubr.bf16.mxu0 0
        %903 = vmatmul.mubr.bf16.gmra.mxu0 %v865
        %v904 = vpop.f32.mrf.mxu0
        %v905 = vadd.f32 %v711, %v904
        %v906 = vpop.f32.mrf.mxu0
        %v907 = vpop.f32.mrf.mxu0
        %v908 = vpop.f32.mrf.mxu0
        %909 = vdwg.mxu0
        %v910 = vsel %vm716, %v758, -inf
        %911 = vmax.xlane.f32.xlu0 %v910
        %v912 = vpop.xlane.xlu0 %911
        %v913 = vsel %vm716, %v807, -inf
        %914 = vmax.xlane.f32.xlu0 %v913
        %v915 = vpop.xlane.xlu0 %914
        %v916 = vsel %vm716, %v856, -inf
        %917 = vmax.xlane.f32.xlu0 %v916
        %v918 = vpop.xlane.xlu0 %917
        %v919 = vsel %vm716, %v905, -inf
        %920 = vmax.xlane.f32.xlu0 %v919
        %v921 = vpop.xlane.xlu0 %920
        %v922 = vsub.f32 %v758, %v912
        %v923 = vsub.f32 %v807, %v915
        %v924 = vsub.f32 %v856, %v918
        %v925 = vsub.f32 %v905, %v921
        %v926 = vmul.f32 %v922, 1.442695
        %v927 = vpow.pop %v926
        %v928 = vmul.f32 %v923, 1.442695
        %v929 = vpow.pop %v928
        %v930 = vmul.f32 %v924, 1.442695
        %v931 = vpow.pop %v930
        %v932 = vmul.f32 %v925, 1.442695
        %v933 = vpow.pop %v932
        %v934 = vsel %vm716, %v927, 0.0
        %935 = vadd.xlane.f32.xlu0 %v934
        %v936 = vpop.xlane.xlu0 %935
        %v937 = vsel %vm716, %v929, 0.0
        %938 = vadd.xlane.f32.xlu0 %v937
        %v939 = vpop.xlane.xlu0 %938
        %v940 = vsel %vm716, %v931, 0.0
        %941 = vadd.xlane.f32.xlu0 %v940
        %v942 = vpop.xlane.xlu0 %941
        %v943 = vsel %vm716, %v933, 0.0
        %944 = vadd.xlane.f32.xlu0 %v943
        %v945 = vpop.xlane.xlu0 %944
        %v946 = vrcp.pop %v936
        %v947 = vrcp.pop %v939
        %v948 = vrcp.pop %v942
        %v949 = vrcp.pop %v945
        %v950 = vmul.f32 %v927, %v946
        %v951 = vmul.f32 %v929, %v947
        %v952 = vmul.f32 %v931, %v948
        %v953 = vmul.f32 %v933, %v949
        %v954 = vpack.c.bf16 %v950, %v950
        %v955 = vpack.c.bf16 %v951, %v951
        %v956 = vpack.c.bf16 %v952, %v952
        %v957 = vpack.c.bf16 %v953, %v953
        %958 = vrot.lane.b32.xlu0 %v703, 64
        %v959 = vpop.permute.xlu0 %958
        %v961 = vsel %vm716, %v954, 0
        %vm963 = vcmask 1043456
        %v965 = vsel %vm963, %v959, 0
        %967 = vmatprep.subr.bf16.mxu0 0
        %968 = vmatpush1.bf16.msra.mxu0 0
        %969 = vmatprep.subr.bf16.mxu0 0
        %970 = vmatpush1.bf16.msra.mxu0 0
        %971 = vmatprep.subr.bf16.mxu0 0
        %972 = vmatpush1.bf16.msra.mxu0 0
        %973 = vmatprep.subr.bf16.mxu0 0
        %974 = vmatpush1.bf16.msra.mxu0 0
        %975 = vmatprep.subr.bf16.mxu0 0
        %976 = vmatpush1.bf16.msra.mxu0 0
        %977 = vmatprep.subr.bf16.mxu0 0
        %978 = vmatpush1.bf16.msra.mxu0 0
        %979 = vmatprep.subr.bf16.mxu0 0
        %980 = vmatpush1.bf16.msra.mxu0 0
        %981 = vmatprep.subr.bf16.mxu0 0
        %982 = vmatpush1.bf16.msra.mxu0 %v965
        %983 = vmatprep.subr.bf16.mxu0 0
        %984 = vmatpush2.bf16.msra.mxu0 0
        %985 = vmatprep.subr.bf16.mxu0 0
        %986 = vmatpush2.bf16.msra.mxu0 0
        %987 = vmatprep.subr.bf16.mxu0 0
        %988 = vmatpush2.bf16.msra.mxu0 0
        %989 = vmatprep.subr.bf16.mxu0 0
        %990 = vmatpush2.bf16.msra.mxu0 0
        %991 = vmatprep.subr.bf16.mxu0 0
        %992 = vmatpush2.bf16.msra.mxu0 0
        %993 = vmatprep.subr.bf16.mxu0 0
        %994 = vmatpush2.bf16.msra.mxu0 0
        %995 = vmatprep.subr.bf16.mxu0 0
        %996 = vmatpush2.bf16.msra.mxu0 0
        %997 = vmatprep.subr.bf16.mxu0 0
        %998 = vmatpush2.bf16.msra.mxu0 0
        %999 = vmatprep.mubr.bf16.mxu0 0
        %1000 = vmatmul.mubr.bf16.gmra.mxu0 %v961
        %v1001 = vpop.f32.mrf.mxu0
        %v1002 = vadd.f32 0.0, %v1001
        %v1003 = vpop.f32.mrf.mxu0
        %v1004 = vpop.f32.mrf.mxu0
        %v1005 = vpop.f32.mrf.mxu0
        %1006 = vdwg.mxu0
        %1007 = vrot.lane.b32.xlu0 %v704, 64
        %v1008 = vpop.permute.xlu0 %1007
        %v1010 = vsel %vm716, %v955, 0
        %v1013 = vsel %vm963, %v1008, 0
        %1015 = vmatprep.subr.bf16.mxu0 0
        %1016 = vmatpush1.bf16.msra.mxu0 0
        %1017 = vmatprep.subr.bf16.mxu0 0
        %1018 = vmatpush1.bf16.msra.mxu0 0
        %1019 = vmatprep.subr.bf16.mxu0 0
        %1020 = vmatpush1.bf16.msra.mxu0 0
        %1021 = vmatprep.subr.bf16.mxu0 0
        %1022 = vmatpush1.bf16.msra.mxu0 0
        %1023 = vmatprep.subr.bf16.mxu0 0
        %1024 = vmatpush1.bf16.msra.mxu0 0
        %1025 = vmatprep.subr.bf16.mxu0 0
        %1026 = vmatpush1.bf16.msra.mxu0 0
        %1027 = vmatprep.subr.bf16.mxu0 0
        %1028 = vmatpush1.bf16.msra.mxu0 0
        %1029 = vmatprep.subr.bf16.mxu0 0
        %1030 = vmatpush1.bf16.msra.mxu0 %v1013
        %1031 = vmatprep.subr.bf16.mxu0 0
        %1032 = vmatpush2.bf16.msra.mxu0 0
        %1033 = vmatprep.subr.bf16.mxu0 0
        %1034 = vmatpush2.bf16.msra.mxu0 0
        %1035 = vmatprep.subr.bf16.mxu0 0
        %1036 = vmatpush2.bf16.msra.mxu0 0
        %1037 = vmatprep.subr.bf16.mxu0 0
        %1038 = vmatpush2.bf16.msra.mxu0 0
        %1039 = vmatprep.subr.bf16.mxu0 0
        %1040 = vmatpush2.bf16.msra.mxu0 0
        %1041 = vmatprep.subr.bf16.mxu0 0
        %1042 = vmatpush2.bf16.msra.mxu0 0
        %1043 = vmatprep.subr.bf16.mxu0 0
        %1044 = vmatpush2.bf16.msra.mxu0 0
        %1045 = vmatprep.subr.bf16.mxu0 0
        %1046 = vmatpush2.bf16.msra.mxu0 0
        %1047 = vmatprep.mubr.bf16.mxu0 0
        %1048 = vmatmul.mubr.bf16.gmra.mxu0 %v1010
        %v1049 = vpop.f32.mrf.mxu0
        %v1050 = vadd.f32 0.0, %v1049
        %v1051 = vpop.f32.mrf.mxu0
        %v1052 = vpop.f32.mrf.mxu0
        %v1053 = vpop.f32.mrf.mxu0
        %1054 = vdwg.mxu0
        %1055 = vrot.lane.b32.xlu0 %v705, 64
        %v1056 = vpop.permute.xlu0 %1055
        %v1058 = vsel %vm716, %v956, 0
        %v1061 = vsel %vm963, %v1056, 0
        %1063 = vmatprep.subr.bf16.mxu0 0
        %1064 = vmatpush1.bf16.msra.mxu0 0
        %1065 = vmatprep.subr.bf16.mxu0 0
        %1066 = vmatpush1.bf16.msra.mxu0 0
        %1067 = vmatprep.subr.bf16.mxu0 0
        %1068 = vmatpush1.bf16.msra.mxu0 0
        %1069 = vmatprep.subr.bf16.mxu0 0
        %1070 = vmatpush1.bf16.msra.mxu0 0
        %1071 = vmatprep.subr.bf16.mxu0 0
        %1072 = vmatpush1.bf16.msra.mxu0 0
        %1073 = vmatprep.subr.bf16.mxu0 0
        %1074 = vmatpush1.bf16.msra.mxu0 0
        %1075 = vmatprep.subr.bf16.mxu0 0
        %1076 = vmatpush1.bf16.msra.mxu0 0
        %1077 = vmatprep.subr.bf16.mxu0 0
        %1078 = vmatpush1.bf16.msra.mxu0 %v1061
        %1079 = vmatprep.subr.bf16.mxu0 0
        %1080 = vmatpush2.bf16.msra.mxu0 0
        %1081 = vmatprep.subr.bf16.mxu0 0
        %1082 = vmatpush2.bf16.msra.mxu0 0
        %1083 = vmatprep.subr.bf16.mxu0 0
        %1084 = vmatpush2.bf16.msra.mxu0 0
        %1085 = vmatprep.subr.bf16.mxu0 0
        %1086 = vmatpush2.bf16.msra.mxu0 0
        %1087 = vmatprep.subr.bf16.mxu0 0
        %1088 = vmatpush2.bf16.msra.mxu0 0
        %1089 = vmatprep.subr.bf16.mxu0 0
        %1090 = vmatpush2.bf16.msra.mxu0 0
        %1091 = vmatprep.subr.bf16.mxu0 0
        %1092 = vmatpush2.bf16.msra.mxu0 0
        %1093 = vmatprep.subr.bf16.mxu0 0
        %1094 = vmatpush2.bf16.msra.mxu0 0
        %1095 = vmatprep.mubr.bf16.mxu0 0
        %1096 = vmatmul.mubr.bf16.gmra.mxu0 %v1058
        %v1097 = vpop.f32.mrf.mxu0
        %v1098 = vadd.f32 0.0, %v1097
        %v1099 = vpop.f32.mrf.mxu0
        %v1100 = vpop.f32.mrf.mxu0
        %v1101 = vpop.f32.mrf.mxu0
        %1102 = vdwg.mxu0
        %1103 = vrot.lane.b32.xlu0 %v706, 64
        %v1104 = vpop.permute.xlu0 %1103
        %v1106 = vsel %vm716, %v957, 0
        %v1109 = vsel %vm963, %v1104, 0
        %1111 = vmatprep.subr.bf16.mxu0 0
        %1112 = vmatpush1.bf16.msra.mxu0 0
        %1113 = vmatprep.subr.bf16.mxu0 0
        %1114 = vmatpush1.bf16.msra.mxu0 0
        %1115 = vmatprep.subr.bf16.mxu0 0
        %1116 = vmatpush1.bf16.msra.mxu0 0
        %1117 = vmatprep.subr.bf16.mxu0 0
        %1118 = vmatpush1.bf16.msra.mxu0 0
        %1119 = vmatprep.subr.bf16.mxu0 0
        %1120 = vmatpush1.bf16.msra.mxu0 0
        %1121 = vmatprep.subr.bf16.mxu0 0
        %1122 = vmatpush1.bf16.msra.mxu0 0
        %1123 = vmatprep.subr.bf16.mxu0 0
        %1124 = vmatpush1.bf16.msra.mxu0 0
        %1125 = vmatprep.subr.bf16.mxu0 0
        %1126 = vmatpush1.bf16.msra.mxu0 %v1109
        %1127 = vmatprep.subr.bf16.mxu0 0
        %1128 = vmatpush2.bf16.msra.mxu0 0
        %1129 = vmatprep.subr.bf16.mxu0 0
        %1130 = vmatpush2.bf16.msra.mxu0 0
        %1131 = vmatprep.subr.bf16.mxu0 0
        %1132 = vmatpush2.bf16.msra.mxu0 0
        %1133 = vmatprep.subr.bf16.mxu0 0
        %1134 = vmatpush2.bf16.msra.mxu0 0
        %1135 = vmatprep.subr.bf16.mxu0 0
        %1136 = vmatpush2.bf16.msra.mxu0 0
        %1137 = vmatprep.subr.bf16.mxu0 0
        %1138 = vmatpush2.bf16.msra.mxu0 0
        %1139 = vmatprep.subr.bf16.mxu0 0
        %1140 = vmatpush2.bf16.msra.mxu0 0
        %1141 = vmatprep.subr.bf16.mxu0 0
        %1142 = vmatpush2.bf16.msra.mxu0 0
        %1143 = vmatprep.mubr.bf16.mxu0 0
        %1144 = vmatmul.mubr.bf16.gmra.mxu0 %v1106
        %v1145 = vpop.f32.mrf.mxu0
        %v1146 = vadd.f32 0.0, %v1145
        %v1147 = vpop.f32.mrf.mxu0
        %v1148 = vpop.f32.mrf.mxu0
        %v1149 = vpop.f32.mrf.mxu0
        %1150 = vdwg.mxu0
        %1152 = vrot.lane.b32.xlu0 %v1050, 8
        %v1153 = vpop.permute.xlu0 %1152
        %1156 = vrot.lane.b32.xlu0 %v1098, 16
        %v1157 = vpop.permute.xlu0 %1156
        %1160 = vrot.lane.b32.xlu0 %v1146, 24
        %v1161 = vpop.permute.xlu0 %1160
        %v1163 = vsel %vm716, %v1002, %v1153
        %vm1164 = vcmask 130048
        %v1165 = vsel %vm1164, %v1163, %v1157
        %vm1166 = vcmask 195584
        %v1167 = vsel %vm1166, %v1165, %v1161
        %v1168 = vld [vmem:[%s5] sm:$0x1]
        %v1169 = vpack.c.bf16 %v1167, %v1167
        %v1170 = vld [vmem:[%s4] sm:$0xf]
        %v1171 = vld [vmem:[%s4 + $0x4] sm:$0xf]
        %v1172 = vld [vmem:[%s4 + $0x8] sm:$0xf]
        %v1173 = vld [vmem:[%s4 + $0xc] sm:$0xf]
        %v1175 = vlaneseq
        %v1176 = vshrl.u32 %v1175, 7
        %v1177 = vsub.s32 0, %v1176
        %v1178 = vrot.slane %v1168, %v1177
        %v1184 = vunpack.c.l.b16 %v1170
        %v1185 = vunpack.c.l.b16 %v1171
        %v1186 = vunpack.c.l.b16 %v1172
        %v1187 = vunpack.c.l.b16 %v1173
        %v1188 = vpack.c.b16 %v1185, %v1184
        %v1189 = vpack.c.b16 %v1187, %v1186
        %v1193 = vsel %vm649, %v1169, 0
        %1195 = vmatprep.subr.bf16.mxu0 0
        %1196 = vmatpush1.bf16.msra.mxu0 0
        %1197 = vmatprep.subr.bf16.mxu0 0
        %1198 = vmatpush1.bf16.msra.mxu0 0
        %1199 = vmatprep.subr.bf16.mxu0 0
        %1200 = vmatpush1.bf16.msra.mxu0 0
        %1201 = vmatprep.subr.bf16.mxu0 0
        %1202 = vmatpush1.bf16.msra.mxu0 0
        %1203 = vmatprep.subr.bf16.mxu0 0
        %1204 = vmatpush1.bf16.msra.mxu0 0
        %1205 = vmatprep.subr.bf16.mxu0 0
        %1206 = vmatpush1.bf16.msra.mxu0 0
        %1207 = vmatprep.subr.bf16.mxu0 0
        %1208 = vmatpush1.bf16.msra.mxu0 %v1189
        %1209 = vmatprep.subr.bf16.mxu0 0
        %1210 = vmatpush1.bf16.msra.mxu0 %v1188
        %1211 = vmatprep.subr.bf16.mxu0 0
        %1212 = vmatpush2.bf16.msra.mxu0 0
        %1213 = vmatprep.subr.bf16.mxu0 0
        %1214 = vmatpush2.bf16.msra.mxu0 0
        %1215 = vmatprep.subr.bf16.mxu0 0
        %1216 = vmatpush2.bf16.msra.mxu0 0
        %1217 = vmatprep.subr.bf16.mxu0 0
        %1218 = vmatpush2.bf16.msra.mxu0 0
        %1219 = vmatprep.subr.bf16.mxu0 0
        %1220 = vmatpush2.bf16.msra.mxu0 0
        %1221 = vmatprep.subr.bf16.mxu0 0
        %1222 = vmatpush2.bf16.msra.mxu0 0
        %1223 = vmatprep.subr.bf16.mxu0 0
        %1224 = vmatpush2.bf16.msra.mxu0 0
        %1225 = vmatprep.subr.bf16.mxu0 0
        %1226 = vmatpush2.bf16.msra.mxu0 0
        %1227 = vmatprep.mubr.bf16.mxu0 0
        %1228 = vmatmul.mubr.bf16.gmra.mxu0 %v1193
        %v1229 = vpop.f32.mrf.mxu0
        %v1230 = vadd.f32 %v1178, %v1229
        %v1231 = vpop.f32.mrf.mxu0
        %v1232 = vpop.f32.mrf.mxu0
        %v1233 = vpop.f32.mrf.mxu0
        %1234 = vdwg.mxu0
        %v1235 = vadd.f32 %v1230, %v624
        %v1236 = vld [vmem:[%s6] sm:$0x1]
        %v1237 = vld [vmem:[%s7] sm:$0x1]
        %v1238 = vsel %vm649, %v1235, 0.0
        %1239 = vadd.xlane.f32.xlu0 %v1238
        %v1240 = vpop.xlane.xlu0 %1239
        %v1241 = vrcp.pop 32.0
        %v1242 = vmul.f32 %v1240, %v1241
        %v1243 = vsub.f32 %v1235, %v1242
        %v1244 = vmul.f32 %v1243, %v1243
        %v1245 = vsel %vm649, %v1244, 0.0
        %1246 = vadd.xlane.f32.xlu0 %v1245
        %v1247 = vpop.xlane.xlu0 %1246
        %v1248 = vmul.f32 %v1247, %v1241
        %v1249 = vadd.f32 %v1248, 1e-12
        %v1250 = vrsqrt.pop %v1249
        %v1251 = vmul.f32 %v1243, %v1250
        %v1253 = vlaneseq
        %v1254 = vshrl.u32 %v1253, 7
        %v1255 = vsub.s32 0, %v1254
        %v1256 = vrot.slane %v1236, %v1255
        %v1258 = vmul.f32 %v1251, %v1256
        %v1260 = vlaneseq
        %v1261 = vshrl.u32 %v1260, 7
        %v1262 = vsub.s32 0, %v1261
        %v1263 = vrot.slane %v1237, %v1262
        %v1265 = vadd.f32 %v1258, %v1263
        %v1266 = vld [vmem:[%s9] sm:$0x1]
        %v1267 = vpack.c.bf16 %v1265, %v1265
        %v1268 = vld [vmem:[%s8] sm:$0xf]
        %v1269 = vld [vmem:[%s8 + $0x4] sm:$0xf]
        %v1270 = vld [vmem:[%s8 + $0x8] sm:$0xf]
        %v1271 = vld [vmem:[%s8 + $0xc] sm:$0xf]
        %v1273 = vlaneseq
        %v1274 = vshrl.u32 %v1273, 7
        %v1275 = vsub.s32 0, %v1274
        %v1276 = vrot.slane %v1266, %v1275
        %v1282 = vunpack.c.l.b16 %v1268
        %v1283 = vunpack.c.l.b16 %v1269
        %v1284 = vunpack.c.l.b16 %v1270
        %v1285 = vunpack.c.l.b16 %v1271
        %v1286 = vpack.c.b16 %v1283, %v1282
        %v1287 = vpack.c.b16 %v1285, %v1284
        %v1291 = vsel %vm649, %v1267, 0
        %1293 = vmatprep.subr.bf16.mxu0 0
        %1294 = vmatpush1.bf16.msra.mxu0 0
        %1295 = vmatprep.subr.bf16.mxu0 0
        %1296 = vmatpush1.bf16.msra.mxu0 0
        %1297 = vmatprep.subr.bf16.mxu0 0
        %1298 = vmatpush1.bf16.msra.mxu0 0
        %1299 = vmatprep.subr.bf16.mxu0 0
        %1300 = vmatpush1.bf16.msra.mxu0 0
        %1301 = vmatprep.subr.bf16.mxu0 0
        %1302 = vmatpush1.bf16.msra.mxu0 0
        %1303 = vmatprep.subr.bf16.mxu0 0
        %1304 = vmatpush1.bf16.msra.mxu0 0
        %1305 = vmatprep.subr.bf16.mxu0 0
        %1306 = vmatpush1.bf16.msra.mxu0 %v1287
        %1307 = vmatprep.subr.bf16.mxu0 0
        %1308 = vmatpush1.bf16.msra.mxu0 %v1286
        %1309 = vmatprep.subr.bf16.mxu0 0
        %1310 = vmatpush2.bf16.msra.mxu0 0
        %1311 = vmatprep.subr.bf16.mxu0 0
        %1312 = vmatpush2.bf16.msra.mxu0 0
        %1313 = vmatprep.subr.bf16.mxu0 0
        %1314 = vmatpush2.bf16.msra.mxu0 0
        %1315 = vmatprep.subr.bf16.mxu0 0
        %1316 = vmatpush2.bf16.msra.mxu0 0
        %1317 = vmatprep.subr.bf16.mxu0 0
        %1318 = vmatpush2.bf16.msra.mxu0 0
        %1319 = vmatprep.subr.bf16.mxu0 0
        %1320 = vmatpush2.bf16.msra.mxu0 0
        %1321 = vmatprep.subr.bf16.mxu0 0
        %1322 = vmatpush2.bf16.msra.mxu0 0
        %1323 = vmatprep.subr.bf16.mxu0 0
        %1324 = vmatpush2.bf16.msra.mxu0 0
        %1325 = vmatprep.mubr.bf16.mxu0 0
        %1326 = vmatmul.mubr.bf16.gmra.mxu0 %v1291
        %v1327 = vpop.f32.mrf.mxu0
        %v1328 = vadd.f32 %v1276, %v1327
        %v1329 = vpop.f32.mrf.mxu0
        %v1330 = vpop.f32.mrf.mxu0
        %v1331 = vpop.f32.mrf.mxu0
        %1332 = vdwg.mxu0
        %v1333 = vmul.f32 %v1328, 0.5
        %v1334 = vmul.f32 %v1328, 0.70710677
        %vm1335 = vcmp.ge.f32.partialorder %v1334, 0.0
        %v1336 = vsel %vm1335, 1.0, -1.0
        %v1337 = vmul.f32 %v1334, %v1336
        %v1338 = vmul.f32 %v1337, 0.3275911
        %v1339 = vadd.f32 %v1338, 1.0
        %v1340 = vrcp.pop %v1339
        %v1341 = vmul.f32 1.0, %v1340
        %v1342 = vmul.f32 %v1341, 1.0614054
        %v1343 = vadd.f32 %v1342, -1.4531521
        %v1344 = vmul.f32 %v1343, %v1341
        %v1345 = vadd.f32 %v1344, 1.4214138
        %v1346 = vmul.f32 %v1345, %v1341
        %v1347 = vadd.f32 %v1346, -0.28449672
        %v1348 = vmul.f32 %v1347, %v1341
        %v1349 = vadd.f32 %v1348, 0.2548296
        %v1350 = vmul.f32 %v1349, %v1341
        %v1351 = vsub.f32 0.0, %v1337
        %v1352 = vmul.f32 %v1351, %v1337
        %v1353 = vmul.f32 %v1352, 1.442695
        %v1354 = vpow.pop %v1353
        %v1355 = vmul.f32 %v1350, %v1354
        %v1356 = vsub.f32 1.0, %v1355
        %v1357 = vmul.f32 %v1336, %v1356
        %v1358 = vadd.f32 %v1357, 1.0
        %v1359 = vmul.f32 %v1333, %v1358
        %v1360 = vld [vmem:[%s11] sm:$0x1]
        %v1361 = vpack.c.bf16 %v1359, %v1359
        %v1362 = vld [vmem:[%s10] sm:$0xf]
        %v1363 = vld [vmem:[%s10 + $0x4] sm:$0xf]
        %v1364 = vld [vmem:[%s10 + $0x8] sm:$0xf]
        %v1365 = vld [vmem:[%s10 + $0xc] sm:$0xf]
        %v1366 = vld [vmem:[%s10 + $0x10] sm:$0xf]
        %v1367 = vld [vmem:[%s10 + $0x14] sm:$0xf]
        %v1368 = vld [vmem:[%s10 + $0x18] sm:$0xf]
        %v1369 = vld [vmem:[%s10 + $0x1c] sm:$0xf]
        %v1371 = vlaneseq
        %v1372 = vshrl.u32 %v1371, 7
        %v1373 = vsub.s32 0, %v1372
        %v1374 = vrot.slane %v1360, %v1373
        %v1384 = vunpack.c.l.b16 %v1362
        %v1385 = vunpack.c.l.b16 %v1363
        %v1386 = vunpack.c.l.b16 %v1364
        %v1387 = vunpack.c.l.b16 %v1365
        %v1388 = vunpack.c.l.b16 %v1366
        %v1389 = vunpack.c.l.b16 %v1367
        %v1390 = vunpack.c.l.b16 %v1368
        %v1391 = vunpack.c.l.b16 %v1369
        %v1392 = vpack.c.b16 %v1385, %v1384
        %v1393 = vpack.c.b16 %v1387, %v1386
        %v1394 = vpack.c.b16 %v1389, %v1388
        %v1395 = vpack.c.b16 %v1391, %v1390
        %vm1400 = vcmask 523264
        %v1402 = vsel %vm1400, %v1361, 0
        %1404 = vmatprep.subr.bf16.mxu0 0
        %1405 = vmatpush1.bf16.msra.mxu0 0
        %1406 = vmatprep.subr.bf16.mxu0 0
        %1407 = vmatpush1.bf16.msra.mxu0 0
        %1408 = vmatprep.subr.bf16.mxu0 0
        %1409 = vmatpush1.bf16.msra.mxu0 0
        %1410 = vmatprep.subr.bf16.mxu0 0
        %1411 = vmatpush1.bf16.msra.mxu0 0
        %1412 = vmatprep.subr.bf16.mxu0 0
        %1413 = vmatpush1.bf16.msra.mxu0 %v1395
        %1414 = vmatprep.subr.bf16.mxu0 0
        %1415 = vmatpush1.bf16.msra.mxu0 %v1394
        %1416 = vmatprep.subr.bf16.mxu0 0
        %1417 = vmatpush1.bf16.msra.mxu0 %v1393
        %1418 = vmatprep.subr.bf16.mxu0 0
        %1419 = vmatpush1.bf16.msra.mxu0 %v1392
        %1420 = vmatprep.subr.bf16.mxu0 0
        %1421 = vmatpush2.bf16.msra.mxu0 0
        %1422 = vmatprep.subr.bf16.mxu0 0
        %1423 = vmatpush2.bf16.msra.mxu0 0
        %1424 = vmatprep.subr.bf16.mxu0 0
        %1425 = vmatpush2.bf16.msra.mxu0 0
        %1426 = vmatprep.subr.bf16.mxu0 0
        %1427 = vmatpush2.bf16.msra.mxu0 0
        %1428 = vmatprep.subr.bf16.mxu0 0
        %1429 = vmatpush2.bf16.msra.mxu0 0
        %1430 = vmatprep.subr.bf16.mxu0 0
        %1431 = vmatpush2.bf16.msra.mxu0 0
        %1432 = vmatprep.subr.bf16.mxu0 0
        %1433 = vmatpush2.bf16.msra.mxu0 0
        %1434 = vmatprep.subr.bf16.mxu0 0
        %1435 = vmatpush2.bf16.msra.mxu0 0
        %1436 = vmatprep.mubr.bf16.mxu0 0
        %1437 = vmatmul.mubr.bf16.gmra.mxu0 %v1402
        %v1438 = vpop.f32.mrf.mxu0
        %v1439 = vadd.f32 %v1374, %v1438
        %v1440 = vpop.f32.mrf.mxu0
        %v1441 = vpop.f32.mrf.mxu0
        %v1442 = vpop.f32.mrf.mxu0
        %1443 = vdwg.mxu0
        %v1444 = vadd.f32 %v1439, %v1265
        %v1445 = vld [vmem:[%s12] sm:$0x1]
        %v1446 = vld [vmem:[%s13] sm:$0x1]
        %v1447 = vsel %vm649, %v1444, 0.0
        %1448 = vadd.xlane.f32.xlu0 %v1447
        %v1449 = vpop.xlane.xlu0 %1448
        %v1450 = vmul.f32 %v1449, %v1241
        %v1451 = vsub.f32 %v1444, %v1450
        %v1452 = vmul.f32 %v1451, %v1451
        %v1453 = vsel %vm649, %v1452, 0.0
        %1454 = vadd.xlane.f32.xlu0 %v1453
        %v1455 = vpop.xlane.xlu0 %1454
        %v1456 = vmul.f32 %v1455, %v1241
        %v1457 = vadd.f32 %v1456, 1e-12
        %v1458 = vrsqrt.pop %v1457
        %v1459 = vmul.f32 %v1451, %v1458
        %v1461 = vlaneseq
        %v1462 = vshrl.u32 %v1461, 7
        %v1463 = vsub.s32 0, %v1462
        %v1464 = vrot.slane %v1445, %v1463
        %v1466 = vmul.f32 %v1459, %v1464
        %v1468 = vlaneseq
        %v1469 = vshrl.u32 %v1468, 7
        %v1470 = vsub.s32 0, %v1469
        %v1471 = vrot.slane %v1446, %v1470
        %v1473 = vadd.f32 %v1466, %v1471
        %v1474 = vpack.c.bf16 %v1473, %v1473
        %vm1475 = vcmask 257024
        %1476 = vst.msk [vmem:[%s608] sm:$0xf] %vm1475, %v1474
        %v1477 = vld [vmem:[%s15] sm:$0x1]
        %v1478 = vld [vmem:[%s14] sm:$0xf]
        %v1479 = vld [vmem:[%s14 + $0x4] sm:$0xf]
        %v1480 = vld [vmem:[%s14 + $0x8] sm:$0xf]
        %v1481 = vld [vmem:[%s14 + $0xc] sm:$0xf]
        %v1486 = vunpack.c.l.b16 %v1478
        %v1487 = vunpack.c.l.b16 %v1479
        %v1488 = vunpack.c.l.b16 %v1480
        %v1489 = vunpack.c.l.b16 %v1481
        %v1490 = vpack.c.b16 %v1487, %v1486
        %v1491 = vpack.c.b16 %v1489, %v1488
        %v1495 = vsel %vm649, %v1474, 0
        %1497 = vmatprep.subr.bf16.mxu0 0
        %1498 = vmatpush1.bf16.msra.mxu0 0
        %1499 = vmatprep.subr.bf16.mxu0 0
        %1500 = vmatpush1.bf16.msra.mxu0 0
        %1501 = vmatprep.subr.bf16.mxu0 0
        %1502 = vmatpush1.bf16.msra.mxu0 0
        %1503 = vmatprep.subr.bf16.mxu0 0
        %1504 = vmatpush1.bf16.msra.mxu0 0
        %1505 = vmatprep.subr.bf16.mxu0 0
        %1506 = vmatpush1.bf16.msra.mxu0 0
        %1507 = vmatprep.subr.bf16.mxu0 0
        %1508 = vmatpush1.bf16.msra.mxu0 0
        %1509 = vmatprep.subr.bf16.mxu0 0
        %1510 = vmatpush1.bf16.msra.mxu0 %v1491
        %1511 = vmatprep.subr.bf16.mxu0 0
        %1512 = vmatpush1.bf16.msra.mxu0 %v1490
        %1513 = vmatprep.subr.bf16.mxu0 0
        %1514 = vmatpush2.bf16.msra.mxu0 0
        %1515 = vmatprep.subr.bf16.mxu0 0
        %1516 = vmatpush2.bf16.msra.mxu0 0
        %1517 = vmatprep.subr.bf16.mxu0 0
        %1518 = vmatpush2.bf16.msra.mxu0 0
        %1519 = vmatprep.subr.bf16.mxu0 0
        %1520 = vmatpush2.bf16.msra.mxu0 0
        %1521 = vmatprep.subr.bf16.mxu0 0
        %1522 = vmatpush2.bf16.msra.mxu0 0
        %1523 = vmatprep.subr.bf16.mxu0 0
        %1524 = vmatpush2.bf16.msra.mxu0 0
        %1525 = vmatprep.subr.bf16.mxu0 0
        %1526 = vmatpush2.bf16.msra.mxu0 0
        %1527 = vmatprep.subr.bf16.mxu0 0
        %1528 = vmatpush2.bf16.msra.mxu0 0
        %1529 = vmatprep.mubr.bf16.mxu0 0
        %1530 = vmatmul.mubr.bf16.gmra.mxu0 %v1495
        %v1531 = vpop.f32.mrf.mxu0
        %v1532 = vadd.f32 %v1477, %v1531
        %v1533 = vpop.f32.mrf.mxu0
        %v1534 = vpop.f32.mrf.mxu0
        %v1535 = vpop.f32.mrf.mxu0
        %1536 = vdwg.mxu0
        %v1537 = vtanh.pop %v1532
        %v1538 = vld [vmem:[%s17] sm:$0x1]
        %v1539 = vpack.c.bf16 %v1537, %v1537
        %v1540 = vld [vmem:[%s16] sm:$0xf]
        %v1541 = vld [vmem:[%s16 + $0x4] sm:$0xf]
        %v1542 = vld [vmem:[%s16 + $0x8] sm:$0xf]
        %v1543 = vld [vmem:[%s16 + $0xc] sm:$0xf]
        %v1548 = vunpack.c.l.b16 %v1540
        %v1549 = vunpack.c.l.b16 %v1541
        %v1550 = vunpack.c.l.b16 %v1542
        %v1551 = vunpack.c.l.b16 %v1543
        %v1552 = vpack.c.b16 %v1549, %v1548
        %v1553 = vpack.c.b16 %v1551, %v1550
        %v1557 = vsel %vm649, %v1539, 0
        %1559 = vmatprep.subr.bf16.mxu0 0
        %1560 = vmatpush1.bf16.msra.mxu0 0
        %1561 = vmatprep.subr.bf16.mxu0 0
        %1562 = vmatpush1.bf16.msra.mxu0 0
        %1563 = vmatprep.subr.bf16.mxu0 0
        %1564 = vmatpush1.bf16.msra.mxu0 0
        %1565 = vmatprep.subr.bf16.mxu0 0
        %1566 = vmatpush1.bf16.msra.mxu0 0
        %1567 = vmatprep.subr.bf16.mxu0 0
        %1568 = vmatpush1.bf16.msra.mxu0 0
        %1569 = vmatprep.subr.bf16.mxu0 0
        %1570 = vmatpush1.bf16.msra.mxu0 0
        %1571 = vmatprep.subr.bf16.mxu0 0
        %1572 = vmatpush1.bf16.msra.mxu0 %v1553
        %1573 = vmatprep.subr.bf16.mxu0 0
        %1574 = vmatpush1.bf16.msra.mxu0 %v1552
        %1575 = vmatprep.subr.bf16.mxu0 0
        %1576 = vmatpush2.bf16.msra.mxu0 0
        %1577 = vmatprep.subr.bf16.mxu0 0
        %1578 = vmatpush2.bf16.msra.mxu0 0
        %1579 = vmatprep.subr.bf16.mxu0 0
        %1580 = vmatpush2.bf16.msra.mxu0 0
        %1581 = vmatprep.subr.bf16.mxu0 0
        %1582 = vmatpush2.bf16.msra.mxu0 0
        %1583 = vmatprep.subr.bf16.mxu0 0
        %1584 = vmatpush2.bf16.msra.mxu0 0
        %1585 = vmatprep.subr.bf16.mxu0 0
        %1586 = vmatpush2.bf16.msra.mxu0 0
        %1587 = vmatprep.subr.bf16.mxu0 0
        %1588 = vmatpush2.bf16.msra.mxu0 0
        %1589 = vmatprep.subr.bf16.mxu0 0
        %1590 = vmatpush2.bf16.msra.mxu0 0
        %1591 = vmatprep.mubr.bf16.mxu0 0
        %1592 = vmatmul.mubr.bf16.gmra.mxu0 %v1557
        %v1593 = vpop.f32.mrf.mxu0
        %v1594 = vadd.f32 %v1538, %v1593
        %v1595 = vpop.f32.mrf.mxu0
        %v1596 = vpop.f32.mrf.mxu0
        %v1597 = vpop.f32.mrf.mxu0
        %1598 = vdwg.mxu0
        %1599 = vst [vmem:[%s614] sm:$0x1] %v1594
        %s1600 = sand.u32 %s433, 1
        %s1601 = scalar_lea.sflag [#allocation3], %s1600
        %s1602 = sand.u32 %s433, 1
        %s1603 = smul.addr %s1602, 4
        %s1604 = scalar_lea.vmem [#allocation2], %s1603
        %s1605 = sand.u32 %s459, 1
        %s1606 = scalar_lea.sflag [#allocation5], %s1605
        %s1607 = sand.u32 %s459, 1
        %s1608 = scalar_lea.vmem [#allocation4], %s1607
        // Predicated region
        $region93: #{bert_classifier_forward.3} parent=91 // pred_check
          %p1609 = pneg %p443
        $region94: #{bert_classifier_forward.3} parent=91 // pred_check_branch
          %1611 = sbr.rel (%p1609) target = $region96
        $region95: #{bert_classifier_forward.3} parent=91 // pred_region
          %s1613 = ssub.s32 64, 64
          %1614 = vsyncadd %s1601, %s1613
          %s1615 = smul.addr %s37, 64
          %s1616 = scalar_lea.hbm %s18, %s1615
          %s1618 = sshll.u32 %s1604, 4
          %s1619 = int_to_ptr.vmem [resolvable:$true] %s1618
          %1621 = dma.vmem_to_hbm [thread:$0]  %s1619, 64, %s1616, %s1601
        $region96: #{bert_classifier_forward.3} parent=91 // pred_fallthru
          _
        // Predicated region
        $region97: #{bert_classifier_forward.3} parent=91 // pred_check
          %p1622 = pneg %p469
        $region98: #{bert_classifier_forward.3} parent=91 // pred_check_branch
          %1624 = sbr.rel (%p1622) target = $region100
        $region99: #{bert_classifier_forward.3} parent=91 // pred_region
          %s1626 = ssub.s32 16, 16
          %1627 = vsyncadd %s1606, %s1626
          %s1628 = smul.addr %s37, 16
          %s1629 = scalar_lea.hbm %s19, %s1628
          %s1631 = sshll.u32 %s1608, 4
          %s1632 = int_to_ptr.vmem [resolvable:$true] %s1631
          %1634 = dma.vmem_to_hbm [thread:$0]  %s1632, 16, %s1629, %s1606
        $region100: #{bert_classifier_forward.3} parent=91 // pred_fallthru
          _
      $region92: #{bert_classifier_forward.3} parent=5 // pred_fallthru
        _
      %p1635 = scmp.le.s32.totalorder 2, %s32
      // Predicated region
      $region101: #{bert_classifier_forward.3} parent=5 // pred_check
        %p1636 = pneg %p1635
      $region102: #{bert_classifier_forward.3} parent=5 // pred_check_branch
        %1638 = sbr.rel (%p1636) target = $region104
      $region103: #{bert_classifier_forward.3} parent=5 // pred_region
        %s1639 = ssub.s32 %s32, 2
        // Predicated region
        $region105: #{bert_classifier_forward.3} parent=103 // pred_check
          %p1640 = pneg %p449
        $region106: #{bert_classifier_forward.3} parent=103 // pred_check_branch
          %1642 = sbr.rel (%p1640) target = $region108
        $region107: #{bert_classifier_forward.3} parent=103 // pred_region
          %s1643 = sand.u32 %s434, 1
          %s1644 = scalar_lea.sflag [#allocation3], %s1643
          %s1645 = sand.u32 %s434, 1
          %s1646 = smul.addr %s1645, 4
          %s1647 = scalar_lea.vmem [#allocation2], %s1646
          %1648 = dma.done %s1644, 64
        $region108: #{bert_classifier_forward.3} parent=103 // pred_fallthru
          _
        // Predicated region
        $region109: #{bert_classifier_forward.3} parent=103 // pred_check
          %p1649 = pneg %p475
        $region110: #{bert_classifier_forward.3} parent=103 // pred_check_branch
          %1651 = sbr.rel (%p1649) target = $region112
        $region111: #{bert_classifier_forward.3} parent=103 // pred_region
          %s1652 = sand.u32 %s460, 1
          %s1653 = scalar_lea.sflag [#allocation5], %s1652
          %s1654 = sand.u32 %s460, 1
          %s1655 = scalar_lea.vmem [#allocation4], %s1654
          %1656 = dma.done %s1653, 16
        $region112: #{bert_classifier_forward.3} parent=103 // pred_fallthru
          _
      $region104: #{bert_classifier_forward.3} parent=5 // pred_fallthru
        _
    $region6: #{bert_classifier_forward.3} parent=1 // loop_footer
      %s36 = sadd.s32 1, %s32
    $region7: #{bert_classifier_forward.3} parent=1 // loop_footer_branch
      %31 = sbr.rel target = $region3
    $region8: #{bert_classifier_forward.3} parent=1 // loop_exit
      _
    %1657 = vsyncpa [#allocation3], 1
    %s1658 = scalar_lea.sflag [#allocation3], 1
    %1659 = vsyncpa %s1658, 1
    %1660 = vsyncpa [#allocation5], 1
    %s1661 = scalar_lea.sflag [#allocation5], 1
    %1662 = vsyncpa %s1661, 1

// kernel: bert_classifier_forward.2
$region0: #{bert_classifier_forward.2}
  #allocation0 [shape = 'u32[]', space=smem, size = 0x4, offset = 0x4, fixed_abs, tag = 'smem constant byte address 0x4 - core index']
  #allocation1 [shape = 'u32[144,128]{1,0:T(1,128)}', space=vmem, size = 0x12000, scoped, tag = 'internal scratch']
  %s0 = inlined_call_operand.vmem [shape: f32[2,8,32], index: 0, kind: input, shape index: {}]
  %s1 = inlined_call_operand.vmem [shape: f32[2,1,8], index: 1, kind: input, shape index: {}]
  %s2 = inlined_call_operand.vmem [shape: f32[1,32], index: 2, kind: input, shape index: {}]
  %s3 = inlined_call_operand.vmem [shape: f32[1,32], index: 3, kind: input, shape index: {}]
  %s4 = inlined_call_operand.vmem [shape: bf16[32,96], index: 4, kind: input, shape index: {}]
  %s5 = inlined_call_operand.vmem [shape: f32[1,96], index: 5, kind: input, shape index: {}]
  %s6 = inlined_call_operand.vmem [shape: bf16[32,32], index: 6, kind: input, shape index: {}]
  %s7 = inlined_call_operand.vmem [shape: f32[1,32], index: 7, kind: input, shape index: {}]
  %s8 = inlined_call_operand.vmem [shape: f32[1,32], index: 8, kind: input, shape index: {}]
  %s9 = inlined_call_operand.vmem [shape: f32[1,32], index: 9, kind: input, shape index: {}]
  %s10 = inlined_call_operand.vmem [shape: bf16[32,64], index: 10, kind: input, shape index: {}]
  %s11 = inlined_call_operand.vmem [shape: f32[1,64], index: 11, kind: input, shape index: {}]
  %s12 = inlined_call_operand.vmem [shape: bf16[64,32], index: 12, kind: input, shape index: {}]
  %s13 = inlined_call_operand.vmem [shape: f32[1,32], index: 13, kind: input, shape index: {}]
  %s14 = inlined_call_operand.vmem [shape: f32[1,32], index: 14, kind: input, shape index: {}]
  %s15 = inlined_call_operand.vmem [shape: f32[1,32], index: 15, kind: input, shape index: {}]
  %s16 = inlined_call_operand.vmem [shape: bf16[2,8,32], index: 16, kind: output, shape index: {}]
  %s17 = sld [smem:[#allocation0]]
  $region97: #{bert_classifier_forward.2} parent=0
    _
  %s19 = ssub.s32 1, %s17
  %s20 = scalar_select 0, %s19, %s17
  loop: start=0, step=1, limit=4
  $region2: #{bert_classifier_forward.2} parent=0 // loop_pre_header
    _
  $region3: #{bert_classifier_forward.2} parent=0 // loop_header
    %s22 = sphi 0, %s26
    %p23 = scmp.ge.s32.totalorder %s22, 4
    %s32 = sphi 0, %s34
    %s35 = sphi 0, %s32
    %s36 = sphi 0, %s35
    %s52 = sphi 0, %s36
    %s58 = sphi 0, %s60
    %s61 = sphi 0, %s58
    %s62 = sphi 0, %s61
    %s78 = sphi 0, %s62
    %s82 = sphi 0, %s82
    %s84 = sphi 0, %s82
    %s85 = sphi 0, %s84
    %s99 = sphi 0, %s85
    %s103 = sphi 0, %s103
    %s105 = sphi 0, %s103
    %s106 = sphi 0, %s105
    %s120 = sphi 0, %s106
    %s124 = sphi 0, %s124
    %s126 = sphi 0, %s124
    %s127 = sphi 0, %s126
    %s141 = sphi 0, %s127
    %s145 = sphi 0, %s145
    %s147 = sphi 0, %s145
    %s148 = sphi 0, %s147
    %s162 = sphi 0, %s148
    %s166 = sphi 0, %s166
    %s168 = sphi 0, %s166
    %s169 = sphi 0, %s168
    %s183 = sphi 0, %s169
    %s187 = sphi 0, %s187
    %s189 = sphi 0, %s187
    %s190 = sphi 0, %s189
    %s204 = sphi 0, %s190
    %s208 = sphi 0, %s208
    %s210 = sphi 0, %s208
    %s211 = sphi 0, %s210
    %s225 = sphi 0, %s211
    %s229 = sphi 0, %s229
    %s231 = sphi 0, %s229
    %s232 = sphi 0, %s231
    %s246 = sphi 0, %s232
    %s250 = sphi 0, %s250
    %s252 = sphi 0, %s250
    %s253 = sphi 0, %s252
    %s267 = sphi 0, %s253
    %s271 = sphi 0, %s271
    %s273 = sphi 0, %s271
    %s274 = sphi 0, %s273
    %s288 = sphi 0, %s274
    %s292 = sphi 0, %s292
    %s294 = sphi 0, %s292
    %s295 = sphi 0, %s294
    %s309 = sphi 0, %s295
    %s313 = sphi 0, %s313
    %s315 = sphi 0, %s313
    %s316 = sphi 0, %s315
    %s330 = sphi 0, %s316
    %s334 = sphi 0, %s334
    %s336 = sphi 0, %s334
    %s337 = sphi 0, %s336
    %s351 = sphi 0, %s337
    %s355 = sphi 0, %s355
    %s357 = sphi 0, %s355
    %s358 = sphi 0, %s357
    %s372 = sphi 0, %s358
    %s378 = sphi 0, %s380
    %s381 = sphi 0, %s378
    %s382 = sphi 0, %s381
    %s398 = sphi 0, %s382
  $region4: #{bert_classifier_forward.2} parent=0 // loop_header_branch
    %25 = sbr.rel (%p23) target = $region8
  $region5: #{bert_classifier_forward.2} parent=0 // loop_body
    %s27 = ssub.s32 %s22, 1
    %s28 = ssub.s32 %s22, 2
    %s29 = sadd.s32 %s22, 1
    %s30 = ssub.s32 %s22, %s29
    %p31 = scmp.eq.s32.totalorder %s30, 0
    %s33 = sadd.s32 %s32, 1
    %s34 = scalar_select %p31, %s32, %s33
    %p37 = pneg %p31
    %p38 = scmp.eq.s32.totalorder %s22, 1
    %p39 = por %p37, %p38
    %p40 = scmp.ne.s32.totalorder %s32, %s35
    %p41 = scmp.eq.s32.totalorder %s22, 0
    %p42 = por %p40, %p41
    %p43 = scmp.ne.s32.totalorder %s32, %s35
    %p44 = scmp.eq.s32.totalorder %s27, 1
    %p45 = por %p43, %p44
    %p46 = scmp.ne.s32.totalorder %s35, %s36
    %p47 = scmp.eq.s32.totalorder %s27, 0
    %p48 = por %p46, %p47
    %p49 = scmp.ne.s32.totalorder %s35, %s36
    %p50 = scmp.eq.s32.totalorder %s28, 1
    %p51 = por %p49, %p50
    %p53 = scmp.ne.s32.totalorder %s36, %s52
    %p54 = scmp.eq.s32.totalorder %s28, 0
    %p55 = por %p53, %p54
    %s56 = ssub.s32 %s22, %s29
    %p57 = scmp.eq.s32.totalorder %s56, 0
    %s59 = sadd.s32 %s58, 1
    %s60 = scalar_select %p57, %s58, %s59
    %p63 = pneg %p57
    %p64 = scmp.eq.s32.totalorder %s22, 1
    %p65 = por %p63, %p64
    %p66 = scmp.ne.s32.totalorder %s58, %s61
    %p67 = scmp.eq.s32.totalorder %s22, 0
    %p68 = por %p66, %p67
    %p69 = scmp.ne.s32.totalorder %s58, %s61
    %p70 = scmp.eq.s32.totalorder %s27, 1
    %p71 = por %p69, %p70
    %p72 = scmp.ne.s32.totalorder %s61, %s62
    %p73 = scmp.eq.s32.totalorder %s27, 0
    %p74 = por %p72, %p73
    %p75 = scmp.ne.s32.totalorder %s61, %s62
    %p76 = scmp.eq.s32.totalorder %s28, 1
    %p77 = por %p75, %p76
    %p79 = scmp.ne.s32.totalorder %s62, %s78
    %p80 = scmp.eq.s32.totalorder %s28, 0
    %p81 = por %p79, %p80
    %s83 = sadd.s32 %s82, 1
    %p86 = scmp.eq.s32.totalorder %s22, 1
    %p87 = scmp.ne.s32.totalorder %s82, %s84
    %p88 = scmp.eq.s32.totalorder %s22, 0
    %p89 = por %p87, %p88
    %p90 = scmp.ne.s32.totalorder %s82, %s84
    %p91 = scmp.eq.s32.totalorder %s27, 1
    %p92 = por %p90, %p91
    %p93 = scmp.ne.s32.totalorder %s84, %s85
    %p94 = scmp.eq.s32.totalorder %s27, 0
    %p95 = por %p93, %p94
    %p96 = scmp.ne.s32.totalorder %s84, %s85
    %p97 = scmp.eq.s32.totalorder %s28, 1
    %p98 = por %p96, %p97
    %p100 = scmp.ne.s32.totalorder %s85, %s99
    %p101 = scmp.eq.s32.totalorder %s28, 0
    %p102 = por %p100, %p101
    %s104 = sadd.s32 %s103, 1
    %p107 = scmp.eq.s32.totalorder %s22, 1
    %p108 = scmp.ne.s32.totalorder %s103, %s105
    %p109 = scmp.eq.s32.totalorder %s22, 0
    %p110 = por %p108, %p109
    %p111 = scmp.ne.s32.totalorder %s103, %s105
    %p112 = scmp.eq.s32.totalorder %s27, 1
    %p113 = por %p111, %p112
    %p114 = scmp.ne.s32.totalorder %s105, %s106
    %p115 = scmp.eq.s32.totalorder %s27, 0
    %p116 = por %p114, %p115
    %p117 = scmp.ne.s32.totalorder %s105, %s106
    %p118 = scmp.eq.s32.totalorder %s28, 1
    %p119 = por %p117, %p118
    %p121 = scmp.ne.s32.totalorder %s106, %s120
    %p122 = scmp.eq.s32.totalorder %s28, 0
    %p123 = por %p121, %p122
    %s125 = sadd.s32 %s124, 1
    %p128 = scmp.eq.s32.totalorder %s22, 1
    %p129 = scmp.ne.s32.totalorder %s124, %s126
    %p130 = scmp.eq.s32.totalorder %s22, 0
    %p131 = por %p129, %p130
    %p132 = scmp.ne.s32.totalorder %s124, %s126
    %p133 = scmp.eq.s32.totalorder %s27, 1
    %p134 = por %p132, %p133
    %p135 = scmp.ne.s32.totalorder %s126, %s127
    %p136 = scmp.eq.s32.totalorder %s27, 0
    %p137 = por %p135, %p136
    %p138 = scmp.ne.s32.totalorder %s126, %s127
    %p139 = scmp.eq.s32.totalorder %s28, 1
    %p140 = por %p138, %p139
    %p142 = scmp.ne.s32.totalorder %s127, %s141
    %p143 = scmp.eq.s32.totalorder %s28, 0
    %p144 = por %p142, %p143
    %s146 = sadd.s32 %s145, 1
    %p149 = scmp.eq.s32.totalorder %s22, 1
    %p150 = scmp.ne.s32.totalorder %s145, %s147
    %p151 = scmp.eq.s32.totalorder %s22, 0
    %p152 = por %p150, %p151
    %p153 = scmp.ne.s32.totalorder %s145, %s147
    %p154 = scmp.eq.s32.totalorder %s27, 1
    %p155 = por %p153, %p154
    %p156 = scmp.ne.s32.totalorder %s147, %s148
    %p157 = scmp.eq.s32.totalorder %s27, 0
    %p158 = por %p156, %p157
    %p159 = scmp.ne.s32.totalorder %s147, %s148
    %p160 = scmp.eq.s32.totalorder %s28, 1
    %p161 = por %p159, %p160
    %p163 = scmp.ne.s32.totalorder %s148, %s162
    %p164 = scmp.eq.s32.totalorder %s28, 0
    %p165 = por %p163, %p164
    %s167 = sadd.s32 %s166, 1
    %p170 = scmp.eq.s32.totalorder %s22, 1
    %p171 = scmp.ne.s32.totalorder %s166, %s168
    %p172 = scmp.eq.s32.totalorder %s22, 0
    %p173 = por %p171, %p172
    %p174 = scmp.ne.s32.totalorder %s166, %s168
    %p175 = scmp.eq.s32.totalorder %s27, 1
    %p176 = por %p174, %p175
    %p177 = scmp.ne.s32.totalorder %s168, %s169
    %p178 = scmp.eq.s32.totalorder %s27, 0
    %p179 = por %p177, %p178
    %p180 = scmp.ne.s32.totalorder %s168, %s169
    %p181 = scmp.eq.s32.totalorder %s28, 1
    %p182 = por %p180, %p181
    %p184 = scmp.ne.s32.totalorder %s169, %s183
    %p185 = scmp.eq.s32.totalorder %s28, 0
    %p186 = por %p184, %p185
    %s188 = sadd.s32 %s187, 1
    %p191 = scmp.eq.s32.totalorder %s22, 1
    %p192 = scmp.ne.s32.totalorder %s187, %s189
    %p193 = scmp.eq.s32.totalorder %s22, 0
    %p194 = por %p192, %p193
    %p195 = scmp.ne.s32.totalorder %s187, %s189
    %p196 = scmp.eq.s32.totalorder %s27, 1
    %p197 = por %p195, %p196
    %p198 = scmp.ne.s32.totalorder %s189, %s190
    %p199 = scmp.eq.s32.totalorder %s27, 0
    %p200 = por %p198, %p199
    %p201 = scmp.ne.s32.totalorder %s189, %s190
    %p202 = scmp.eq.s32.totalorder %s28, 1
    %p203 = por %p201, %p202
    %p205 = scmp.ne.s32.totalorder %s190, %s204
    %p206 = scmp.eq.s32.totalorder %s28, 0
    %p207 = por %p205, %p206
    %s209 = sadd.s32 %s208, 1
    %p212 = scmp.eq.s32.totalorder %s22, 1
    %p213 = scmp.ne.s32.totalorder %s208, %s210
    %p214 = scmp.eq.s32.totalorder %s22, 0
    %p215 = por %p213, %p214
    %p216 = scmp.ne.s32.totalorder %s208, %s210
    %p217 = scmp.eq.s32.totalorder %s27, 1
    %p218 = por %p216, %p217
    %p219 = scmp.ne.s32.totalorder %s210, %s211
    %p220 = scmp.eq.s32.totalorder %s27, 0
    %p221 = por %p219, %p220
    %p222 = scmp.ne.s32.totalorder %s210, %s211
    %p223 = scmp.eq.s32.totalorder %s28, 1
    %p224 = por %p222, %p223
    %p226 = scmp.ne.s32.totalorder %s211, %s225
    %p227 = scmp.eq.s32.totalorder %s28, 0
    %p228 = por %p226, %p227
    %s230 = sadd.s32 %s229, 1
    %p233 = scmp.eq.s32.totalorder %s22, 1
    %p234 = scmp.ne.s32.totalorder %s229, %s231
    %p235 = scmp.eq.s32.totalorder %s22, 0
    %p236 = por %p234, %p235
    %p237 = scmp.ne.s32.totalorder %s229, %s231
    %p238 = scmp.eq.s32.totalorder %s27, 1
    %p239 = por %p237, %p238
    %p240 = scmp.ne.s32.totalorder %s231, %s232
    %p241 = scmp.eq.s32.totalorder %s27, 0
    %p242 = por %p240, %p241
    %p243 = scmp.ne.s32.totalorder %s231, %s232
    %p244 = scmp.eq.s32.totalorder %s28, 1
    %p245 = por %p243, %p244
    %p247 = scmp.ne.s32.totalorder %s232, %s246
    %p248 = scmp.eq.s32.totalorder %s28, 0
    %p249 = por %p247, %p248
    %s251 = sadd.s32 %s250, 1
    %p254 = scmp.eq.s32.totalorder %s22, 1
    %p255 = scmp.ne.s32.totalorder %s250, %s252
    %p256 = scmp.eq.s32.totalorder %s22, 0
    %p257 = por %p255, %p256
    %p258 = scmp.ne.s32.totalorder %s250, %s252
    %p259 = scmp.eq.s32.totalorder %s27, 1
    %p260 = por %p258, %p259
    %p261 = scmp.ne.s32.totalorder %s252, %s253
    %p262 = scmp.eq.s32.totalorder %s27, 0
    %p263 = por %p261, %p262
    %p264 = scmp.ne.s32.totalorder %s252, %s253
    %p265 = scmp.eq.s32.totalorder %s28, 1
    %p266 = por %p264, %p265
    %p268 = scmp.ne.s32.totalorder %s253, %s267
    %p269 = scmp.eq.s32.totalorder %s28, 0
    %p270 = por %p268, %p269
    %s272 = sadd.s32 %s271, 1
    %p275 = scmp.eq.s32.totalorder %s22, 1
    %p276 = scmp.ne.s32.totalorder %s271, %s273
    %p277 = scmp.eq.s32.totalorder %s22, 0
    %p278 = por %p276, %p277
    %p279 = scmp.ne.s32.totalorder %s271, %s273
    %p280 = scmp.eq.s32.totalorder %s27, 1
    %p281 = por %p279, %p280
    %p282 = scmp.ne.s32.totalorder %s273, %s274
    %p283 = scmp.eq.s32.totalorder %s27, 0
    %p284 = por %p282, %p283
    %p285 = scmp.ne.s32.totalorder %s273, %s274
    %p286 = scmp.eq.s32.totalorder %s28, 1
    %p287 = por %p285, %p286
    %p289 = scmp.ne.s32.totalorder %s274, %s288
    %p290 = scmp.eq.s32.totalorder %s28, 0
    %p291 = por %p289, %p290
    %s293 = sadd.s32 %s292, 1
    %p296 = scmp.eq.s32.totalorder %s22, 1
    %p297 = scmp.ne.s32.totalorder %s292, %s294
    %p298 = scmp.eq.s32.totalorder %s22, 0
    %p299 = por %p297, %p298
    %p300 = scmp.ne.s32.totalorder %s292, %s294
    %p301 = scmp.eq.s32.totalorder %s27, 1
    %p302 = por %p300, %p301
    %p303 = scmp.ne.s32.totalorder %s294, %s295
    %p304 = scmp.eq.s32.totalorder %s27, 0
    %p305 = por %p303, %p304
    %p306 = scmp.ne.s32.totalorder %s294, %s295
    %p307 = scmp.eq.s32.totalorder %s28, 1
    %p308 = por %p306, %p307
    %p310 = scmp.ne.s32.totalorder %s295, %s309
    %p311 = scmp.eq.s32.totalorder %s28, 0
    %p312 = por %p310, %p311
    %s314 = sadd.s32 %s313, 1
    %p317 = scmp.eq.s32.totalorder %s22, 1
    %p318 = scmp.ne.s32.totalorder %s313, %s315
    %p319 = scmp.eq.s32.totalorder %s22, 0
    %p320 = por %p318, %p319
    %p321 = scmp.ne.s32.totalorder %s313, %s315
    %p322 = scmp.eq.s32.totalorder %s27, 1
    %p323 = por %p321, %p322
    %p324 = scmp.ne.s32.totalorder %s315, %s316
    %p325 = scmp.eq.s32.totalorder %s27, 0
    %p326 = por %p324, %p325
    %p327 = scmp.ne.s32.totalorder %s315, %s316
    %p328 = scmp.eq.s32.totalorder %s28, 1
    %p329 = por %p327, %p328
    %p331 = scmp.ne.s32.totalorder %s316, %s330
    %p332 = scmp.eq.s32.totalorder %s28, 0
    %p333 = por %p331, %p332
    %s335 = sadd.s32 %s334, 1
    %p338 = scmp.eq.s32.totalorder %s22, 1
    %p339 = scmp.ne.s32.totalorder %s334, %s336
    %p340 = scmp.eq.s32.totalorder %s22, 0
    %p341 = por %p339, %p340
    %p342 = scmp.ne.s32.totalorder %s334, %s336
    %p343 = scmp.eq.s32.totalorder %s27, 1
    %p344 = por %p342, %p343
    %p345 = scmp.ne.s32.totalorder %s336, %s337
    %p346 = scmp.eq.s32.totalorder %s27, 0
    %p347 = por %p345, %p346
    %p348 = scmp.ne.s32.totalorder %s336, %s337
    %p349 = scmp.eq.s32.totalorder %s28, 1
    %p350 = por %p348, %p349
    %p352 = scmp.ne.s32.totalorder %s337, %s351
    %p353 = scmp.eq.s32.totalorder %s28, 0
    %p354 = por %p352, %p353
    %s356 = sadd.s32 %s355, 1
    %p359 = scmp.eq.s32.totalorder %s22, 1
    %p360 = scmp.ne.s32.totalorder %s355, %s357
    %p361 = scmp.eq.s32.totalorder %s22, 0
    %p362 = por %p360, %p361
    %p363 = scmp.ne.s32.totalorder %s355, %s357
    %p364 = scmp.eq.s32.totalorder %s27, 1
    %p365 = por %p363, %p364
    %p366 = scmp.ne.s32.totalorder %s357, %s358
    %p367 = scmp.eq.s32.totalorder %s27, 0
    %p368 = por %p366, %p367
    %p369 = scmp.ne.s32.totalorder %s357, %s358
    %p370 = scmp.eq.s32.totalorder %s28, 1
    %p371 = por %p369, %p370
    %p373 = scmp.ne.s32.totalorder %s358, %s372
    %p374 = scmp.eq.s32.totalorder %s28, 0
    %p375 = por %p373, %p374
    %s376 = ssub.s32 %s22, %s29
    %p377 = scmp.eq.s32.totalorder %s376, 0
    %s379 = sadd.s32 %s378, 1
    %s380 = scalar_select %p377, %s378, %s379
    %p383 = pneg %p377
    %p384 = scmp.eq.s32.totalorder %s22, 1
    %p385 = por %p383, %p384
    %p386 = scmp.ne.s32.totalorder %s378, %s381
    %p387 = scmp.eq.s32.totalorder %s22, 0
    %p388 = por %p386, %p387
    %p389 = scmp.ne.s32.totalorder %s378, %s381
    %p390 = scmp.eq.s32.totalorder %s27, 1
    %p391 = por %p389, %p390
    %p392 = scmp.ne.s32.totalorder %s381, %s382
    %p393 = scmp.eq.s32.totalorder %s27, 0
    %p394 = por %p392, %p393
    %p395 = scmp.ne.s32.totalorder %s381, %s382
    %p396 = scmp.eq.s32.totalorder %s28, 1
    %p397 = por %p395, %p396
    %p399 = scmp.ne.s32.totalorder %s382, %s398
    %p400 = scmp.eq.s32.totalorder %s28, 0
    %p401 = por %p399, %p400
    %p402 = scmp.le.s32.totalorder 1, %s22
    %p403 = scmp.lt.s32.totalorder %s22, 3
    %p404 = pnand %p402, %p403
    %p405 = pneg %p404
    // Predicated region
    $region9: #{bert_classifier_forward.2} parent=5 // pred_check
      _
    $region10: #{bert_classifier_forward.2} parent=5 // pred_check_branch
      %407 = sbr.rel (%p404) target = $region12
    $region11: #{bert_classifier_forward.2} parent=5 // pred_region
      %s408 = ssub.s32 %s22, 1
      // Predicated region
      $region13: #{bert_classifier_forward.2} parent=11 // pred_check
        %p409 = pneg %p95
      $region14: #{bert_classifier_forward.2} parent=11 // pred_check_branch
        %411 = sbr.rel (%p409) target = $region16
      $region15: #{bert_classifier_forward.2} parent=11 // pred_region
        _
      $region16: #{bert_classifier_forward.2} parent=11 // pred_fallthru
        _
      // Predicated region
      $region17: #{bert_classifier_forward.2} parent=11 // pred_check
        %p412 = pneg %p116
      $region18: #{bert_classifier_forward.2} parent=11 // pred_check_branch
        %414 = sbr.rel (%p412) target = $region20
      $region19: #{bert_classifier_forward.2} parent=11 // pred_region
        _
      $region20: #{bert_classifier_forward.2} parent=11 // pred_fallthru
        _
      // Predicated region
      $region21: #{bert_classifier_forward.2} parent=11 // pred_check
        %p415 = pneg %p137
      $region22: #{bert_classifier_forward.2} parent=11 // pred_check_branch
        %417 = sbr.rel (%p415) target = $region24
      $region23: #{bert_classifier_forward.2} parent=11 // pred_region
        _
      $region24: #{bert_classifier_forward.2} parent=11 // pred_fallthru
        _
      // Predicated region
      $region25: #{bert_classifier_forward.2} parent=11 // pred_check
        %p418 = pneg %p158
      $region26: #{bert_classifier_forward.2} parent=11 // pred_check_branch
        %420 = sbr.rel (%p418) target = $region28
      $region27: #{bert_classifier_forward.2} parent=11 // pred_region
        _
      $region28: #{bert_classifier_forward.2} parent=11 // pred_fallthru
        _
      // Predicated region
      $region29: #{bert_classifier_forward.2} parent=11 // pred_check
        %p421 = pneg %p179
      $region30: #{bert_classifier_forward.2} parent=11 // pred_check_branch
        %423 = sbr.rel (%p421) target = $region32
      $region31: #{bert_classifier_forward.2} parent=11 // pred_region
        _
      $region32: #{bert_classifier_forward.2} parent=11 // pred_fallthru
        _
      // Predicated region
      $region33: #{bert_classifier_forward.2} parent=11 // pred_check
        %p424 = pneg %p200
      $region34: #{bert_classifier_forward.2} parent=11 // pred_check_branch
        %426 = sbr.rel (%p424) target = $region36
      $region35: #{bert_classifier_forward.2} parent=11 // pred_region
        _
      $region36: #{bert_classifier_forward.2} parent=11 // pred_fallthru
        _
      // Predicated region
      $region37: #{bert_classifier_forward.2} parent=11 // pred_check
        %p427 = pneg %p221
      $region38: #{bert_classifier_forward.2} parent=11 // pred_check_branch
        %429 = sbr.rel (%p427) target = $region40
      $region39: #{bert_classifier_forward.2} parent=11 // pred_region
        _
      $region40: #{bert_classifier_forward.2} parent=11 // pred_fallthru
        _
      // Predicated region
      $region41: #{bert_classifier_forward.2} parent=11 // pred_check
        %p430 = pneg %p242
      $region42: #{bert_classifier_forward.2} parent=11 // pred_check_branch
        %432 = sbr.rel (%p430) target = $region44
      $region43: #{bert_classifier_forward.2} parent=11 // pred_region
        _
      $region44: #{bert_classifier_forward.2} parent=11 // pred_fallthru
        _
      // Predicated region
      $region45: #{bert_classifier_forward.2} parent=11 // pred_check
        %p433 = pneg %p263
      $region46: #{bert_classifier_forward.2} parent=11 // pred_check_branch
        %435 = sbr.rel (%p433) target = $region48
      $region47: #{bert_classifier_forward.2} parent=11 // pred_region
        _
      $region48: #{bert_classifier_forward.2} parent=11 // pred_fallthru
        _
      // Predicated region
      $region49: #{bert_classifier_forward.2} parent=11 // pred_check
        %p436 = pneg %p284
      $region50: #{bert_classifier_forward.2} parent=11 // pred_check_branch
        %438 = sbr.rel (%p436) target = $region52
      $region51: #{bert_classifier_forward.2} parent=11 // pred_region
        _
      $region52: #{bert_classifier_forward.2} parent=11 // pred_fallthru
        _
      // Predicated region
      $region53: #{bert_classifier_forward.2} parent=11 // pred_check
        %p439 = pneg %p305
      $region54: #{bert_classifier_forward.2} parent=11 // pred_check_branch
        %441 = sbr.rel (%p439) target = $region56
      $region55: #{bert_classifier_forward.2} parent=11 // pred_region
        _
      $region56: #{bert_classifier_forward.2} parent=11 // pred_fallthru
        _
      // Predicated region
      $region57: #{bert_classifier_forward.2} parent=11 // pred_check
        %p442 = pneg %p326
      $region58: #{bert_classifier_forward.2} parent=11 // pred_check_branch
        %444 = sbr.rel (%p442) target = $region60
      $region59: #{bert_classifier_forward.2} parent=11 // pred_region
        _
      $region60: #{bert_classifier_forward.2} parent=11 // pred_fallthru
        _
      // Predicated region
      $region61: #{bert_classifier_forward.2} parent=11 // pred_check
        %p445 = pneg %p347
      $region62: #{bert_classifier_forward.2} parent=11 // pred_check_branch
        %447 = sbr.rel (%p445) target = $region64
      $region63: #{bert_classifier_forward.2} parent=11 // pred_region
        _
      $region64: #{bert_classifier_forward.2} parent=11 // pred_fallthru
        _
      // Predicated region
      $region65: #{bert_classifier_forward.2} parent=11 // pred_check
        %p448 = pneg %p368
      $region66: #{bert_classifier_forward.2} parent=11 // pred_check_branch
        %450 = sbr.rel (%p448) target = $region68
      $region67: #{bert_classifier_forward.2} parent=11 // pred_region
        _
      $region68: #{bert_classifier_forward.2} parent=11 // pred_fallthru
        _
    $region12: #{bert_classifier_forward.2} parent=5 // pred_fallthru
      _
    %p451 = scmp.lt.s32.totalorder %s22, 2
    // Predicated region
    $region69: #{bert_classifier_forward.2} parent=5 // pred_check
      %p452 = pneg %p451
    $region70: #{bert_classifier_forward.2} parent=5 // pred_check_branch
      %454 = sbr.rel (%p452) target = $region72
    $region71: #{bert_classifier_forward.2} parent=5 // pred_region
      // Predicated region
      $region73: #{bert_classifier_forward.2} parent=71 // pred_check
        %p455 = pneg %p42
      $region74: #{bert_classifier_forward.2} parent=71 // pred_check_branch
        %457 = sbr.rel (%p455) target = $region76
      $region75: #{bert_classifier_forward.2} parent=71 // pred_region
        %p458 = scmp.lt.s32.totalorder %s22, 1
        %s459 = scalar_select %p458, %s22, 1
        %s460 = smul.addr %s459, 8
        %s461 = scalar_lea.vmem %s0, %s460
      $region76: #{bert_classifier_forward.2} parent=71 // pred_fallthru
        _
      // Predicated region
      $region77: #{bert_classifier_forward.2} parent=71 // pred_check
        %p462 = pneg %p68
      $region78: #{bert_classifier_forward.2} parent=71 // pred_check_branch
        %464 = sbr.rel (%p462) target = $region80
      $region79: #{bert_classifier_forward.2} parent=71 // pred_region
        %p465 = scmp.lt.s32.totalorder %s22, 1
        %s466 = scalar_select %p465, %s22, 1
        %s467 = scalar_lea.vmem %s1, %s466
      $region80: #{bert_classifier_forward.2} parent=71 // pred_fallthru
        _
    $region72: #{bert_classifier_forward.2} parent=5 // pred_fallthru
      _
    %p468 = scmp.le.s32.totalorder 1, %s22
    %p469 = scmp.lt.s32.totalorder %s22, 3
    %p470 = pnand %p468, %p469
    %p471 = pneg %p470
    // Predicated region
    $region81: #{bert_classifier_forward.2} parent=5 // pred_check
      _
    $region82: #{bert_classifier_forward.2} parent=5 // pred_check_branch
      %473 = sbr.rel (%p470) target = $region84
    $region83: #{bert_classifier_forward.2} parent=5 // pred_region
      %s474 = ssub.s32 %s22, 1
      %p475 = scmp.lt.s32.totalorder %s27, 1
      %s476 = scalar_select %p475, %s27, 1
      %s477 = smul.addr %s476, 8
      %s478 = scalar_lea.vmem %s0, %s477
      %p479 = pneg %p48
      %p480 = pneg %p45
      %p481 = scmp.lt.s32.totalorder %s27, 1
      %s482 = scalar_select %p481, %s27, 1
      %s483 = scalar_lea.vmem %s1, %s482
      %p484 = pneg %p74
      %p485 = pneg %p71
      %p486 = pneg %p95
      %p487 = pneg %p92
      %p488 = pneg %p116
      %p489 = pneg %p113
      %p490 = pneg %p137
      %p491 = pneg %p134
      %p492 = pneg %p158
      %p493 = pneg %p155
      %p494 = pneg %p179
      %p495 = pneg %p176
      %p496 = pneg %p200
      %p497 = pneg %p197
      %p498 = pneg %p221
      %p499 = pneg %p218
      %p500 = pneg %p242
      %p501 = pneg %p239
      %p502 = pneg %p263
      %p503 = pneg %p260
      %p504 = pneg %p284
      %p505 = pneg %p281
      %p506 = pneg %p305
      %p507 = pneg %p302
      %p508 = pneg %p326
      %p509 = pneg %p323
      %p510 = pneg %p347
      %p511 = pneg %p344
      %p512 = pneg %p368
      %p513 = pneg %p365
      %p514 = pneg %p394
      %p515 = pneg %p391
      %p516 = scmp.lt.s32.totalorder %s27, 1
      %s517 = scalar_select %p516, %s27, 1
      %s518 = smul.addr %s517, 4
      %s519 = scalar_lea.vmem %s16, %s518
      %p520 = scmp.lt.s32.totalorder %s27, 1
      %s521 = scalar_select %p520, %s27, 1
      %s522 = smul.addr %s521, 8
      %s523 = scalar_lea.vmem %s0, %s522
      %p524 = scmp.lt.s32.totalorder %s27, 1
      %s525 = scalar_select %p524, %s27, 1
      %s526 = scalar_lea.vmem %s1, %s525
      %p527 = scmp.lt.s32.totalorder %s27, 1
      %s528 = scalar_select %p527, %s27, 1
      %s529 = smul.addr %s528, 4
      %s530 = scalar_lea.vmem %s16, %s529
      %v532 = vld [vmem:[%s523] sm:$0xff]
      %v533 = vld [vmem:[%s2] sm:$0x1]
      %v534 = vld [vmem:[%s3] sm:$0x1]
      %vm535 = vcmask 261120
      %v536 = vsel %vm535, %v532, 0.0
      %537 = vadd.xlane.f32.xlu0 %v536
      %v538 = vpop.xlane.xlu0 %537
      %v539 = vrcp.pop 32.0
      %v540 = vmul.f32 %v538, %v539
      %v541 = vsub.f32 %v532, %v540
      %v542 = vmul.f32 %v541, %v541
      %v543 = vsel %vm535, %v542, 0.0
      %544 = vadd.xlane.f32.xlu0 %v543
      %v545 = vpop.xlane.xlu0 %544
      %v546 = vmul.f32 %v545, %v539
      %v547 = vadd.f32 %v546, 1e-12
      %v548 = vrsqrt.pop %v547
      %v549 = vmul.f32 %v541, %v548
      %v551 = vlaneseq
      %v552 = vshrl.u32 %v551, 7
      %v553 = vsub.s32 0, %v552
      %v554 = vrot.slane %v533, %v553
      %v556 = vmul.f32 %v549, %v554
      %v558 = vlaneseq
      %v559 = vshrl.u32 %v558, 7
      %v560 = vsub.s32 0, %v559
      %v561 = vrot.slane %v534, %v560
      %v563 = vadd.f32 %v556, %v561
      %v564 = vld [vmem:[%s526] sm:$0x1]
      %v565 = vld [vmem:[%s5] sm:$0x1]
      %v566 = vpack.c.bf16 %v563, %v563
      %v567 = vld [vmem:[%s4] sm:$0xf]
      %v568 = vld [vmem:[%s4 + $0x4] sm:$0xf]
      %v569 = vld [vmem:[%s4 + $0x8] sm:$0xf]
      %v570 = vld [vmem:[%s4 + $0xc] sm:$0xf]
      %v572 = vlaneseq
      %v573 = vshrl.u32 %v572, 7
      %v574 = vsub.s32 0, %v573
      %v575 = vrot.slane %v565, %v574
      %v581 = vunpack.c.l.b16 %v567
      %v582 = vunpack.c.l.b16 %v568
      %v583 = vunpack.c.l.b16 %v569
      %v584 = vunpack.c.l.b16 %v570
      %v585 = vpack.c.b16 %v582, %v581
      %v586 = vpack.c.b16 %v584, %v583
      %v590 = vsel %vm535, %v566, 0
      %592 = vmatprep.subr.bf16.mxu0 0
      %593 = vmatpush1.bf16.msra.mxu0 0
      %594 = vmatprep.subr.bf16.mxu0 0
      %595 = vmatpush1.bf16.msra.mxu0 0
      %596 = vmatprep.subr.bf16.mxu0 0
      %597 = vmatpush1.bf16.msra.mxu0 0
      %598 = vmatprep.subr.bf16.mxu0 0
      %599 = vmatpush1.bf16.msra.mxu0 0
      %600 = vmatprep.subr.bf16.mxu0 0
      %601 = vmatpush1.bf16.msra.mxu0 0
      %602 = vmatprep.subr.bf16.mxu0 0
      %603 = vmatpush1.bf16.msra.mxu0 0
      %604 = vmatprep.subr.bf16.mxu0 0
      %605 = vmatpush1.bf16.msra.mxu0 %v586
      %606 = vmatprep.subr.bf16.mxu0 0
      %607 = vmatpush1.bf16.msra.mxu0 %v585
      %608 = vmatprep.subr.bf16.mxu0 0
      %609 = vmatpush2.bf16.msra.mxu0 0
      %610 = vmatprep.subr.bf16.mxu0 0
      %611 = vmatpush2.bf16.msra.mxu0 0
      %612 = vmatprep.subr.bf16.mxu0 0
      %613 = vmatpush2.bf16.msra.mxu0 0
      %614 = vmatprep.subr.bf16.mxu0 0
      %615 = vmatpush2.bf16.msra.mxu0 0
      %616 = vmatprep.subr.bf16.mxu0 0
      %617 = vmatpush2.bf16.msra.mxu0 0
      %618 = vmatprep.subr.bf16.mxu0 0
      %619 = vmatpush2.bf16.msra.mxu0 0
      %620 = vmatprep.subr.bf16.mxu0 0
      %621 = vmatpush2.bf16.msra.mxu0 0
      %622 = vmatprep.subr.bf16.mxu0 0
      %623 = vmatpush2.bf16.msra.mxu0 0
      %624 = vmatprep.mubr.bf16.mxu0 0
      %625 = vmatmul.mubr.bf16.gmra.mxu0 %v590
      %v626 = vpop.f32.mrf.mxu0
      %v627 = vadd.f32 %v575, %v626
      %v628 = vpop.f32.mrf.mxu0
      %v629 = vpop.f32.mrf.mxu0
      %v630 = vpop.f32.mrf.mxu0
      %631 = vdwg.mxu0
      %633 = vrot.lane.b32.xlu0 %v627, 120
      %v634 = vpop.permute.xlu0 %633
      %636 = vrot.lane.b32.xlu0 %v627, 112
      %v637 = vpop.permute.xlu0 %636
      %639 = vrot.lane.b32.xlu0 %v627, 104
      %v640 = vpop.permute.xlu0 %639
      %v642 = vpack.c.bf16 %v627, %v627
      %v643 = vpack.c.bf16 %v634, %v634
      %v644 = vpack.c.bf16 %v637, %v637
      %v645 = vpack.c.bf16 %v640, %v640
      %v647 = vlaneseq
      %v648 = vshrl.u32 %v647, 7
      %v649 = vsub.s32 0, %v648
      %v650 = vrot.slane %v564, %v649
      %653 = vrot.lane.b32.xlu0 %v642, 96
      %v654 = vpop.permute.xlu0 %653
      %vm655 = vcmask 64512
      %v657 = vsel %vm655, %v642, 0
      %v660 = vsel %vm655, %v654, 0
      %662 = vmatprep.subr.bf16.mxu0 0
      %663 = vmatpush1.bf16.xpose.msra.mxu0 0
      %664 = vmatprep.subr.bf16.mxu0 0
      %665 = vmatpush1.bf16.xpose.msra.mxu0 0
      %666 = vmatprep.subr.bf16.mxu0 0
      %667 = vmatpush1.bf16.xpose.msra.mxu0 0
      %668 = vmatprep.subr.bf16.mxu0 0
      %669 = vmatpush1.bf16.xpose.msra.mxu0 0
      %670 = vmatprep.subr.bf16.mxu0 0
      %671 = vmatpush1.bf16.xpose.msra.mxu0 0
      %672 = vmatprep.subr.bf16.mxu0 0
      %673 = vmatpush1.bf16.xpose.msra.mxu0 0
      %674 = vmatprep.subr.bf16.mxu0 0
      %675 = vmatpush1.bf16.xpose.msra.mxu0 0
      %676 = vmatprep.subr.bf16.mxu0 0
      %677 = vmatpush1.bf16.xpose.msra.mxu0 %v660
      %678 = vmatprep.subr.bf16.mxu0 0
      %679 = vmatpush2.bf16.xpose.msra.mxu0 0
      %680 = vmatprep.subr.bf16.mxu0 0
      %681 = vmatpush2.bf16.xpose.msra.mxu0 0
      %682 = vmatprep.subr.bf16.mxu0 0
      %683 = vmatpush2.bf16.xpose.msra.mxu0 0
      %684 = vmatprep.subr.bf16.mxu0 0
      %685 = vmatpush2.bf16.xpose.msra.mxu0 0
      %686 = vmatprep.subr.bf16.mxu0 0
      %687 = vmatpush2.bf16.xpose.msra.mxu0 0
      %688 = vmatprep.subr.bf16.mxu0 0
      %689 = vmatpush2.bf16.xpose.msra.mxu0 0
      %690 = vmatprep.subr.bf16.mxu0 0
      %691 = vmatpush2.bf16.xpose.msra.mxu0 0
      %692 = vmatprep.subr.bf16.mxu0 0
      %693 = vmatpush2.bf16.xpose.msra.mxu0 0
      %694 = vmatprep.mubr.bf16.mxu0 0
      %695 = vmatmul.mubr.bf16.gmra.mxu0 %v657
      %v696 = vpop.f32.mrf.mxu0
      %v697 = vadd.f32 %v650, %v696
      %v698 = vpop.f32.mrf.mxu0
      %v699 = vpop.f32.mrf.mxu0
      %v700 = vpop.f32.mrf.mxu0
      %701 = vdwg.mxu0
      %703 = vrot.lane.b32.xlu0 %v643, 96
      %v704 = vpop.permute.xlu0 %703
      %v706 = vsel %vm655, %v643, 0
      %v709 = vsel %vm655, %v704, 0
      %711 = vmatprep.subr.bf16.mxu0 0
      %712 = vmatpush1.bf16.xpose.msra.mxu0 0
      %713 = vmatprep.subr.bf16.mxu0 0
      %714 = vmatpush1.bf16.xpose.msra.mxu0 0
      %715 = vmatprep.subr.bf16.mxu0 0
      %716 = vmatpush1.bf16.xpose.msra.mxu0 0
      %717 = vmatprep.subr.bf16.mxu0 0
      %718 = vmatpush1.bf16.xpose.msra.mxu0 0
      %719 = vmatprep.subr.bf16.mxu0 0
      %720 = vmatpush1.bf16.xpose.msra.mxu0 0
      %721 = vmatprep.subr.bf16.mxu0 0
      %722 = vmatpush1.bf16.xpose.msra.mxu0 0
      %723 = vmatprep.subr.bf16.mxu0 0
      %724 = vmatpush1.bf16.xpose.msra.mxu0 0
      %725 = vmatprep.subr.bf16.mxu0 0
      %726 = vmatpush1.bf16.xpose.msra.mxu0 %v709
      %727 = vmatprep.subr.bf16.mxu0 0
      %728 = vmatpush2.bf16.xpose.msra.mxu0 0
      %729 = vmatprep.subr.bf16.mxu0 0
      %730 = vmatpush2.bf16.xpose.msra.mxu0 0
      %731 = vmatprep.subr.bf16.mxu0 0
      %732 = vmatpush2.bf16.xpose.msra.mxu0 0
      %733 = vmatprep.subr.bf16.mxu0 0
      %734 = vmatpush2.bf16.xpose.msra.mxu0 0
      %735 = vmatprep.subr.bf16.mxu0 0
      %736 = vmatpush2.bf16.xpose.msra.mxu0 0
      %737 = vmatprep.subr.bf16.mxu0 0
      %738 = vmatpush2.bf16.xpose.msra.mxu0 0
      %739 = vmatprep.subr.bf16.mxu0 0
      %740 = vmatpush2.bf16.xpose.msra.mxu0 0
      %741 = vmatprep.subr.bf16.mxu0 0
      %742 = vmatpush2.bf16.xpose.msra.mxu0 0
      %743 = vmatprep.mubr.bf16.mxu0 0
      %744 = vmatmul.mubr.bf16.gmra.mxu0 %v706
      %v745 = vpop.f32.mrf.mxu0
      %v746 = vadd.f32 %v650, %v745
      %v747 = vpop.f32.mrf.mxu0
      %v748 = vpop.f32.mrf.mxu0
      %v749 = vpop.f32.mrf.mxu0
      %750 = vdwg.mxu0
      %752 = vrot.lane.b32.xlu0 %v644, 96
      %v753 = vpop.permute.xlu0 %752
      %v755 = vsel %vm655, %v644, 0
      %v758 = vsel %vm655, %v753, 0
      %760 = vmatprep.subr.bf16.mxu0 0
      %761 = vmatpush1.bf16.xpose.msra.mxu0 0
      %762 = vmatprep.subr.bf16.mxu0 0
      %763 = vmatpush1.bf16.xpose.msra.mxu0 0
      %764 = vmatprep.subr.bf16.mxu0 0
      %765 = vmatpush1.bf16.xpose.msra.mxu0 0
      %766 = vmatprep.subr.bf16.mxu0 0
      %767 = vmatpush1.bf16.xpose.msra.mxu0 0
      %768 = vmatprep.subr.bf16.mxu0 0
      %769 = vmatpush1.bf16.xpose.msra.mxu0 0
      %770 = vmatprep.subr.bf16.mxu0 0
      %771 = vmatpush1.bf16.xpose.msra.mxu0 0
      %772 = vmatprep.subr.bf16.mxu0 0
      %773 = vmatpush1.bf16.xpose.msra.mxu0 0
      %774 = vmatprep.subr.bf16.mxu0 0
      %775 = vmatpush1.bf16.xpose.msra.mxu0 %v758
      %776 = vmatprep.subr.bf16.mxu0 0
      %777 = vmatpush2.bf16.xpose.msra.mxu0 0
      %778 = vmatprep.subr.bf16.mxu0 0
      %779 = vmatpush2.bf16.xpose.msra.mxu0 0
      %780 = vmatprep.subr.bf16.mxu0 0
      %781 = vmatpush2.bf16.xpose.msra.mxu0 0
      %782 = vmatprep.subr.bf16.mxu0 0
      %783 = vmatpush2.bf16.xpose.msra.mxu0 0
      %784 = vmatprep.subr.bf16.mxu0 0
      %785 = vmatpush2.bf16.xpose.msra.mxu0 0
      %786 = vmatprep.subr.bf16.mxu0 0
      %787 = vmatpush2.bf16.xpose.msra.mxu0 0
      %788 = vmatprep.subr.bf16.mxu0 0
      %789 = vmatpush2.bf16.xpose.msra.mxu0 0
      %790 = vmatprep.subr.bf16.mxu0 0
      %791 = vmatpush2.bf16.xpose.msra.mxu0 0
      %792 = vmatprep.mubr.bf16.mxu0 0
      %793 = vmatmul.mubr.bf16.gmra.mxu0 %v755
      %v794 = vpop.f32.mrf.mxu0
      %v795 = vadd.f32 %v650, %v794
      %v796 = vpop.f32.mrf.mxu0
      %v797 = vpop.f32.mrf.mxu0
      %v798 = vpop.f32.mrf.mxu0
      %799 = vdwg.mxu0
      %801 = vrot.lane.b32.xlu0 %v645, 96
      %v802 = vpop.permute.xlu0 %801
      %v804 = vsel %vm655, %v645, 0
      %v807 = vsel %vm655, %v802, 0
      %809 = vmatprep.subr.bf16.mxu0 0
      %810 = vmatpush1.bf16.xpose.msra.mxu0 0
      %811 = vmatprep.subr.bf16.mxu0 0
      %812 = vmatpush1.bf16.xpose.msra.mxu0 0
      %813 = vmatprep.subr.bf16.mxu0 0
      %814 = vmatpush1.bf16.xpose.msra.mxu0 0
      %815 = vmatprep.subr.bf16.mxu0 0
      %816 = vmatpush1.bf16.xpose.msra.mxu0 0
      %817 = vmatprep.subr.bf16.mxu0 0
      %818 = vmatpush1.bf16.xpose.msra.mxu0 0
      %819 = vmatprep.subr.bf16.mxu0 0
      %820 = vmatpush1.bf16.xpose.msra.mxu0 0
      %821 = vmatprep.subr.bf16.mxu0 0
      %822 = vmatpush1.bf16.xpose.msra.mxu0 0
      %823 = vmatprep.subr.bf16.mxu0 0
      %824 = vmatpush1.bf16.xpose.msra.mxu0 %v807
      %825 = vmatprep.subr.bf16.mxu0 0
      %826 = vmatpush2.bf16.xpose.msra.mxu0 0
      %827 = vmatprep.subr.bf16.mxu0 0
      %828 = vmatpush2.bf16.xpose.msra.mxu0 0
      %829 = vmatprep.subr.bf16.mxu0 0
      %830 = vmatpush2.bf16.xpose.msra.mxu0 0
      %831 = vmatprep.subr.bf16.mxu0 0
      %832 = vmatpush2.bf16.xpose.msra.mxu0 0
      %833 = vmatprep.subr.bf16.mxu0 0
      %834 = vmatpush2.bf16.xpose.msra.mxu0 0
      %835 = vmatprep.subr.bf16.mxu0 0
      %836 = vmatpush2.bf16.xpose.msra.mxu0 0
      %837 = vmatprep.subr.bf16.mxu0 0
      %838 = vmatpush2.bf16.xpose.msra.mxu0 0
      %839 = vmatprep.subr.bf16.mxu0 0
      %840 = vmatpush2.bf16.xpose.msra.mxu0 0
      %841 = vmatprep.mubr.bf16.mxu0 0
      %842 = vmatmul.mubr.bf16.gmra.mxu0 %v804
      %v843 = vpop.f32.mrf.mxu0
      %v844 = vadd.f32 %v650, %v843
      %v845 = vpop.f32.mrf.mxu0
      %v846 = vpop.f32.mrf.mxu0
      %v847 = vpop.f32.mrf.mxu0
      %848 = vdwg.mxu0
      %v849 = vsel %vm655, %v697, -inf
      %850 = vmax.xlane.f32.xlu0 %v849
      %v851 = vpop.xlane.xlu0 %850
      %v852 = vsel %vm655, %v746, -inf
      %853 = vmax.xlane.f32.xlu0 %v852
      %v854 = vpop.xlane.xlu0 %853
      %v855 = vsel %vm655, %v795, -inf
      %856 = vmax.xlane.f32.xlu0 %v855
      %v857 = vpop.xlane.xlu0 %856
      %v858 = vsel %vm655, %v844, -inf
      %859 = vmax.xlane.f32.xlu0 %v858
      %v860 = vpop.xlane.xlu0 %859
      %v861 = vsub.f32 %v697, %v851
      %v862 = vsub.f32 %v746, %v854
      %v863 = vsub.f32 %v795, %v857
      %v864 = vsub.f32 %v844, %v860
      %v865 = vmul.f32 %v861, 1.442695
      %v866 = vpow.pop %v865
      %v867 = vmul.f32 %v862, 1.442695
      %v868 = vpow.pop %v867
      %v869 = vmul.f32 %v863, 1.442695
      %v870 = vpow.pop %v869
      %v871 = vmul.f32 %v864, 1.442695
      %v872 = vpow.pop %v871
      %v873 = vsel %vm655, %v866, 0.0
      %874 = vadd.xlane.f32.xlu0 %v873
      %v875 = vpop.xlane.xlu0 %874
      %v876 = vsel %vm655, %v868, 0.0
      %877 = vadd.xlane.f32.xlu0 %v876
      %v878 = vpop.xlane.xlu0 %877
      %v879 = vsel %vm655, %v870, 0.0
      %880 = vadd.xlane.f32.xlu0 %v879
      %v881 = vpop.xlane.xlu0 %880
      %v882 = vsel %vm655, %v872, 0.0
      %883 = vadd.xlane.f32.xlu0 %v882
      %v884 = vpop.xlane.xlu0 %883
      %v885 = vrcp.pop %v875
      %v886 = vrcp.pop %v878
      %v887 = vrcp.pop %v881
      %v888 = vrcp.pop %v884
      %v889 = vmul.f32 %v866, %v885
      %v890 = vmul.f32 %v868, %v886
      %v891 = vmul.f32 %v870, %v887
      %v892 = vmul.f32 %v872, %v888
      %v893 = vpack.c.bf16 %v889, %v889
      %v894 = vpack.c.bf16 %v890, %v890
      %v895 = vpack.c.bf16 %v891, %v891
      %v896 = vpack.c.bf16 %v892, %v892
      %897 = vrot.lane.b32.xlu0 %v642, 64
      %v898 = vpop.permute.xlu0 %897
      %v900 = vsel %vm655, %v893, 0
      %vm902 = vcmask 1043456
      %v904 = vsel %vm902, %v898, 0
      %906 = vmatprep.subr.bf16.mxu0 0
      %907 = vmatpush1.bf16.msra.mxu0 0
      %908 = vmatprep.subr.bf16.mxu0 0
      %909 = vmatpush1.bf16.msra.mxu0 0
      %910 = vmatprep.subr.bf16.mxu0 0
      %911 = vmatpush1.bf16.msra.mxu0 0
      %912 = vmatprep.subr.bf16.mxu0 0
      %913 = vmatpush1.bf16.msra.mxu0 0
      %914 = vmatprep.subr.bf16.mxu0 0
      %915 = vmatpush1.bf16.msra.mxu0 0
      %916 = vmatprep.subr.bf16.mxu0 0
      %917 = vmatpush1.bf16.msra.mxu0 0
      %918 = vmatprep.subr.bf16.mxu0 0
      %919 = vmatpush1.bf16.msra.mxu0 0
      %920 = vmatprep.subr.bf16.mxu0 0
      %921 = vmatpush1.bf16.msra.mxu0 %v904
      %922 = vmatprep.subr.bf16.mxu0 0
      %923 = vmatpush2.bf16.msra.mxu0 0
      %924 = vmatprep.subr.bf16.mxu0 0
      %925 = vmatpush2.bf16.msra.mxu0 0
      %926 = vmatprep.subr.bf16.mxu0 0
      %927 = vmatpush2.bf16.msra.mxu0 0
      %928 = vmatprep.subr.bf16.mxu0 0
      %929 = vmatpush2.bf16.msra.mxu0 0
      %930 = vmatprep.subr.bf16.mxu0 0
      %931 = vmatpush2.bf16.msra.mxu0 0
      %932 = vmatprep.subr.bf16.mxu0 0
      %933 = vmatpush2.bf16.msra.mxu0 0
      %934 = vmatprep.subr.bf16.mxu0 0
      %935 = vmatpush2.bf16.msra.mxu0 0
      %936 = vmatprep.subr.bf16.mxu0 0
      %937 = vmatpush2.bf16.msra.mxu0 0
      %938 = vmatprep.mubr.bf16.mxu0 0
      %939 = vmatmul.mubr.bf16.gmra.mxu0 %v900
      %v940 = vpop.f32.mrf.mxu0
      %v941 = vadd.f32 0.0, %v940
      %v942 = vpop.f32.mrf.mxu0
      %v943 = vpop.f32.mrf.mxu0
      %v944 = vpop.f32.mrf.mxu0
      %945 = vdwg.mxu0
      %946 = vrot.lane.b32.xlu0 %v643, 64
      %v947 = vpop.permute.xlu0 %946
      %v949 = vsel %vm655, %v894, 0
      %v952 = vsel %vm902, %v947, 0
      %954 = vmatprep.subr.bf16.mxu0 0
      %955 = vmatpush1.bf16.msra.mxu0 0
      %956 = vmatprep.subr.bf16.mxu0 0
      %957 = vmatpush1.bf16.msra.mxu0 0
      %958 = vmatprep.subr.bf16.mxu0 0
      %959 = vmatpush1.bf16.msra.mxu0 0
      %960 = vmatprep.subr.bf16.mxu0 0
      %961 = vmatpush1.bf16.msra.mxu0 0
      %962 = vmatprep.subr.bf16.mxu0 0
      %963 = vmatpush1.bf16.msra.mxu0 0
      %964 = vmatprep.subr.bf16.mxu0 0
      %965 = vmatpush1.bf16.msra.mxu0 0
      %966 = vmatprep.subr.bf16.mxu0 0
      %967 = vmatpush1.bf16.msra.mxu0 0
      %968 = vmatprep.subr.bf16.mxu0 0
      %969 = vmatpush1.bf16.msra.mxu0 %v952
      %970 = vmatprep.subr.bf16.mxu0 0
      %971 = vmatpush2.bf16.msra.mxu0 0
      %972 = vmatprep.subr.bf16.mxu0 0
      %973 = vmatpush2.bf16.msra.mxu0 0
      %974 = vmatprep.subr.bf16.mxu0 0
      %975 = vmatpush2.bf16.msra.mxu0 0
      %976 = vmatprep.subr.bf16.mxu0 0
      %977 = vmatpush2.bf16.msra.mxu0 0
      %978 = vmatprep.subr.bf16.mxu0 0
      %979 = vmatpush2.bf16.msra.mxu0 0
      %980 = vmatprep.subr.bf16.mxu0 0
      %981 = vmatpush2.bf16.msra.mxu0 0
      %982 = vmatprep.subr.bf16.mxu0 0
      %983 = vmatpush2.bf16.msra.mxu0 0
      %984 = vmatprep.subr.bf16.mxu0 0
      %985 = vmatpush2.bf16.msra.mxu0 0
      %986 = vmatprep.mubr.bf16.mxu0 0
      %987 = vmatmul.mubr.bf16.gmra.mxu0 %v949
      %v988 = vpop.f32.mrf.mxu0
      %v989 = vadd.f32 0.0, %v988
      %v990 = vpop.f32.mrf.mxu0
      %v991 = vpop.f32.mrf.mxu0
      %v992 = vpop.f32.mrf.mxu0
      %993 = vdwg.mxu0
      %994 = vrot.lane.b32.xlu0 %v644, 64
      %v995 = vpop.permute.xlu0 %994
      %v997 = vsel %vm655, %v895, 0
      %v1000 = vsel %vm902, %v995, 0
      %1002 = vmatprep.subr.bf16.mxu0 0
      %1003 = vmatpush1.bf16.msra.mxu0 0
      %1004 = vmatprep.subr.bf16.mxu0 0
      %1005 = vmatpush1.bf16.msra.mxu0 0
      %1006 = vmatprep.subr.bf16.mxu0 0
      %1007 = vmatpush1.bf16.msra.mxu0 0
      %1008 = vmatprep.subr.bf16.mxu0 0
      %1009 = vmatpush1.bf16.msra.mxu0 0
      %1010 = vmatprep.subr.bf16.mxu0 0
      %1011 = vmatpush1.bf16.msra.mxu0 0
      %1012 = vmatprep.subr.bf16.mxu0 0
      %1013 = vmatpush1.bf16.msra.mxu0 0
      %1014 = vmatprep.subr.bf16.mxu0 0
      %1015 = vmatpush1.bf16.msra.mxu0 0
      %1016 = vmatprep.subr.bf16.mxu0 0
      %1017 = vmatpush1.bf16.msra.mxu0 %v1000
      %1018 = vmatprep.subr.bf16.mxu0 0
      %1019 = vmatpush2.bf16.msra.mxu0 0
      %1020 = vmatprep.subr.bf16.mxu0 0
      %1021 = vmatpush2.bf16.msra.mxu0 0
      %1022 = vmatprep.subr.bf16.mxu0 0
      %1023 = vmatpush2.bf16.msra.mxu0 0
      %1024 = vmatprep.subr.bf16.mxu0 0
      %1025 = vmatpush2.bf16.msra.mxu0 0
      %1026 = vmatprep.subr.bf16.mxu0 0
      %1027 = vmatpush2.bf16.msra.mxu0 0
      %1028 = vmatprep.subr.bf16.mxu0 0
      %1029 = vmatpush2.bf16.msra.mxu0 0
      %1030 = vmatprep.subr.bf16.mxu0 0
      %1031 = vmatpush2.bf16.msra.mxu0 0
      %1032 = vmatprep.subr.bf16.mxu0 0
      %1033 = vmatpush2.bf16.msra.mxu0 0
      %1034 = vmatprep.mubr.bf16.mxu0 0
      %1035 = vmatmul.mubr.bf16.gmra.mxu0 %v997
      %v1036 = vpop.f32.mrf.mxu0
      %v1037 = vadd.f32 0.0, %v1036
      %v1038 = vpop.f32.mrf.mxu0
      %v1039 = vpop.f32.mrf.mxu0
      %v1040 = vpop.f32.mrf.mxu0
      %1041 = vdwg.mxu0
      %1042 = vrot.lane.b32.xlu0 %v645, 64
      %v1043 = vpop.permute.xlu0 %1042
      %v1045 = vsel %vm655, %v896, 0
      %v1048 = vsel %vm902, %v1043, 0
      %1050 = vmatprep.subr.bf16.mxu0 0
      %1051 = vmatpush1.bf16.msra.mxu0 0
      %1052 = vmatprep.subr.bf16.mxu0 0
      %1053 = vmatpush1.bf16.msra.mxu0 0
      %1054 = vmatprep.subr.bf16.mxu0 0
      %1055 = vmatpush1.bf16.msra.mxu0 0
      %1056 = vmatprep.subr.bf16.mxu0 0
      %1057 = vmatpush1.bf16.msra.mxu0 0
      %1058 = vmatprep.subr.bf16.mxu0 0
      %1059 = vmatpush1.bf16.msra.mxu0 0
      %1060 = vmatprep.subr.bf16.mxu0 0
      %1061 = vmatpush1.bf16.msra.mxu0 0
      %1062 = vmatprep.subr.bf16.mxu0 0
      %1063 = vmatpush1.bf16.msra.mxu0 0
      %1064 = vmatprep.subr.bf16.mxu0 0
      %1065 = vmatpush1.bf16.msra.mxu0 %v1048
      %1066 = vmatprep.subr.bf16.mxu0 0
      %1067 = vmatpush2.bf16.msra.mxu0 0
      %1068 = vmatprep.subr.bf16.mxu0 0
      %1069 = vmatpush2.bf16.msra.mxu0 0
      %1070 = vmatprep.subr.bf16.mxu0 0
      %1071 = vmatpush2.bf16.msra.mxu0 0
      %1072 = vmatprep.subr.bf16.mxu0 0
      %1073 = vmatpush2.bf16.msra.mxu0 0
      %1074 = vmatprep.subr.bf16.mxu0 0
      %1075 = vmatpush2.bf16.msra.mxu0 0
      %1076 = vmatprep.subr.bf16.mxu0 0
      %1077 = vmatpush2.bf16.msra.mxu0 0
      %1078 = vmatprep.subr.bf16.mxu0 0
      %1079 = vmatpush2.bf16.msra.mxu0 0
      %1080 = vmatprep.subr.bf16.mxu0 0
      %1081 = vmatpush2.bf16.msra.mxu0 0
      %1082 = vmatprep.mubr.bf16.mxu0 0
      %1083 = vmatmul.mubr.bf16.gmra.mxu0 %v1045
      %v1084 = vpop.f32.mrf.mxu0
      %v1085 = vadd.f32 0.0, %v1084
      %v1086 = vpop.f32.mrf.mxu0
      %v1087 = vpop.f32.mrf.mxu0
      %v1088 = vpop.f32.mrf.mxu0
      %1089 = vdwg.mxu0
      %1091 = vrot.lane.b32.xlu0 %v989, 8
      %v1092 = vpop.permute.xlu0 %1091
      %1095 = vrot.lane.b32.xlu0 %v1037, 16
      %v1096 = vpop.permute.xlu0 %1095
      %1099 = vrot.lane.b32.xlu0 %v1085, 24
      %v1100 = vpop.permute.xlu0 %1099
      %v1102 = vsel %vm655, %v941, %v1092
      %vm1103 = vcmask 130048
      %v1104 = vsel %vm1103, %v1102, %v1096
      %vm1105 = vcmask 195584
      %v1106 = vsel %vm1105, %v1104, %v1100
      %v1107 = vld [vmem:[%s7] sm:$0x1]
      %v1108 = vpack.c.bf16 %v1106, %v1106
      %v1109 = vld [vmem:[%s6] sm:$0xf]
      %v1110 = vld [vmem:[%s6 + $0x4] sm:$0xf]
      %v1111 = vld [vmem:[%s6 + $0x8] sm:$0xf]
      %v1112 = vld [vmem:[%s6 + $0xc] sm:$0xf]
      %v1114 = vlaneseq
      %v1115 = vshrl.u32 %v1114, 7
      %v1116 = vsub.s32 0, %v1115
      %v1117 = vrot.slane %v1107, %v1116
      %v1123 = vunpack.c.l.b16 %v1109
      %v1124 = vunpack.c.l.b16 %v1110
      %v1125 = vunpack.c.l.b16 %v1111
      %v1126 = vunpack.c.l.b16 %v1112
      %v1127 = vpack.c.b16 %v1124, %v1123
      %v1128 = vpack.c.b16 %v1126, %v1125
      %v1132 = vsel %vm535, %v1108, 0
      %1134 = vmatprep.subr.bf16.mxu0 0
      %1135 = vmatpush1.bf16.msra.mxu0 0
      %1136 = vmatprep.subr.bf16.mxu0 0
      %1137 = vmatpush1.bf16.msra.mxu0 0
      %1138 = vmatprep.subr.bf16.mxu0 0
      %1139 = vmatpush1.bf16.msra.mxu0 0
      %1140 = vmatprep.subr.bf16.mxu0 0
      %1141 = vmatpush1.bf16.msra.mxu0 0
      %1142 = vmatprep.subr.bf16.mxu0 0
      %1143 = vmatpush1.bf16.msra.mxu0 0
      %1144 = vmatprep.subr.bf16.mxu0 0
      %1145 = vmatpush1.bf16.msra.mxu0 0
      %1146 = vmatprep.subr.bf16.mxu0 0
      %1147 = vmatpush1.bf16.msra.mxu0 %v1128
      %1148 = vmatprep.subr.bf16.mxu0 0
      %1149 = vmatpush1.bf16.msra.mxu0 %v1127
      %1150 = vmatprep.subr.bf16.mxu0 0
      %1151 = vmatpush2.bf16.msra.mxu0 0
      %1152 = vmatprep.subr.bf16.mxu0 0
      %1153 = vmatpush2.bf16.msra.mxu0 0
      %1154 = vmatprep.subr.bf16.mxu0 0
      %1155 = vmatpush2.bf16.msra.mxu0 0
      %1156 = vmatprep.subr.bf16.mxu0 0
      %1157 = vmatpush2.bf16.msra.mxu0 0
      %1158 = vmatprep.subr.bf16.mxu0 0
      %1159 = vmatpush2.bf16.msra.mxu0 0
      %1160 = vmatprep.subr.bf16.mxu0 0
      %1161 = vmatpush2.bf16.msra.mxu0 0
      %1162 = vmatprep.subr.bf16.mxu0 0
      %1163 = vmatpush2.bf16.msra.mxu0 0
      %1164 = vmatprep.subr.bf16.mxu0 0
      %1165 = vmatpush2.bf16.msra.mxu0 0
      %1166 = vmatprep.mubr.bf16.mxu0 0
      %1167 = vmatmul.mubr.bf16.gmra.mxu0 %v1132
      %v1168 = vpop.f32.mrf.mxu0
      %v1169 = vadd.f32 %v1117, %v1168
      %v1170 = vpop.f32.mrf.mxu0
      %v1171 = vpop.f32.mrf.mxu0
      %v1172 = vpop.f32.mrf.mxu0
      %1173 = vdwg.mxu0
      %v1174 = vadd.f32 %v1169, %v563
      %v1175 = vld [vmem:[%s8] sm:$0x1]
      %v1176 = vld [vmem:[%s9] sm:$0x1]
      %v1177 = vsel %vm535, %v1174, 0.0
      %1178 = vadd.xlane.f32.xlu0 %v1177
      %v1179 = vpop.xlane.xlu0 %1178
      %v1180 = vmul.f32 %v1179, %v539
      %v1181 = vsub.f32 %v1174, %v1180
      %v1182 = vmul.f32 %v1181, %v1181
      %v1183 = vsel %vm535, %v1182, 0.0
      %1184 = vadd.xlane.f32.xlu0 %v1183
      %v1185 = vpop.xlane.xlu0 %1184
      %v1186 = vmul.f32 %v1185, %v539
      %v1187 = vadd.f32 %v1186, 1e-12
      %v1188 = vrsqrt.pop %v1187
      %v1189 = vmul.f32 %v1181, %v1188
      %v1191 = vlaneseq
      %v1192 = vshrl.u32 %v1191, 7
      %v1193 = vsub.s32 0, %v1192
      %v1194 = vrot.slane %v1175, %v1193
      %v1196 = vmul.f32 %v1189, %v1194
      %v1198 = vlaneseq
      %v1199 = vshrl.u32 %v1198, 7
      %v1200 = vsub.s32 0, %v1199
      %v1201 = vrot.slane %v1176, %v1200
      %v1203 = vadd.f32 %v1196, %v1201
      %v1204 = vld [vmem:[%s11] sm:$0x1]
      %v1205 = vpack.c.bf16 %v1203, %v1203
      %v1206 = vld [vmem:[%s10] sm:$0xf]
      %v1207 = vld [vmem:[%s10 + $0x4] sm:$0xf]
      %v1208 = vld [vmem:[%s10 + $0x8] sm:$0xf]
      %v1209 = vld [vmem:[%s10 + $0xc] sm:$0xf]
      %v1211 = vlaneseq
      %v1212 = vshrl.u32 %v1211, 7
      %v1213 = vsub.s32 0, %v1212
      %v1214 = vrot.slane %v1204, %v1213
      %v1220 = vunpack.c.l.b16 %v1206
      %v1221 = vunpack.c.l.b16 %v1207
      %v1222 = vunpack.c.l.b16 %v1208
      %v1223 = vunpack.c.l.b16 %v1209
      %v1224 = vpack.c.b16 %v1221, %v1220
      %v1225 = vpack.c.b16 %v1223, %v1222
      %v1229 = vsel %vm535, %v1205, 0
      %1231 = vmatprep.subr.bf16.mxu0 0
      %1232 = vmatpush1.bf16.msra.mxu0 0
      %1233 = vmatprep.subr.bf16.mxu0 0
      %1234 = vmatpush1.bf16.msra.mxu0 0
      %1235 = vmatprep.subr.bf16.mxu0 0
      %1236 = vmatpush1.bf16.msra.mxu0 0
      %1237 = vmatprep.subr.bf16.mxu0 0
      %1238 = vmatpush1.bf16.msra.mxu0 0
      %1239 = vmatprep.subr.bf16.mxu0 0
      %1240 = vmatpush1.bf16.msra.mxu0 0
      %1241 = vmatprep.subr.bf16.mxu0 0
      %1242 = vmatpush1.bf16.msra.mxu0 0
      %1243 = vmatprep.subr.bf16.mxu0 0
      %1244 = vmatpush1.bf16.msra.mxu0 %v1225
      %1245 = vmatprep.subr.bf16.mxu0 0
      %1246 = vmatpush1.bf16.msra.mxu0 %v1224
      %1247 = vmatprep.subr.bf16.mxu0 0
      %1248 = vmatpush2.bf16.msra.mxu0 0
      %1249 = vmatprep.subr.bf16.mxu0 0
      %1250 = vmatpush2.bf16.msra.mxu0 0
      %1251 = vmatprep.subr.bf16.mxu0 0
      %1252 = vmatpush2.bf16.msra.mxu0 0
      %1253 = vmatprep.subr.bf16.mxu0 0
      %1254 = vmatpush2.bf16.msra.mxu0 0
      %1255 = vmatprep.subr.bf16.mxu0 0
      %1256 = vmatpush2.bf16.msra.mxu0 0
      %1257 = vmatprep.subr.bf16.mxu0 0
      %1258 = vmatpush2.bf16.msra.mxu0 0
      %1259 = vmatprep.subr.bf16.mxu0 0
      %1260 = vmatpush2.bf16.msra.mxu0 0
      %1261 = vmatprep.subr.bf16.mxu0 0
      %1262 = vmatpush2.bf16.msra.mxu0 0
      %1263 = vmatprep.mubr.bf16.mxu0 0
      %1264 = vmatmul.mubr.bf16.gmra.mxu0 %v1229
      %v1265 = vpop.f32.mrf.mxu0
      %v1266 = vadd.f32 %v1214, %v1265
      %v1267 = vpop.f32.mrf.mxu0
      %v1268 = vpop.f32.mrf.mxu0
      %v1269 = vpop.f32.mrf.mxu0
      %1270 = vdwg.mxu0
      %v1271 = vmul.f32 %v1266, 0.5
      %v1272 = vmul.f32 %v1266, 0.70710677
      %vm1273 = vcmp.ge.f32.partialorder %v1272, 0.0
      %v1274 = vsel %vm1273, 1.0, -1.0
      %v1275 = vmul.f32 %v1272, %v1274
      %v1276 = vmul.f32 %v1275, 0.3275911
      %v1277 = vadd.f32 %v1276, 1.0
      %v1278 = vrcp.pop %v1277
      %v1279 = vmul.f32 1.0, %v1278
      %v1280 = vmul.f32 %v1279, 1.0614054
      %v1281 = vadd.f32 %v1280, -1.4531521
      %v1282 = vmul.f32 %v1281, %v1279
      %v1283 = vadd.f32 %v1282, 1.4214138
      %v1284 = vmul.f32 %v1283, %v1279
      %v1285 = vadd.f32 %v1284, -0.28449672
      %v1286 = vmul.f32 %v1285, %v1279
      %v1287 = vadd.f32 %v1286, 0.2548296
      %v1288 = vmul.f32 %v1287, %v1279
      %v1289 = vsub.f32 0.0, %v1275
      %v1290 = vmul.f32 %v1289, %v1275
      %v1291 = vmul.f32 %v1290, 1.442695
      %v1292 = vpow.pop %v1291
      %v1293 = vmul.f32 %v1288, %v1292
      %v1294 = vsub.f32 1.0, %v1293
      %v1295 = vmul.f32 %v1274, %v1294
      %v1296 = vadd.f32 %v1295, 1.0
      %v1297 = vmul.f32 %v1271, %v1296
      %v1298 = vld [vmem:[%s13] sm:$0x1]
      %v1299 = vpack.c.bf16 %v1297, %v1297
      %v1300 = vld [vmem:[%s12] sm:$0xf]
      %v1301 = vld [vmem:[%s12 + $0x4] sm:$0xf]
      %v1302 = vld [vmem:[%s12 + $0x8] sm:$0xf]
      %v1303 = vld [vmem:[%s12 + $0xc] sm:$0xf]
      %v1304 = vld [vmem:[%s12 + $0x10] sm:$0xf]
      %v1305 = vld [vmem:[%s12 + $0x14] sm:$0xf]
      %v1306 = vld [vmem:[%s12 + $0x18] sm:$0xf]
      %v1307 = vld [vmem:[%s12 + $0x1c] sm:$0xf]
      %v1309 = vlaneseq
      %v1310 = vshrl.u32 %v1309, 7
      %v1311 = vsub.s32 0, %v1310
      %v1312 = vrot.slane %v1298, %v1311
      %v1322 = vunpack.c.l.b16 %v1300
      %v1323 = vunpack.c.l.b16 %v1301
      %v1324 = vunpack.c.l.b16 %v1302
      %v1325 = vunpack.c.l.b16 %v1303
      %v1326 = vunpack.c.l.b16 %v1304
      %v1327 = vunpack.c.l.b16 %v1305
      %v1328 = vunpack.c.l.b16 %v1306
      %v1329 = vunpack.c.l.b16 %v1307
      %v1330 = vpack.c.b16 %v1323, %v1322
      %v1331 = vpack.c.b16 %v1325, %v1324
      %v1332 = vpack.c.b16 %v1327, %v1326
      %v1333 = vpack.c.b16 %v1329, %v1328
      %vm1338 = vcmask 523264
      %v1340 = vsel %vm1338, %v1299, 0
      %1342 = vmatprep.subr.bf16.mxu0 0
      %1343 = vmatpush1.bf16.msra.mxu0 0
      %1344 = vmatprep.subr.bf16.mxu0 0
      %1345 = vmatpush1.bf16.msra.mxu0 0
      %1346 = vmatprep.subr.bf16.mxu0 0
      %1347 = vmatpush1.bf16.msra.mxu0 0
      %1348 = vmatprep.subr.bf16.mxu0 0
      %1349 = vmatpush1.bf16.msra.mxu0 0
      %1350 = vmatprep.subr.bf16.mxu0 0
      %1351 = vmatpush1.bf16.msra.mxu0 %v1333
      %1352 = vmatprep.subr.bf16.mxu0 0
      %1353 = vmatpush1.bf16.msra.mxu0 %v1332
      %1354 = vmatprep.subr.bf16.mxu0 0
      %1355 = vmatpush1.bf16.msra.mxu0 %v1331
      %1356 = vmatprep.subr.bf16.mxu0 0
      %1357 = vmatpush1.bf16.msra.mxu0 %v1330
      %1358 = vmatprep.subr.bf16.mxu0 0
      %1359 = vmatpush2.bf16.msra.mxu0 0
      %1360 = vmatprep.subr.bf16.mxu0 0
      %1361 = vmatpush2.bf16.msra.mxu0 0
      %1362 = vmatprep.subr.bf16.mxu0 0
      %1363 = vmatpush2.bf16.msra.mxu0 0
      %1364 = vmatprep.subr.bf16.mxu0 0
      %1365 = vmatpush2.bf16.msra.mxu0 0
      %1366 = vmatprep.subr.bf16.mxu0 0
      %1367 = vmatpush2.bf16.msra.mxu0 0
      %1368 = vmatprep.subr.bf16.mxu0 0
      %1369 = vmatpush2.bf16.msra.mxu0 0
      %1370 = vmatprep.subr.bf16.mxu0 0
      %1371 = vmatpush2.bf16.msra.mxu0 0
      %1372 = vmatprep.subr.bf16.mxu0 0
      %1373 = vmatpush2.bf16.msra.mxu0 0
      %1374 = vmatprep.mubr.bf16.mxu0 0
      %1375 = vmatmul.mubr.bf16.gmra.mxu0 %v1340
      %v1376 = vpop.f32.mrf.mxu0
      %v1377 = vadd.f32 %v1312, %v1376
      %v1378 = vpop.f32.mrf.mxu0
      %v1379 = vpop.f32.mrf.mxu0
      %v1380 = vpop.f32.mrf.mxu0
      %1381 = vdwg.mxu0
      %v1382 = vadd.f32 %v1377, %v1203
      %v1383 = vld [vmem:[%s14] sm:$0x1]
      %v1384 = vld [vmem:[%s15] sm:$0x1]
      %v1385 = vsel %vm535, %v1382, 0.0
      %1386 = vadd.xlane.f32.xlu0 %v1385
      %v1387 = vpop.xlane.xlu0 %1386
      %v1388 = vmul.f32 %v1387, %v539
      %v1389 = vsub.f32 %v1382, %v1388
      %v1390 = vmul.f32 %v1389, %v1389
      %v1391 = vsel %vm535, %v1390, 0.0
      %1392 = vadd.xlane.f32.xlu0 %v1391
      %v1393 = vpop.xlane.xlu0 %1392
      %v1394 = vmul.f32 %v1393, %v539
      %v1395 = vadd.f32 %v1394, 1e-12
      %v1396 = vrsqrt.pop %v1395
      %v1397 = vmul.f32 %v1389, %v1396
      %v1399 = vlaneseq
      %v1400 = vshrl.u32 %v1399, 7
      %v1401 = vsub.s32 0, %v1400
      %v1402 = vrot.slane %v1383, %v1401
      %v1404 = vmul.f32 %v1397, %v1402
      %v1406 = vlaneseq
      %v1407 = vshrl.u32 %v1406, 7
      %v1408 = vsub.s32 0, %v1407
      %v1409 = vrot.slane %v1384, %v1408
      %v1411 = vadd.f32 %v1404, %v1409
      %v1412 = vpack.c.bf16 %v1411, %v1411
      %vm1413 = vcmask 257024
      %1414 = vst.msk [vmem:[%s530] sm:$0xf] %vm1413, %v1412
      %p1415 = scmp.lt.s32.totalorder %s27, 1
      %s1416 = scalar_select %p1415, %s27, 1
      %s1417 = smul.addr %s1416, 4
      %s1418 = scalar_lea.vmem %s16, %s1417
      // Predicated region
      $region85: #{bert_classifier_forward.2} parent=83 // pred_check
        %p1419 = pneg %p391
      $region86: #{bert_classifier_forward.2} parent=83 // pred_check_branch
        %1421 = sbr.rel (%p1419) target = $region88
      $region87: #{bert_classifier_forward.2} parent=83 // pred_region
        _
      $region88: #{bert_classifier_forward.2} parent=83 // pred_fallthru
        _
    $region84: #{bert_classifier_forward.2} parent=5 // pred_fallthru
      _
    %p1422 = scmp.le.s32.totalorder 2, %s22
    // Predicated region
    $region89: #{bert_classifier_forward.2} parent=5 // pred_check
      %p1423 = pneg %p1422
    $region90: #{bert_classifier_forward.2} parent=5 // pred_check_branch
      %1425 = sbr.rel (%p1423) target = $region92
    $region91: #{bert_classifier_forward.2} parent=5 // pred_region
      %s1426 = ssub.s32 %s22, 2
      // Predicated region
      $region93: #{bert_classifier_forward.2} parent=91 // pred_check
        %p1427 = pneg %p397
      $region94: #{bert_classifier_forward.2} parent=91 // pred_check_branch
        %1429 = sbr.rel (%p1427) target = $region96
      $region95: #{bert_classifier_forward.2} parent=91 // pred_region
        %p1430 = scmp.lt.s32.totalorder %s28, 1
        %s1431 = scalar_select %p1430, %s28, 1
        %s1432 = smul.addr %s1431, 4
        %s1433 = scalar_lea.vmem %s16, %s1432
      $region96: #{bert_classifier_forward.2} parent=91 // pred_fallthru
        _
    $region92: #{bert_classifier_forward.2} parent=5 // pred_fallthru
      _
  $region6: #{bert_classifier_forward.2} parent=0 // loop_footer
    %s26 = sadd.s32 1, %s22
  $region7: #{bert_classifier_forward.2} parent=0 // loop_footer_branch
    %21 = sbr.rel target = $region3
  $region8: #{bert_classifier_forward.2} parent=0 // loop_exit
    _

</llo_original>
